<compile_context>
chip_gen: v7x
topology: tpu7x:2x2x1
jax: 0.10.0
libtpu: 0.0.40
codegen_flags: <defaults>
</compile_context>

<pallas_src>
import functools
import math

import jax
import jax.numpy as jnp
from jax.experimental import pallas as pl
from jax.experimental.pallas import tpu as pltpu


_VMEM_BUDGET = 32 * 1024 * 1024   # working-set budget used for tile sizing
_VMEM_LIMIT = 48 * 1024 * 1024    # scoped VMEM request (safe on v5e/v6e/v7x)


# ----------------------------------------------------------------------------
# helpers
# ----------------------------------------------------------------------------
def _vspec():
    return pl.BlockSpec(memory_space=pltpu.MemorySpace.VMEM)


def _grid_params(dims):
    return pltpu.CompilerParams(dimension_semantics=dims,
                                vmem_limit_bytes=_VMEM_LIMIT)


def _pick_row_tile(n_rows, per_row_bytes, resident_bytes):
    """Largest 128-multiple row tile dividing n_rows whose double-buffered
    working set fits the VMEM budget; small problems use one full tile."""
    cands = [t for t in (1024, 512, 256, 128) if t < n_rows and n_rows % t == 0]
    for t in cands:
        if 2 * t * per_row_bytes + resident_bytes <= _VMEM_BUDGET:
            return t
    if cands:
        return cands[-1]
    # TODO(synk): pad ragged row axes to a multiple of 128 instead of falling
    # back to a single full tile.
    return n_rows


def _core_split(n_tiles):
    """Split row tiles 2-ways so v7x's second TensorCore gets work; this is a
    no-op loop reorganization on 1-TC chips (v5e/v6e)."""
    return 2 if (n_tiles >= 2 and n_tiles % 2 == 0) else 1


# ----------------------------------------------------------------------------
# Explainer: tiled MLP scores + per-graph segment softmax.
# Pass 1 (grid over node/lane tiles, "arbitrary"):
#   scores s[1, tile], resident per-graph running max / sum-of-exp [B,1].
# Pass 2 (grid over node tiles, "parallel"):
#   node_max/node_den via [1,B]x[B,tile] MXU dots, normalize.
# ----------------------------------------------------------------------------
def _expl_score_kernel(*refs, num_layers):
    x_ref = refs[0]                         # [F, tn]
    wf_ref = refs[1 + 2 * num_layers]       # [1, He]
    bf_ref = refs[2 + 2 * num_layers]       # [1, 1]
    mem_ref = refs[3 + 2 * num_layers]      # [B, tn]
    s_ref = refs[4 + 2 * num_layers]        # [1, tn]
    gmax_ref = refs[5 + 2 * num_layers]     # [B, 1]  resident
    gsum_ref = refs[6 + 2 * num_layers]     # [B, 1]  resident

    i = pl.program_id(0)

    @pl.when(i == 0)
    def _():
        gmax_ref[...] = jnp.full(gmax_ref.shape, -1e30, dtype=gmax_ref.dtype)
        gsum_ref[...] = jnp.zeros_like(gsum_ref)

    h = x_ref[...]
    for l in range(num_layers):
        w = refs[1 + 2 * l][...]            # [H_out, H_in]
        b = refs[2 + 2 * l][...]            # [H_out, 1]
        h = jnp.maximum(
            jnp.dot(w, h, preferred_element_type=jnp.float32) + b, 0.0)
    s = jnp.dot(wf_ref[...], h, preferred_element_type=jnp.float32) + bf_ref[...]
    s_ref[...] = s                                           # [1, tn]

    mem = mem_ref[...]                                       # [B, tn]
    member = mem > 0.5
    tile_max = jnp.max(jnp.where(member, s, -1e30), axis=1, keepdims=True)
    m_old = gmax_ref[...]
    m_new = jnp.maximum(m_old, tile_max)
    # exp only kept where the node belongs to the graph (avoids 0*inf -> nan)
    e = jnp.where(member, jnp.exp(s - m_new), 0.0)           # [B, tn]
    tile_sum = jnp.sum(e, axis=1, keepdims=True)             # [B, 1]
    gsum_ref[...] = gsum_ref[...] * jnp.exp(m_old - m_new) + tile_sum
    gmax_ref[...] = m_new


def _expl_norm_kernel(s_ref, mem_ref, gmax_ref, gsum_ref, out_ref):
    mem = mem_ref[...]                                        # [B, tn]
    node_max = jnp.dot(gmax_ref[...], mem,
                       preferred_element_type=jnp.float32)    # [1, tn]
    node_den = jnp.dot(gsum_ref[...], mem,
                       preferred_element_type=jnp.float32)    # [1, tn]
    out_ref[...] = jnp.exp(s_ref[...] - node_max) / node_den


def explainer_segment_softmax(x_t, layers, wf_t, bf, mem):
    num_layers = len(layers)
    f, n = x_t.shape
    nb = mem.shape[0]

    per_col = (f + nb + 2) * 4
    tn = _pick_row_tile(n, per_col, resident_bytes=1 << 20)
    grid = (n // tn,)

    inputs = [x_t]
    specs = [pl.BlockSpec((f, tn), lambda i: (0, i))]
    for w_t, b_col in layers:
        inputs += [w_t, b_col]
        specs += [pl.BlockSpec(w_t.shape, lambda i: (0, 0)),
                  pl.BlockSpec(b_col.shape, lambda i: (0, 0))]
    inputs += [wf_t, bf, mem]
    specs += [pl.BlockSpec(wf_t.shape, lambda i: (0, 0)),
              pl.BlockSpec(bf.shape, lambda i: (0, 0)),
              pl.BlockSpec((nb, tn), lambda i: (0, i))]

    s, gmax, gsum = pl.pallas_call(
        functools.partial(_expl_score_kernel, num_layers=num_layers),
        out_shape=(jax.ShapeDtypeStruct((1, n), jnp.float32),
                   jax.ShapeDtypeStruct((nb, 1), jnp.float32),
                   jax.ShapeDtypeStruct((nb, 1), jnp.float32)),
        grid=grid,
        in_specs=specs,
        out_specs=(pl.BlockSpec((1, tn), lambda i: (0, i)),
                   pl.BlockSpec((nb, 1), lambda i: (0, 0)),
                   pl.BlockSpec((nb, 1), lambda i: (0, 0))),
        compiler_params=_grid_params(("arbitrary",)),
    )(*inputs)

    imp = pl.pallas_call(
        _expl_norm_kernel,
        out_shape=jax.ShapeDtypeStruct((1, n), jnp.float32),
        grid=grid,
        in_specs=[pl.BlockSpec((1, tn), lambda i: (0, i)),
                  pl.BlockSpec((nb, tn), lambda i: (0, i)),
                  pl.BlockSpec((1, nb), lambda i: (0, 0)),
                  pl.BlockSpec((1, nb), lambda i: (0, 0))],
        out_specs=pl.BlockSpec((1, tn), lambda i: (0, i)),
        compiler_params=_grid_params(("parallel",)),
    )(s, mem, gmax.reshape(1, -1), gsum.reshape(1, -1))
    return imp


# ----------------------------------------------------------------------------
# Fused GINConv(eps=0) + importance-weighted add-pool.
# Grid (cores, row tiles); adjacency tile stays bf16 (no upcast), node
# features stream in bf16, accumulation in f32; resident per-core pool.
# ----------------------------------------------------------------------------
def _gin_pool_kernel(adj_ref, x_ref, w1_ref, b1_ref, w2_ref, b2_ref,
                     p_ref, imp_ref, h_ref, pool_ref, *, tm, tiles_per_core):
    c = pl.program_id(0)
    t = pl.program_id(1)
    row0 = pl.multiple_of((c * tiles_per_core + t) * tm, tm)

    x_all = x_ref[...]                                         # [N, F] bf16
    agg = (x_ref[pl.ds(row0, tm), :].astype(jnp.float32)
           + jnp.dot(adj_ref[...], x_all,
                     preferred_element_type=jnp.float32))      # [tm, F] f32

    hh = jnp.maximum(
        jnp.dot(agg, w1_ref[...], preferred_element_type=jnp.float32)
        + b1_ref[...], 0.0)
    hh = jnp.maximum(
        jnp.dot(hh, w2_ref[...], preferred_element_type=jnp.float32)
        + b2_ref[...], 0.0)
    h_ref[...] = hh.astype(h_ref.dtype)                        # bf16 out

    contrib = jnp.dot(p_ref[...] * imp_ref[...], hh,
                      preferred_element_type=jnp.float32)      # [B, H]

    @pl.when(t == 0)
    def _():
        pool_ref[...] = jnp.zeros_like(pool_ref)

    pool_ref[...] += contrib[None, :, :]


def gin_layer_pool(adj, x_bf16, w1, b1, w2, b2, p_node, imp_row):
    n, f = x_bf16.shape
    hid = w2.shape[1]
    nb = p_node.shape[0]

    per_row = 2 * n + 2 * hid + 4 * nb + 4
    resident = 2 * (2 * n * f) + 4 * (f * hid + hid * hid) + (1 << 20)
    tm = _pick_row_tile(n, per_row, resident)
    n_tiles = n // tm
    nc = _core_split(n_tiles)
    tpc = n_tiles // nc

    h, pool = pl.pallas_call(
        functools.partial(_gin_pool_kernel, tm=tm, tiles_per_core=tpc),
        out_shape=(jax.ShapeDtypeStruct((n, hid), jnp.bfloat16),
                   jax.ShapeDtypeStruct((nc, nb, hid), jnp.float32)),
        grid=(nc, tpc),
        in_specs=[
            pl.BlockSpec((tm, n), lambda c, t: (c * tpc + t, 0)),   # adj tile
            pl.BlockSpec((n, f), lambda c, t: (0, 0)),              # x (bf16)
            pl.BlockSpec((f, hid), lambda c, t: (0, 0)),            # w1
            pl.BlockSpec((1, hid), lambda c, t: (0, 0)),            # b1
            pl.BlockSpec((hid, hid), lambda c, t: (0, 0)),          # w2
            pl.BlockSpec((1, hid), lambda c, t: (0, 0)),            # b2
            pl.BlockSpec((nb, tm), lambda c, t: (0, c * tpc + t)),  # pooling
            pl.BlockSpec((1, tm), lambda c, t: (0, c * tpc + t)),   # importance
        ],
        out_specs=(
            pl.BlockSpec((tm, hid), lambda c, t: (c * tpc + t, 0)),
            pl.BlockSpec((1, nb, hid), lambda c, t: (c, 0, 0)),     # per-core pool
        ),
        compiler_params=_grid_params(("parallel", "arbitrary")),
    )(adj, x_bf16, w1, b1.reshape(1, -1), w2, b2.reshape(1, -1),
      p_node, imp_row)

    return h, pool.sum(axis=0)


# ----------------------------------------------------------------------------
# HypergraphConv (dual hypergraph) in two tiled stages + pooling.
#   stage 1 (N-row tiles, parallel):  msg = ((M^T X) Theta) * B^{-1}
#   stage 2 (E-row tiles, resident pool): X' = relu(D^{-1} M msg + b);
#                                         pool += (P*imp) @ X'
# ----------------------------------------------------------------------------
def _hyper_msg_kernel(mt_ref, xe_ref, w_ref, invb_ref, msg_ref):
    tmp = jnp.dot(mt_ref[...], xe_ref[...],
                  preferred_element_type=jnp.float32)          # [tn, d]
    msg = jnp.dot(tmp, w_ref[...],
                  preferred_element_type=jnp.float32) * invb_ref[...]
    msg_ref[...] = msg.astype(msg_ref.dtype)                   # bf16 out


def _hyper_out_pool_kernel(m_ref, msg_ref, invd_ref, b_ref, p_ref, imp_ref,
                           he_ref, pool_ref):
    t = pl.program_id(1)
    out = jnp.dot(m_ref[...], msg_ref[...],
                  preferred_element_type=jnp.float32)          # [te, H]
    he = jnp.maximum(out * invd_ref[...] + b_ref[...], 0.0)
    he_ref[...] = he.astype(he_ref.dtype)                      # bf16 out

    contrib = jnp.dot(p_ref[...] * imp_ref[...], he,
                      preferred_element_type=jnp.float32)      # [B, H]

    @pl.when(t == 0)
    def _():
        pool_ref[...] = jnp.zeros_like(pool_ref)

    pool_ref[...] += contrib[None, :, :]


def hyper_layer_pool(m_inc, mt_inc, inv_b, inv_d, xe_bf16, w, b,
                     p_edge, imp_row):
    e, n = m_inc.shape
    d = xe_bf16.shape[1]
    hid = w.shape[1]
    nb = p_edge.shape[0]

    # --- stage 1: node messages ---
    per_row = 2 * e + 2 * hid + 4
    resident = 2 * (2 * e * d) + 4 * d * hid + (1 << 20)
    tn = _pick_row_tile(n, per_row, resident)
    node_msg = pl.pallas_call(
        _hyper_msg_kernel,
        out_shape=jax.ShapeDtypeStruct((n, hid), jnp.bfloat16),
        grid=(n // tn,),
        in_specs=[
            pl.BlockSpec((tn, e), lambda i: (i, 0)),          # M^T row tile
            pl.BlockSpec((e, d), lambda i: (0, 0)),           # edge feats bf16
            pl.BlockSpec((d, hid), lambda i: (0, 0)),         # Theta
            pl.BlockSpec((tn, 1), lambda i: (i, 0)),          # B^{-1}
        ],
        out_specs=pl.BlockSpec((tn, hid), lambda i: (i, 0)),
        compiler_params=_grid_params(("parallel",)),
    )(mt_inc, xe_bf16, w, inv_b)

    # --- stage 2: hyperedge update + importance-weighted pooling ---
    per_row = 2 * n + 2 * hid + 4 * nb + 8
    resident = 2 * (2 * n * hid) + (1 << 20)
    te = _pick_row_tile(e, per_row, resident)
    n_tiles = e // te
    nc = _core_split(n_tiles)
    tpc = n_tiles // nc

    he, pool = pl.pallas_call(
        _hyper_out_pool_kernel,
        out_shape=(jax.ShapeDtypeStruct((e, hid), jnp.bfloat16),
                   jax.ShapeDtypeStruct((nc, nb, hid), jnp.float32)),
        grid=(nc, tpc),
        in_specs=[
            pl.BlockSpec((te, n), lambda c, t: (c * tpc + t, 0)),   # M row tile
            pl.BlockSpec((n, hid), lambda c, t: (0, 0)),            # node msgs
            pl.BlockSpec((te, 1), lambda c, t: (c * tpc + t, 0)),   # D^{-1}
            pl.BlockSpec((1, hid), lambda c, t: (0, 0)),            # bias
            pl.BlockSpec((nb, te), lambda c, t: (0, c * tpc + t)),  # pooling
            pl.BlockSpec((1, te), lambda c, t: (0, c * tpc + t)),   # importance
        ],
        out_specs=(
            pl.BlockSpec((te, hid), lambda c, t: (c * tpc + t, 0)),
            pl.BlockSpec((1, nb, hid), lambda c, t: (c, 0, 0)),
        ),
        compiler_params=_grid_params(("parallel", "arbitrary")),
    )(m_inc, node_msg, inv_d, b.reshape(1, -1), p_edge, imp_row)

    return he, pool.sum(axis=0)


# ----------------------------------------------------------------------------
# Fused projection head: Linear -> ReLU -> Linear (tiny, full-VMEM)
# ----------------------------------------------------------------------------
def _proj_head_kernel(y_ref, w1_ref, b1_ref, w2_ref, b2_ref, o_ref):
    hh = jnp.dot(y_ref[...], w1_ref[...],
                 preferred_element_type=jnp.float32) + b1_ref[...]
    hh = jnp.maximum(hh, 0.0)
    o_ref[...] = jnp.dot(hh, w2_ref[...],
                         preferred_element_type=jnp.float32) + b2_ref[...]


def proj_head_apply(y, w1, b1, w2, b2):
    nb = y.shape[0]
    d = w2.shape[1]
    return pl.pallas_call(
        _proj_head_kernel,
        out_shape=jax.ShapeDtypeStruct((nb, d), jnp.float32),
        in_specs=[_vspec()] * 5,
        out_specs=_vspec(),
    )(y, w1, b1.reshape(1, -1), w2, b2.reshape(1, -1))


# ----------------------------------------------------------------------------
# Parameter initialization (xavier_uniform weights, zero bias)
# ----------------------------------------------------------------------------
def xavier_uniform(key, fan_in, fan_out):
    a = math.sqrt(6.0 / (fan_in + fan_out))
    return jax.random.uniform(key, (fan_in, fan_out), jnp.float32, -a, a)


def make_linear(key, fan_in, fan_out):
    return xavier_uniform(key, fan_in, fan_out), jnp.zeros((fan_out,), jnp.float32)


def init_params(key, input_dim, input_dim_edge, hidden_dim, encoder_layers,
                explainer_hidden_dim, explainer_layers):
    keys = iter(jax.random.split(key, 64))
    params = {}

    # Explainer_MLP (weights stored transposed: features-on-lanes layout)
    mlps = []
    d = input_dim
    for _ in range(explainer_layers):
        w, b = make_linear(next(keys), d, explainer_hidden_dim)
        mlps.append((w.T, b.reshape(-1, 1)))
        d = explainer_hidden_dim
    params["explainer_mlps"] = mlps
    wf, bf = make_linear(next(keys), explainer_hidden_dim, 1)
    params["explainer_final"] = (wf.T, bf.reshape(1, 1))

    # GIN encoder: each layer is GINConv(MLP(Linear->ReLU->Linear))
    gin = []
    d = input_dim
    for _ in range(encoder_layers):
        w1, b1 = make_linear(next(keys), d, hidden_dim)
        w2, b2 = make_linear(next(keys), hidden_dim, hidden_dim)
        gin.append((w1, b1, w2, b2))
        d = hidden_dim
    params["gin_layers"] = gin

    # HyperGNN encoder on the dual hypergraph (edge features as node features)
    hyper = []
    d = input_dim_edge
    for _ in range(encoder_layers):
        hyper.append(make_linear(next(keys), d, hidden_dim))
        d = hidden_dim
    params["hyper_layers"] = hyper

    # projection heads (readout='concat' -> embedding = hidden * encoder_layers)
    emb = hidden_dim * encoder_layers
    params["proj_head"] = [make_linear(next(keys), emb, emb),
                           make_linear(next(keys), emb, emb)]
    params["proj_head_hyper"] = [make_linear(next(keys), emb, emb),
                                 make_linear(next(keys), emb, emb)]
    return params


# ----------------------------------------------------------------------------
# SIGNET forward (glue in plain JAX, hot path in tiled Pallas kernels)
# ----------------------------------------------------------------------------
def signet_forward(params, x, edge_attr, adj, p_node, m_inc, mt_inc,
                   inv_b, inv_d, p_edge, src, dst):
    # ---- explainer + per-graph segment softmax (two tiled kernels) ----
    wf_t, bf = params["explainer_final"]
    node_imp_row = explainer_segment_softmax(x.T, params["explainer_mlps"],
                                             wf_t, bf, p_node)          # [1, N]

    # ---- lift node score to edge score (index gather, lane-dense) ----
    edge_imp_row = (jnp.take(node_imp_row, src, axis=1) *
                    jnp.take(node_imp_row, dst, axis=1))                 # [1, E]

    # ---- GIN encoder + importance-weighted add-pool, 'concat' readout ----
    h = x.astype(jnp.bfloat16)
    pools = []
    for (w1, b1, w2, b2) in params["gin_layers"]:
        h, pooled = gin_layer_pool(adj, h, w1, b1, w2, b2, p_node, node_imp_row)
        pools.append(pooled)
    y = jnp.concatenate(pools, axis=1)                                   # [B, emb]

    # ---- Hypergraph encoder on the dual hypergraph + pooling ----
    he = edge_attr.astype(jnp.bfloat16)
    hpools = []
    for (w, b) in params["hyper_layers"]:
        he, hpooled = hyper_layer_pool(m_inc, mt_inc, inv_b, inv_d, he, w, b,
                                       p_edge, edge_imp_row)
        hpools.append(hpooled)
    y_hyper = jnp.concatenate(hpools, axis=1)                            # [B, emb]

    # ---- projection heads (fused Linear->ReLU->Linear kernels) ----
    (w1, b1), (w2, b2) = params["proj_head"]
    y = proj_head_apply(y, w1, b1, w2, b2)
    (w1, b1), (w2, b2) = params["proj_head_hyper"]
    y_hyper = proj_head_apply(y_hyper, w1, b1, w2, b2)

    return y, y_hyper, node_imp_row.T, edge_imp_row.T


# ----------------------------------------------------------------------------
# Dense graph-structure glue (plain JAX index setup; structure mats in bf16)
# ----------------------------------------------------------------------------
def build_dense_structure(edge_index, batch, num_nodes, num_graphs):
    src = edge_index[0].astype(jnp.int32)
    dst = edge_index[1].astype(jnp.int32)
    num_edges = src.shape[0]

    # TODO(synk): int8 (v5e/v6e) / fp8 (v7x) structure matrices would further
    # halve HBM traffic; bf16 is exact for the small-integer entries here.
    adj = jnp.zeros((num_nodes, num_nodes), jnp.float32).at[dst, src].add(1.0)
    adj = adj.astype(jnp.bfloat16)

    p_node = (batch[None, :] == jnp.arange(num_graphs)[:, None]).astype(jnp.float32)

    m_inc_f32 = jnp.zeros((num_edges, num_nodes), jnp.float32)
    m_inc_f32 = m_inc_f32.at[jnp.arange(num_edges), src].set(1.0)
    m_inc_f32 = m_inc_f32.at[jnp.arange(num_edges), dst].set(1.0)        # [E, N]
    hyperedge_deg = jnp.maximum(m_inc_f32.sum(axis=0), 1.0)              # [N]
    node_deg = jnp.maximum(m_inc_f32.sum(axis=1), 1.0)                   # [E]
    inv_b = (1.0 / hyperedge_deg)[:, None]                               # [N, 1]
    inv_d = (1.0 / node_deg)[:, None]                                    # [E, 1]
    mt_inc = m_inc_f32.T.astype(jnp.bfloat16)                            # [N, E]
    m_inc = m_inc_f32.astype(jnp.bfloat16)                               # [E, N]

    batch_edge = batch[src]
    p_edge = (batch_edge[None, :] == jnp.arange(num_graphs)[:, None]).astype(jnp.float32)

    return adj, p_node, m_inc, mt_inc, inv_b, inv_d, p_edge, src, dst


# ----------------------------------------------------------------------------
# Main
# ----------------------------------------------------------------------------
if __name__ == "__main__":
    # small synthetic problem
    num_graphs = 2
    nodes_per_graph = 8
    num_nodes = num_graphs * nodes_per_graph
    input_dim = 8
    input_dim_edge = 4
    hidden_dim = 32
    encoder_layers = 2          # readout='concat' -> embedding_dim = 64
    explainer_hidden_dim = 16
    explainer_layers = 2

    key = jax.random.PRNGKey(0)
    kx, ke, kp = jax.random.split(key, 3)
    x = jax.random.normal(kx, (num_nodes, input_dim), jnp.float32)

    # ring graph inside each graph, both directions
    edges = []
    for g in range(num_graphs):
        off = g * nodes_per_graph
        for i in range(nodes_per_graph):
            j = (i + 1) % nodes_per_graph
            edges.append((off + i, off + j))
            edges.append((off + j, off + i))
    edge_index = jnp.asarray(edges, dtype=jnp.int32).T                 # [2, E]
    num_edges = edge_index.shape[1]
    edge_attr = jax.random.normal(ke, (num_edges, input_dim_edge), jnp.float32)
    batch = jnp.repeat(jnp.arange(num_graphs, dtype=jnp.int32), nodes_per_graph)

    structure = build_dense_structure(edge_index, batch, num_nodes, num_graphs)
    params = init_params(kp, input_dim, input_dim_edge, hidden_dim,
                         encoder_layers, explainer_hidden_dim, explainer_layers)

    fwd = jax.jit(signet_forward)
    y, y_hyper, node_imp, edge_imp = fwd(params, x, edge_attr, *structure)
    jax.block_until_ready((y, y_hyper, node_imp, edge_imp))

    assert y.shape == (num_graphs, hidden_dim * encoder_layers)
    assert y_hyper.shape == (num_graphs, hidden_dim * encoder_layers)
    assert node_imp.shape == (num_nodes, 1)
    assert edge_imp.shape == (num_edges, 1)
    print("KERNEL_OK")
</pallas_src>

<mosaic_0001>
module attributes {stable_mosaic.version = 11 : i64} {
  func.func @_expl_score_kernel(%arg0: i32, %arg1: memref<8x16xf32, #tpu.memory_space<vmem>>, %arg2: memref<16x8xf32, #tpu.memory_space<vmem>>, %arg3: memref<16x1xf32, #tpu.memory_space<vmem>>, %arg4: memref<16x16xf32, #tpu.memory_space<vmem>>, %arg5: memref<16x1xf32, #tpu.memory_space<vmem>>, %arg6: memref<1x16xf32, #tpu.memory_space<vmem>>, %arg7: memref<1x1xf32, #tpu.memory_space<vmem>>, %arg8: memref<2x16xf32, #tpu.memory_space<vmem>>, %arg9: memref<1x16xf32, #tpu.memory_space<vmem>>, %arg10: memref<2x1xf32, #tpu.memory_space<vmem>>, %arg11: memref<2x1xf32, #tpu.memory_space<vmem>>) attributes {dimension_semantics = [#tpu.dimension_semantics<arbitrary>], iteration_bounds = array<i64: 1>, scalar_prefetch = 0 : i64, scratch_operands = 0 : i64, tpu.core_type = #tpu.core_type<tc>, window_params = [{transform_indices = @transform_0, window_bounds = array<i64: 8, 16>}, {pipeline_mode = #tpu.pipeline_mode<synchronous>, transform_indices = @transform_1, window_bounds = array<i64: 16, 8>}, {pipeline_mode = #tpu.pipeline_mode<synchronous>, transform_indices = @transform_2, window_bounds = array<i64: 16, 1>}, {pipeline_mode = #tpu.pipeline_mode<synchronous>, transform_indices = @transform_3, window_bounds = array<i64: 16, 16>}, {pipeline_mode = #tpu.pipeline_mode<synchronous>, transform_indices = @transform_4, window_bounds = array<i64: 16, 1>}, {pipeline_mode = #tpu.pipeline_mode<synchronous>, transform_indices = @transform_5, window_bounds = array<i64: 1, 16>}, {pipeline_mode = #tpu.pipeline_mode<synchronous>, transform_indices = @transform_6, window_bounds = array<i64: 1, 1>}, {transform_indices = @transform_7, window_bounds = array<i64: 2, 16>}, {transform_indices = @transform_8, window_bounds = array<i64: 1, 16>}, {pipeline_mode = #tpu.pipeline_mode<synchronous>, transform_indices = @transform_9, window_bounds = array<i64: 2, 1>}, {pipeline_mode = #tpu.pipeline_mode<synchronous>, transform_indices = @transform_10, window_bounds = array<i64: 2, 1>}]} {
    %c0_i32 = arith.constant 0 : i32
    %0 = arith.cmpi eq, %arg0, %c0_i32 : i32
    %1 = arith.extui %0 : i1 to i32
    %c0_i32_0 = arith.constant 0 : i32
    %2 = arith.cmpi ne, %1, %c0_i32_0 : i32
    scf.if %2 {
      %cst_35 = arith.constant -1.000000e+30 : f32
      %50 = vector.broadcast %cst_35 : f32 to vector<2x1xf32>
      %c0_36 = arith.constant 0 : index
      %c0_37 = arith.constant 0 : index
      %51 = vector.load %arg10[%c0_36, %c0_37] : memref<2x1xf32, #tpu.memory_space<vmem>>, vector<2x1xf32>
      tpu.vector_store %arg10[%c0_36, %c0_37], %50 {strides = array<i32>} : memref<2x1xf32, #tpu.memory_space<vmem>>, vector<2x1xf32>,
      %cst_38 = arith.constant 0.000000e+00 : f32
      %52 = vector.broadcast %cst_38 : f32 to vector<2x1xf32>
      %c0_39 = arith.constant 0 : index
      %c0_40 = arith.constant 0 : index
      %53 = vector.load %arg11[%c0_39, %c0_40] : memref<2x1xf32, #tpu.memory_space<vmem>>, vector<2x1xf32>
      tpu.vector_store %arg11[%c0_39, %c0_40], %52 {strides = array<i32>} : memref<2x1xf32, #tpu.memory_space<vmem>>, vector<2x1xf32>,
    } else {
    }
    %c0 = arith.constant 0 : index
    %c0_1 = arith.constant 0 : index
    %3 = vector.load %arg1[%c0, %c0_1] : memref<8x16xf32, #tpu.memory_space<vmem>>, vector<8x16xf32>
    %c0_2 = arith.constant 0 : index
    %c0_3 = arith.constant 0 : index
    %4 = vector.load %arg2[%c0_2, %c0_3] : memref<16x8xf32, #tpu.memory_space<vmem>>, vector<16x8xf32>
    %c0_4 = arith.constant 0 : index
    %c0_5 = arith.constant 0 : index
    %5 = vector.load %arg3[%c0_4, %c0_5] : memref<16x1xf32, #tpu.memory_space<vmem>>, vector<16x1xf32>
    %cst = arith.constant dense<0.000000e+00> : vector<16x16xf32>
    %6 = tpu.matmul %4, %3, %cst {dimension_numbers = #tpu.dot_dimension_numbers<[1], [0], [0], [1], [0, 0, 1, 1], [], []>} : vector<16x8xf32>, vector<8x16xf32>, vector<16x16xf32> -> vector<16x16xf32>
    %7 = vector.broadcast %5 : vector<16x1xf32> to vector<16x16xf32>
    %8 = arith.addf %6, %7 : vector<16x16xf32>
    %cst_6 = arith.constant 0.000000e+00 : f32
    %9 = vector.broadcast %cst_6 : f32 to vector<16x16xf32>
    %10 = arith.maximumf %8, %9 : vector<16x16xf32>
    %c0_7 = arith.constant 0 : index
    %c0_8 = arith.constant 0 : index
    %11 = vector.load %arg4[%c0_7, %c0_8] : memref<16x16xf32, #tpu.memory_space<vmem>>, vector<16x16xf32>
    %c0_9 = arith.constant 0 : index
    %c0_10 = arith.constant 0 : index
    %12 = vector.load %arg5[%c0_9, %c0_10] : memref<16x1xf32, #tpu.memory_space<vmem>>, vector<16x1xf32>
    %cst_11 = arith.constant dense<0.000000e+00> : vector<16x16xf32>
    %13 = tpu.matmul %11, %10, %cst_11 {dimension_numbers = #tpu.dot_dimension_numbers<[1], [0], [0], [1], [0, 0, 1, 1], [], []>} : vector<16x16xf32>, vector<16x16xf32>, vector<16x16xf32> -> vector<16x16xf32>
    %14 = vector.broadcast %12 : vector<16x1xf32> to vector<16x16xf32>
    %15 = arith.addf %13, %14 : vector<16x16xf32>
    %cst_12 = arith.constant 0.000000e+00 : f32
    %16 = vector.broadcast %cst_12 : f32 to vector<16x16xf32>
    %17 = arith.maximumf %15, %16 : vector<16x16xf32>
    %c0_13 = arith.constant 0 : index
    %c0_14 = arith.constant 0 : index
    %18 = vector.load %arg6[%c0_13, %c0_14] : memref<1x16xf32, #tpu.memory_space<vmem>>, vector<1x16xf32>
    %cst_15 = arith.constant dense<0.000000e+00> : vector<1x16xf32>
    %19 = tpu.matmul %18, %17, %cst_15 {dimension_numbers = #tpu.dot_dimension_numbers<[1], [0], [0], [1], [0, 0, 1, 1], [], []>} : vector<1x16xf32>, vector<16x16xf32>, vector<1x16xf32> -> vector<1x16xf32>
    %c0_16 = arith.constant 0 : index
    %c0_17 = arith.constant 0 : index
    %20 = vector.load %arg7[%c0_16, %c0_17] : memref<1x1xf32, #tpu.memory_space<vmem>>, vector<1x1xf32>
    %21 = vector.broadcast %20 : vector<1x1xf32> to vector<1x16xf32>
    %22 = arith.addf %19, %21 : vector<1x16xf32>
    %c0_18 = arith.constant 0 : index
    %c0_19 = arith.constant 0 : index
    %23 = vector.load %arg9[%c0_18, %c0_19] : memref<1x16xf32, #tpu.memory_space<vmem>>, vector<1x16xf32>
    tpu.vector_store %arg9[%c0_18, %c0_19], %22 {strides = array<i32>} : memref<1x16xf32, #tpu.memory_space<vmem>>, vector<1x16xf32>,
    %c0_20 = arith.constant 0 : index
    %c0_21 = arith.constant 0 : index
    %24 = vector.load %arg8[%c0_20, %c0_21] : memref<2x16xf32, #tpu.memory_space<vmem>>, vector<2x16xf32>
    %cst_22 = arith.constant 5.000000e-01 : f32
    %25 = vector.broadcast %cst_22 : f32 to vector<2x16xf32>
    %26 = arith.cmpf ogt, %24, %25 : vector<2x16xf32>
    %cst_23 = arith.constant -1.000000e+30 : f32
    %27 = vector.shape_cast %22 : vector<1x16xf32> to vector<1x16xf32>
    %28 = vector.broadcast %27 : vector<1x16xf32> to vector<2x16xf32>
    %29 = vector.broadcast %cst_23 : f32 to vector<2x16xf32>
    %30 = arith.select %26, %28, %29 : vector<2x16xi1>, vector<2x16xf32>
    %cst_24 = arith.constant dense<0xFF800000> : vector<2xf32>
    %31 = vector.multi_reduction <maximumf>, %30, %cst_24 [1] : vector<2x16xf32> to vector<2xf32>
    %32 = vector.shape_cast %31 : vector<2xf32> to vector<2x1xf32>
    %c0_25 = arith.constant 0 : index
    %c0_26 = arith.constant 0 : index
    %33 = vector.load %arg10[%c0_25, %c0_26] : memref<2x1xf32, #tpu.memory_space<vmem>>, vector<2x1xf32>
    %34 = arith.maximumf %33, %32 : vector<2x1xf32>
    %35 = vector.broadcast %22 : vector<1x16xf32> to vector<2x16xf32>
    %36 = vector.broadcast %34 : vector<2x1xf32> to vector<2x16xf32>
    %37 = arith.subf %35, %36 : vector<2x16xf32>
    %38 = math.exp %37 : vector<2x16xf32>
    %cst_27 = arith.constant 0.000000e+00 : f32
    %39 = vector.broadcast %cst_27 : f32 to vector<2x16xf32>
    %40 = arith.select %26, %38, %39 : vector<2x16xi1>, vector<2x16xf32>
    %cst_28 = arith.constant dense<0.000000e+00> : vector<2xf32>
    %41 = vector.multi_reduction <add>, %40, %cst_28 [1] : vector<2x16xf32> to vector<2xf32>
    %42 = vector.shape_cast %41 : vector<2xf32> to vector<2x1xf32>
    %c0_29 = arith.constant 0 : index
    %c0_30 = arith.constant 0 : index
    %43 = vector.load %arg11[%c0_29, %c0_30] : memref<2x1xf32, #tpu.memory_space<vmem>>, vector<2x1xf32>
    %44 = arith.subf %33, %34 : vector<2x1xf32>
    %45 = math.exp %44 : vector<2x1xf32>
    %46 = arith.mulf %43, %45 : vector<2x1xf32>
    %47 = arith.addf %46, %42 : vector<2x1xf32>
    %c0_31 = arith.constant 0 : index
    %c0_32 = arith.constant 0 : index
    %48 = vector.load %arg11[%c0_31, %c0_32] : memref<2x1xf32, #tpu.memory_space<vmem>>, vector<2x1xf32>
    tpu.vector_store %arg11[%c0_31, %c0_32], %47 {strides = array<i32>} : memref<2x1xf32, #tpu.memory_space<vmem>>, vector<2x1xf32>,
    %c0_33 = arith.constant 0 : index
    %c0_34 = arith.constant 0 : index
    %49 = vector.load %arg10[%c0_33, %c0_34] : memref<2x1xf32, #tpu.memory_space<vmem>>, vector<2x1xf32>
    tpu.vector_store %arg10[%c0_33, %c0_34], %34 {strides = array<i32>} : memref<2x1xf32, #tpu.memory_space<vmem>>, vector<2x1xf32>,
    return
  }
  func.func @transform_0(%arg0: i32) -> (i32, i32) {
    %c0_i32 = arith.constant 0 : i32
    %c0_i32_0 = arith.constant 0 : i32
    return %c0_i32, %arg0 : i32, i32
  }
  func.func @transform_1(%arg0: i32) -> (i32, i32) {
    %c0_i32 = arith.constant 0 : i32
    %c0_i32_0 = arith.constant 0 : i32
    %c0_i32_1 = arith.constant 0 : i32
    return %c0_i32, %c0_i32_0 : i32, i32
  }
  func.func @transform_2(%arg0: i32) -> (i32, i32) {
    %c0_i32 = arith.constant 0 : i32
    %c0_i32_0 = arith.constant 0 : i32
    %c0_i32_1 = arith.constant 0 : i32
    return %c0_i32, %c0_i32_0 : i32, i32
  }
  func.func @transform_3(%arg0: i32) -> (i32, i32) {
    %c0_i32 = arith.constant 0 : i32
    %c0_i32_0 = arith.constant 0 : i32
    %c0_i32_1 = arith.constant 0 : i32
    return %c0_i32, %c0_i32_0 : i32, i32
  }
  func.func @transform_4(%arg0: i32) -> (i32, i32) {
    %c0_i32 = arith.constant 0 : i32
    %c0_i32_0 = arith.constant 0 : i32
    %c0_i32_1 = arith.constant 0 : i32
    return %c0_i32, %c0_i32_0 : i32, i32
  }
  func.func @transform_5(%arg0: i32) -> (i32, i32) {
    %c0_i32 = arith.constant 0 : i32
    %c0_i32_0 = arith.constant 0 : i32
    %c0_i32_1 = arith.constant 0 : i32
    return %c0_i32, %c0_i32_0 : i32, i32
  }
  func.func @transform_6(%arg0: i32) -> (i32, i32) {
    %c0_i32 = arith.constant 0 : i32
    %c0_i32_0 = arith.constant 0 : i32
    %c0_i32_1 = arith.constant 0 : i32
    return %c0_i32, %c0_i32_0 : i32, i32
  }
  func.func @transform_7(%arg0: i32) -> (i32, i32) {
    %c0_i32 = arith.constant 0 : i32
    %c0_i32_0 = arith.constant 0 : i32
    return %c0_i32, %arg0 : i32, i32
  }
  func.func @transform_8(%arg0: i32) -> (i32, i32) {
    %c0_i32 = arith.constant 0 : i32
    %c0_i32_0 = arith.constant 0 : i32
    return %c0_i32, %arg0 : i32, i32
  }
  func.func @transform_9(%arg0: i32) -> (i32, i32) {
    %c0_i32 = arith.constant 0 : i32
    %c0_i32_0 = arith.constant 0 : i32
    %c0_i32_1 = arith.constant 0 : i32
    return %c0_i32, %c0_i32_0 : i32, i32
  }
  func.func @transform_10(%arg0: i32) -> (i32, i32) {
    %c0_i32 = arith.constant 0 : i32
    %c0_i32_0 = arith.constant 0 : i32
    %c0_i32_1 = arith.constant 0 : i32
    return %c0_i32, %c0_i32_0 : i32, i32
  }
}

module attributes {stable_mosaic.version = 11 : i64} {
  func.func @_expl_norm_kernel(%arg0: i32, %arg1: memref<1x16xf32, #tpu.memory_space<vmem>>, %arg2: memref<2x16xf32, #tpu.memory_space<vmem>>, %arg3: memref<1x2xf32, #tpu.memory_space<vmem>>, %arg4: memref<1x2xf32, #tpu.memory_space<vmem>>, %arg5: memref<1x16xf32, #tpu.memory_space<vmem>>) attributes {dimension_semantics = [#tpu.dimension_semantics<parallel>], iteration_bounds = array<i64: 1>, scalar_prefetch = 0 : i64, scratch_operands = 0 : i64, tpu.core_type = #tpu.core_type<tc>, window_params = [{transform_indices = @transform_0, window_bounds = array<i64: 1, 16>}, {transform_indices = @transform_1, window_bounds = array<i64: 2, 16>}, {pipeline_mode = #tpu.pipeline_mode<synchronous>, transform_indices = @transform_2, window_bounds = array<i64: 1, 2>}, {pipeline_mode = #tpu.pipeline_mode<synchronous>, transform_indices = @transform_3, window_bounds = array<i64: 1, 2>}, {transform_indices = @transform_4, window_bounds = array<i64: 1, 16>}]} {
    %c0 = arith.constant 0 : index
    %c0_0 = arith.constant 0 : index
    %0 = vector.load %arg2[%c0, %c0_0] : memref<2x16xf32, #tpu.memory_space<vmem>>, vector<2x16xf32>
    %c0_1 = arith.constant 0 : index
    %c0_2 = arith.constant 0 : index
    %1 = vector.load %arg3[%c0_1, %c0_2] : memref<1x2xf32, #tpu.memory_space<vmem>>, vector<1x2xf32>
    %cst = arith.constant dense<0.000000e+00> : vector<1x16xf32>
    %2 = tpu.matmul %1, %0, %cst {dimension_numbers = #tpu.dot_dimension_numbers<[1], [0], [0], [1], [0, 0, 1, 1], [], []>} : vector<1x2xf32>, vector<2x16xf32>, vector<1x16xf32> -> vector<1x16xf32>
    %c0_3 = arith.constant 0 : index
    %c0_4 = arith.constant 0 : index
    %3 = vector.load %arg4[%c0_3, %c0_4] : memref<1x2xf32, #tpu.memory_space<vmem>>, vector<1x2xf32>
    %cst_5 = arith.constant dense<0.000000e+00> : vector<1x16xf32>
    %4 = tpu.matmul %3, %0, %cst_5 {dimension_numbers = #tpu.dot_dimension_numbers<[1], [0], [0], [1], [0, 0, 1, 1], [], []>} : vector<1x2xf32>, vector<2x16xf32>, vector<1x16xf32> -> vector<1x16xf32>
    %c0_6 = arith.constant 0 : index
    %c0_7 = arith.constant 0 : index
    %5 = vector.load %arg1[%c0_6, %c0_7] : memref<1x16xf32, #tpu.memory_space<vmem>>, vector<1x16xf32>
    %6 = arith.subf %5, %2 : vector<1x16xf32>
    %7 = math.exp %6 : vector<1x16xf32>
    %8 = arith.divf %7, %4 : vector<1x16xf32>
    %c0_8 = arith.constant 0 : index
    %c0_9 = arith.constant 0 : index
    %9 = vector.load %arg5[%c0_8, %c0_9] : memref<1x16xf32, #tpu.memory_space<vmem>>, vector<1x16xf32>
    tpu.vector_store %arg5[%c0_8, %c0_9], %8 {strides = array<i32>} : memref<1x16xf32, #tpu.memory_space<vmem>>, vector<1x16xf32>,
    return
  }
  func.func @transform_0(%arg0: i32) -> (i32, i32) {
    %c0_i32 = arith.constant 0 : i32
    %c0_i32_0 = arith.constant 0 : i32
    return %c0_i32, %arg0 : i32, i32
  }
  func.func @transform_1(%arg0: i32) -> (i32, i32) {
    %c0_i32 = arith.constant 0 : i32
    %c0_i32_0 = arith.constant 0 : i32
    return %c0_i32, %arg0 : i32, i32
  }
  func.func @transform_2(%arg0: i32) -> (i32, i32) {
    %c0_i32 = arith.constant 0 : i32
    %c0_i32_0 = arith.constant 0 : i32
    %c0_i32_1 = arith.constant 0 : i32
    return %c0_i32, %c0_i32_0 : i32, i32
  }
  func.func @transform_3(%arg0: i32) -> (i32, i32) {
    %c0_i32 = arith.constant 0 : i32
    %c0_i32_0 = arith.constant 0 : i32
    %c0_i32_1 = arith.constant 0 : i32
    return %c0_i32, %c0_i32_0 : i32, i32
  }
  func.func @transform_4(%arg0: i32) -> (i32, i32) {
    %c0_i32 = arith.constant 0 : i32
    %c0_i32_0 = arith.constant 0 : i32
    return %c0_i32, %arg0 : i32, i32
  }
}

module attributes {stable_mosaic.version = 11 : i64} {
  func.func @_hyper_msg_kernel(%arg0: i32, %arg1: memref<16x32xbf16, #tpu.memory_space<vmem>>, %arg2: memref<32x4xbf16, #tpu.memory_space<vmem>>, %arg3: memref<4x32xf32, #tpu.memory_space<vmem>>, %arg4: memref<16x1xf32, #tpu.memory_space<vmem>>, %arg5: memref<16x32xbf16, #tpu.memory_space<vmem>>) attributes {dimension_semantics = [#tpu.dimension_semantics<parallel>], iteration_bounds = array<i64: 1>, scalar_prefetch = 0 : i64, scratch_operands = 0 : i64, tpu.core_type = #tpu.core_type<tc>, window_params = [{transform_indices = @transform_0, window_bounds = array<i64: 16, 32>}, {pipeline_mode = #tpu.pipeline_mode<synchronous>, transform_indices = @transform_1, window_bounds = array<i64: 32, 4>}, {pipeline_mode = #tpu.pipeline_mode<synchronous>, transform_indices = @transform_2, window_bounds = array<i64: 4, 32>}, {transform_indices = @transform_3, window_bounds = array<i64: 16, 1>}, {transform_indices = @transform_4, window_bounds = array<i64: 16, 32>}]} {
    %c0 = arith.constant 0 : index
    %c0_0 = arith.constant 0 : index
    %0 = vector.load %arg1[%c0, %c0_0] : memref<16x32xbf16, #tpu.memory_space<vmem>>, vector<16x32xbf16>
    %c0_1 = arith.constant 0 : index
    %c0_2 = arith.constant 0 : index
    %1 = vector.load %arg2[%c0_1, %c0_2] : memref<32x4xbf16, #tpu.memory_space<vmem>>, vector<32x4xbf16>
    %cst = arith.constant dense<0.000000e+00> : vector<16x4xf32>
    %2 = tpu.matmul %0, %1, %cst {dimension_numbers = #tpu.dot_dimension_numbers<[1], [0], [0], [1], [0, 0, 1, 1], [], []>} : vector<16x32xbf16>, vector<32x4xbf16>, vector<16x4xf32> -> vector<16x4xf32>
    %c0_3 = arith.constant 0 : index
    %c0_4 = arith.constant 0 : index
    %3 = vector.load %arg3[%c0_3, %c0_4] : memref<4x32xf32, #tpu.memory_space<vmem>>, vector<4x32xf32>
    %cst_5 = arith.constant dense<0.000000e+00> : vector<16x32xf32>
    %4 = tpu.matmul %2, %3, %cst_5 {dimension_numbers = #tpu.dot_dimension_numbers<[1], [0], [0], [1], [0, 0, 1, 1], [], []>} : vector<16x4xf32>, vector<4x32xf32>, vector<16x32xf32> -> vector<16x32xf32>
    %c0_6 = arith.constant 0 : index
    %c0_7 = arith.constant 0 : index
    %5 = vector.load %arg4[%c0_6, %c0_7] : memref<16x1xf32, #tpu.memory_space<vmem>>, vector<16x1xf32>
    %6 = vector.broadcast %5 : vector<16x1xf32> to vector<16x32xf32>
    %7 = arith.mulf %4, %6 : vector<16x32xf32>
    %8 = arith.truncf %7 : vector<16x32xf32> to vector<16x32xbf16>
    %c0_8 = arith.constant 0 : index
    %c0_9 = arith.constant 0 : index
    %9 = vector.load %arg5[%c0_8, %c0_9] : memref<16x32xbf16, #tpu.memory_space<vmem>>, vector<16x32xbf16>
    tpu.vector_store %arg5[%c0_8, %c0_9], %8 {strides = array<i32>} : memref<16x32xbf16, #tpu.memory_space<vmem>>, vector<16x32xbf16>,
    return
  }
  func.func @transform_0(%arg0: i32) -> (i32, i32) {
    %c0_i32 = arith.constant 0 : i32
    %c0_i32_0 = arith.constant 0 : i32
    return %arg0, %c0_i32 : i32, i32
  }
  func.func @transform_1(%arg0: i32) -> (i32, i32) {
    %c0_i32 = arith.constant 0 : i32
    %c0_i32_0 = arith.constant 0 : i32
    %c0_i32_1 = arith.constant 0 : i32
    return %c0_i32, %c0_i32_0 : i32, i32
  }
  func.func @transform_2(%arg0: i32) -> (i32, i32) {
    %c0_i32 = arith.constant 0 : i32
    %c0_i32_0 = arith.constant 0 : i32
    %c0_i32_1 = arith.constant 0 : i32
    return %c0_i32, %c0_i32_0 : i32, i32
  }
  func.func @transform_3(%arg0: i32) -> (i32, i32) {
    %c0_i32 = arith.constant 0 : i32
    %c0_i32_0 = arith.constant 0 : i32
    return %arg0, %c0_i32 : i32, i32
  }
  func.func @transform_4(%arg0: i32) -> (i32, i32) {
    %c0_i32 = arith.constant 0 : i32
    %c0_i32_0 = arith.constant 0 : i32
    return %arg0, %c0_i32 : i32, i32
  }
}

module attributes {stable_mosaic.version = 11 : i64} {
  func.func @_hyper_msg_kernel(%arg0: i32, %arg1: memref<16x32xbf16, #tpu.memory_space<vmem>>, %arg2: memref<32x32xbf16, #tpu.memory_space<vmem>>, %arg3: memref<32x32xf32, #tpu.memory_space<vmem>>, %arg4: memref<16x1xf32, #tpu.memory_space<vmem>>, %arg5: memref<16x32xbf16, #tpu.memory_space<vmem>>) attributes {dimension_semantics = [#tpu.dimension_semantics<parallel>], iteration_bounds = array<i64: 1>, scalar_prefetch = 0 : i64, scratch_operands = 0 : i64, tpu.core_type = #tpu.core_type<tc>, window_params = [{transform_indices = @transform_0, window_bounds = array<i64: 16, 32>}, {pipeline_mode = #tpu.pipeline_mode<synchronous>, transform_indices = @transform_1, window_bounds = array<i64: 32, 32>}, {pipeline_mode = #tpu.pipeline_mode<synchronous>, transform_indices = @transform_2, window_bounds = array<i64: 32, 32>}, {transform_indices = @transform_3, window_bounds = array<i64: 16, 1>}, {transform_indices = @transform_4, window_bounds = array<i64: 16, 32>}]} {
    %c0 = arith.constant 0 : index
    %c0_0 = arith.constant 0 : index
    %0 = vector.load %arg1[%c0, %c0_0] : memref<16x32xbf16, #tpu.memory_space<vmem>>, vector<16x32xbf16>
    %c0_1 = arith.constant 0 : index
    %c0_2 = arith.constant 0 : index
    %1 = vector.load %arg2[%c0_1, %c0_2] : memref<32x32xbf16, #tpu.memory_space<vmem>>, vector<32x32xbf16>
    %cst = arith.constant dense<0.000000e+00> : vector<16x32xf32>
    %2 = tpu.matmul %0, %1, %cst {dimension_numbers = #tpu.dot_dimension_numbers<[1], [0], [0], [1], [0, 0, 1, 1], [], []>} : vector<16x32xbf16>, vector<32x32xbf16>, vector<16x32xf32> -> vector<16x32xf32>
    %c0_3 = arith.constant 0 : index
    %c0_4 = arith.constant 0 : index
    %3 = vector.load %arg3[%c0_3, %c0_4] : memref<32x32xf32, #tpu.memory_space<vmem>>, vector<32x32xf32>
    %cst_5 = arith.constant dense<0.000000e+00> : vector<16x32xf32>
    %4 = tpu.matmul %2, %3, %cst_5 {dimension_numbers = #tpu.dot_dimension_numbers<[1], [0], [0], [1], [0, 0, 1, 1], [], []>} : vector<16x32xf32>, vector<32x32xf32>, vector<16x32xf32> -> vector<16x32xf32>
    %c0_6 = arith.constant 0 : index
    %c0_7 = arith.constant 0 : index
    %5 = vector.load %arg4[%c0_6, %c0_7] : memref<16x1xf32, #tpu.memory_space<vmem>>, vector<16x1xf32>
    %6 = vector.broadcast %5 : vector<16x1xf32> to vector<16x32xf32>
    %7 = arith.mulf %4, %6 : vector<16x32xf32>
    %8 = arith.truncf %7 : vector<16x32xf32> to vector<16x32xbf16>
    %c0_8 = arith.constant 0 : index
    %c0_9 = arith.constant 0 : index
    %9 = vector.load %arg5[%c0_8, %c0_9] : memref<16x32xbf16, #tpu.memory_space<vmem>>, vector<16x32xbf16>
    tpu.vector_store %arg5[%c0_8, %c0_9], %8 {strides = array<i32>} : memref<16x32xbf16, #tpu.memory_space<vmem>>, vector<16x32xbf16>,
    return
  }
  func.func @transform_0(%arg0: i32) -> (i32, i32) {
    %c0_i32 = arith.constant 0 : i32
    %c0_i32_0 = arith.constant 0 : i32
    return %arg0, %c0_i32 : i32, i32
  }
  func.func @transform_1(%arg0: i32) -> (i32, i32) {
    %c0_i32 = arith.constant 0 : i32
    %c0_i32_0 = arith.constant 0 : i32
    %c0_i32_1 = arith.constant 0 : i32
    return %c0_i32, %c0_i32_0 : i32, i32
  }
  func.func @transform_2(%arg0: i32) -> (i32, i32) {
    %c0_i32 = arith.constant 0 : i32
    %c0_i32_0 = arith.constant 0 : i32
    %c0_i32_1 = arith.constant 0 : i32
    return %c0_i32, %c0_i32_0 : i32, i32
  }
  func.func @transform_3(%arg0: i32) -> (i32, i32) {
    %c0_i32 = arith.constant 0 : i32
    %c0_i32_0 = arith.constant 0 : i32
    return %arg0, %c0_i32 : i32, i32
  }
  func.func @transform_4(%arg0: i32) -> (i32, i32) {
    %c0_i32 = arith.constant 0 : i32
    %c0_i32_0 = arith.constant 0 : i32
    return %arg0, %c0_i32 : i32, i32
  }
}

module attributes {stable_mosaic.version = 11 : i64} {
  func.func @_hyper_out_pool_kernel(%arg0: i32, %arg1: i32, %arg2: memref<32x16xbf16, #tpu.memory_space<vmem>>, %arg3: memref<16x32xbf16, #tpu.memory_space<vmem>>, %arg4: memref<32x1xf32, #tpu.memory_space<vmem>>, %arg5: memref<1x32xf32, #tpu.memory_space<vmem>>, %arg6: memref<2x32xf32, #tpu.memory_space<vmem>>, %arg7: memref<1x32xf32, #tpu.memory_space<vmem>>, %arg8: memref<32x32xbf16, #tpu.memory_space<vmem>>, %arg9: memref<1x2x32xf32, #tpu.memory_space<vmem>>) attributes {dimension_semantics = [#tpu.dimension_semantics<parallel>, #tpu.dimension_semantics<arbitrary>], iteration_bounds = array<i64: 1, 1>, scalar_prefetch = 0 : i64, scratch_operands = 0 : i64, tpu.core_type = #tpu.core_type<tc>, window_params = [{transform_indices = @transform_0, window_bounds = array<i64: 32, 16>}, {pipeline_mode = #tpu.pipeline_mode<synchronous>, transform_indices = @transform_1, window_bounds = array<i64: 16, 32>}, {transform_indices = @transform_2, window_bounds = array<i64: 32, 1>}, {pipeline_mode = #tpu.pipeline_mode<synchronous>, transform_indices = @transform_3, window_bounds = array<i64: 1, 32>}, {transform_indices = @transform_4, window_bounds = array<i64: 2, 32>}, {transform_indices = @transform_5, window_bounds = array<i64: 1, 32>}, {transform_indices = @transform_6, window_bounds = array<i64: 32, 32>}, {transform_indices = @transform_7, window_bounds = array<i64: 1, 2, 32>}]} {
    %c0 = arith.constant 0 : index
    %c0_0 = arith.constant 0 : index
    %0 = vector.load %arg2[%c0, %c0_0] : memref<32x16xbf16, #tpu.memory_space<vmem>>, vector<32x16xbf16>
    %c0_1 = arith.constant 0 : index
    %c0_2 = arith.constant 0 : index
    %1 = vector.load %arg3[%c0_1, %c0_2] : memref<16x32xbf16, #tpu.memory_space<vmem>>, vector<16x32xbf16>
    %cst = arith.constant dense<0.000000e+00> : vector<32x32xf32>
    %2 = tpu.matmul %0, %1, %cst {dimension_numbers = #tpu.dot_dimension_numbers<[1], [0], [0], [1], [0, 0, 1, 1], [], []>} : vector<32x16xbf16>, vector<16x32xbf16>, vector<32x32xf32> -> vector<32x32xf32>
    %c0_3 = arith.constant 0 : index
    %c0_4 = arith.constant 0 : index
    %3 = vector.load %arg4[%c0_3, %c0_4] : memref<32x1xf32, #tpu.memory_space<vmem>>, vector<32x1xf32>
    %4 = vector.broadcast %3 : vector<32x1xf32> to vector<32x32xf32>
    %5 = arith.mulf %2, %4 : vector<32x32xf32>
    %c0_5 = arith.constant 0 : index
    %c0_6 = arith.constant 0 : index
    %6 = vector.load %arg5[%c0_5, %c0_6] : memref<1x32xf32, #tpu.memory_space<vmem>>, vector<1x32xf32>
    %7 = vector.broadcast %6 : vector<1x32xf32> to vector<32x32xf32>
    %8 = arith.addf %5, %7 : vector<32x32xf32>
    %cst_7 = arith.constant 0.000000e+00 : f32
    %9 = vector.broadcast %cst_7 : f32 to vector<32x32xf32>
    %10 = arith.maximumf %8, %9 : vector<32x32xf32>
    %11 = arith.truncf %10 : vector<32x32xf32> to vector<32x32xbf16>
    %c0_8 = arith.constant 0 : index
    %c0_9 = arith.constant 0 : index
    %12 = vector.load %arg8[%c0_8, %c0_9] : memref<32x32xbf16, #tpu.memory_space<vmem>>, vector<32x32xbf16>
    tpu.vector_store %arg8[%c0_8, %c0_9], %11 {strides = array<i32>} : memref<32x32xbf16, #tpu.memory_space<vmem>>, vector<32x32xbf16>,
    %c0_10 = arith.constant 0 : index
    %c0_11 = arith.constant 0 : index
    %13 = vector.load %arg6[%c0_10, %c0_11] : memref<2x32xf32, #tpu.memory_space<vmem>>, vector<2x32xf32>
    %c0_12 = arith.constant 0 : index
    %c0_13 = arith.constant 0 : index
    %14 = vector.load %arg7[%c0_12, %c0_13] : memref<1x32xf32, #tpu.memory_space<vmem>>, vector<1x32xf32>
    %15 = vector.broadcast %14 : vector<1x32xf32> to vector<2x32xf32>
    %16 = arith.mulf %13, %15 : vector<2x32xf32>
    %cst_14 = arith.constant dense<0.000000e+00> : vector<2x32xf32>
    %17 = tpu.matmul %16, %10, %cst_14 {dimension_numbers = #tpu.dot_dimension_numbers<[1], [0], [0], [1], [0, 0, 1, 1], [], []>} : vector<2x32xf32>, vector<32x32xf32>, vector<2x32xf32> -> vector<2x32xf32>
    %c0_i32 = arith.constant 0 : i32
    %18 = arith.cmpi eq, %arg1, %c0_i32 : i32
    %19 = arith.extui %18 : i1 to i32
    %c0_i32_15 = arith.constant 0 : i32
    %20 = arith.cmpi ne, %19, %c0_i32_15 : i32
    scf.if %20 {
      %cst_22 = arith.constant 0.000000e+00 : f32
      %25 = vector.broadcast %cst_22 : f32 to vector<1x2x32xf32>
      %c0_23 = arith.constant 0 : index
      %c0_24 = arith.constant 0 : index
      %c0_25 = arith.constant 0 : index
      %26 = vector.load %arg9[%c0_23, %c0_24, %c0_25] : memref<1x2x32xf32, #tpu.memory_space<vmem>>, vector<1x2x32xf32>
      tpu.vector_store %arg9[%c0_23, %c0_24, %c0_25], %25 {strides = array<i32>} : memref<1x2x32xf32, #tpu.memory_space<vmem>>, vector<1x2x32xf32>,
    } else {
    }
    %c0_16 = arith.constant 0 : index
    %c0_17 = arith.constant 0 : index
    %c0_18 = arith.constant 0 : index
    %21 = vector.load %arg9[%c0_16, %c0_17, %c0_18] : memref<1x2x32xf32, #tpu.memory_space<vmem>>, vector<1x2x32xf32>
    %22 = vector.shape_cast %17 : vector<2x32xf32> to vector<1x2x32xf32>
    %23 = arith.addf %21, %22 : vector<1x2x32xf32>
    %c0_19 = arith.constant 0 : index
    %c0_20 = arith.constant 0 : index
    %c0_21 = arith.constant 0 : index
    %24 = vector.load %arg9[%c0_19, %c0_20, %c0_21] : memref<1x2x32xf32, #tpu.memory_space<vmem>>, vector<1x2x32xf32>
    tpu.vector_store %arg9[%c0_19, %c0_20, %c0_21], %23 {strides = array<i32>} : memref<1x2x32xf32, #tpu.memory_space<vmem>>, vector<1x2x32xf32>,
    return
  }
  func.func @transform_0(%arg0: i32, %arg1: i32) -> (i32, i32) {
    %c1_i32 = arith.constant 1 : i32
    %0 = arith.muli %arg0, %c1_i32 : i32
    %1 = arith.addi %0, %arg1 : i32
    %c0_i32 = arith.constant 0 : i32
    %c0_i32_0 = arith.constant 0 : i32
    return %1, %c0_i32 : i32, i32
  }
  func.func @transform_1(%arg0: i32, %arg1: i32) -> (i32, i32) {
    %c0_i32 = arith.constant 0 : i32
    %c0_i32_0 = arith.constant 0 : i32
    %c0_i32_1 = arith.constant 0 : i32
    return %c0_i32, %c0_i32_0 : i32, i32
  }
  func.func @transform_2(%arg0: i32, %arg1: i32) -> (i32, i32) {
    %c1_i32 = arith.constant 1 : i32
    %0 = arith.muli %arg0, %c1_i32 : i32
    %1 = arith.addi %0, %arg1 : i32
    %c0_i32 = arith.constant 0 : i32
    %c0_i32_0 = arith.constant 0 : i32
    return %1, %c0_i32 : i32, i32
  }
  func.func @transform_3(%arg0: i32, %arg1: i32) -> (i32, i32) {
    %c0_i32 = arith.constant 0 : i32
    %c0_i32_0 = arith.constant 0 : i32
    %c0_i32_1 = arith.constant 0 : i32
    return %c0_i32, %c0_i32_0 : i32, i32
  }
  func.func @transform_4(%arg0: i32, %arg1: i32) -> (i32, i32) {
    %c1_i32 = arith.constant 1 : i32
    %0 = arith.muli %arg0, %c1_i32 : i32
    %1 = arith.addi %0, %arg1 : i32
    %c0_i32 = arith.constant 0 : i32
    %c0_i32_0 = arith.constant 0 : i32
    return %c0_i32, %1 : i32, i32
  }
  func.func @transform_5(%arg0: i32, %arg1: i32) -> (i32, i32) {
    %c1_i32 = arith.constant 1 : i32
    %0 = arith.muli %arg0, %c1_i32 : i32
    %1 = arith.addi %0, %arg1 : i32
    %c0_i32 = arith.constant 0 : i32
    %c0_i32_0 = arith.constant 0 : i32
    return %c0_i32, %1 : i32, i32
  }
  func.func @transform_6(%arg0: i32, %arg1: i32) -> (i32, i32) {
    %c1_i32 = arith.constant 1 : i32
    %0 = arith.muli %arg0, %c1_i32 : i32
    %1 = arith.addi %0, %arg1 : i32
    %c0_i32 = arith.constant 0 : i32
    %c0_i32_0 = arith.constant 0 : i32
    return %1, %c0_i32 : i32, i32
  }
  func.func @transform_7(%arg0: i32, %arg1: i32) -> (i32, i32, i32) {
    %c0_i32 = arith.constant 0 : i32
    %c0_i32_0 = arith.constant 0 : i32
    %c0_i32_1 = arith.constant 0 : i32
    return %arg0, %c0_i32, %c0_i32_0 : i32, i32, i32
  }
}

module attributes {stable_mosaic.version = 11 : i64} {
  func.func @_hyper_out_pool_kernel(%arg0: i32, %arg1: i32, %arg2: memref<32x16xbf16, #tpu.memory_space<vmem>>, %arg3: memref<16x32xbf16, #tpu.memory_space<vmem>>, %arg4: memref<32x1xf32, #tpu.memory_space<vmem>>, %arg5: memref<1x32xf32, #tpu.memory_space<vmem>>, %arg6: memref<2x32xf32, #tpu.memory_space<vmem>>, %arg7: memref<1x32xf32, #tpu.memory_space<vmem>>, %arg8: memref<32x32xbf16, #tpu.memory_space<vmem>>, %arg9: memref<1x2x32xf32, #tpu.memory_space<vmem>>) attributes {dimension_semantics = [#tpu.dimension_semantics<parallel>, #tpu.dimension_semantics<arbitrary>], iteration_bounds = array<i64: 1, 1>, scalar_prefetch = 0 : i64, scratch_operands = 0 : i64, tpu.core_type = #tpu.core_type<tc>, window_params = [{transform_indices = @transform_0, window_bounds = array<i64: 32, 16>}, {pipeline_mode = #tpu.pipeline_mode<synchronous>, transform_indices = @transform_1, window_bounds = array<i64: 16, 32>}, {transform_indices = @transform_2, window_bounds = array<i64: 32, 1>}, {pipeline_mode = #tpu.pipeline_mode<synchronous>, transform_indices = @transform_3, window_bounds = array<i64: 1, 32>}, {transform_indices = @transform_4, window_bounds = array<i64: 2, 32>}, {transform_indices = @transform_5, window_bounds = array<i64: 1, 32>}, {transform_indices = @transform_6, window_bounds = array<i64: 32, 32>}, {transform_indices = @transform_7, window_bounds = array<i64: 1, 2, 32>}]} {
    %c0 = arith.constant 0 : index
    %c0_0 = arith.constant 0 : index
    %0 = vector.load %arg2[%c0, %c0_0] : memref<32x16xbf16, #tpu.memory_space<vmem>>, vector<32x16xbf16>
    %c0_1 = arith.constant 0 : index
    %c0_2 = arith.constant 0 : index
    %1 = vector.load %arg3[%c0_1, %c0_2] : memref<16x32xbf16, #tpu.memory_space<vmem>>, vector<16x32xbf16>
    %cst = arith.constant dense<0.000000e+00> : vector<32x32xf32>
    %2 = tpu.matmul %0, %1, %cst {dimension_numbers = #tpu.dot_dimension_numbers<[1], [0], [0], [1], [0, 0, 1, 1], [], []>} : vector<32x16xbf16>, vector<16x32xbf16>, vector<32x32xf32> -> vector<32x32xf32>
    %c0_3 = arith.constant 0 : index
    %c0_4 = arith.constant 0 : index
    %3 = vector.load %arg4[%c0_3, %c0_4] : memref<32x1xf32, #tpu.memory_space<vmem>>, vector<32x1xf32>
    %4 = vector.broadcast %3 : vector<32x1xf32> to vector<32x32xf32>
    %5 = arith.mulf %2, %4 : vector<32x32xf32>
    %c0_5 = arith.constant 0 : index
    %c0_6 = arith.constant 0 : index
    %6 = vector.load %arg5[%c0_5, %c0_6] : memref<1x32xf32, #tpu.memory_space<vmem>>, vector<1x32xf32>
    %7 = vector.broadcast %6 : vector<1x32xf32> to vector<32x32xf32>
    %8 = arith.addf %5, %7 : vector<32x32xf32>
    %cst_7 = arith.constant 0.000000e+00 : f32
    %9 = vector.broadcast %cst_7 : f32 to vector<32x32xf32>
    %10 = arith.maximumf %8, %9 : vector<32x32xf32>
    %11 = arith.truncf %10 : vector<32x32xf32> to vector<32x32xbf16>
    %c0_8 = arith.constant 0 : index
    %c0_9 = arith.constant 0 : index
    %12 = vector.load %arg8[%c0_8, %c0_9] : memref<32x32xbf16, #tpu.memory_space<vmem>>, vector<32x32xbf16>
    tpu.vector_store %arg8[%c0_8, %c0_9], %11 {strides = array<i32>} : memref<32x32xbf16, #tpu.memory_space<vmem>>, vector<32x32xbf16>,
    %c0_10 = arith.constant 0 : index
    %c0_11 = arith.constant 0 : index
    %13 = vector.load %arg6[%c0_10, %c0_11] : memref<2x32xf32, #tpu.memory_space<vmem>>, vector<2x32xf32>
    %c0_12 = arith.constant 0 : index
    %c0_13 = arith.constant 0 : index
    %14 = vector.load %arg7[%c0_12, %c0_13] : memref<1x32xf32, #tpu.memory_space<vmem>>, vector<1x32xf32>
    %15 = vector.broadcast %14 : vector<1x32xf32> to vector<2x32xf32>
    %16 = arith.mulf %13, %15 : vector<2x32xf32>
    %cst_14 = arith.constant dense<0.000000e+00> : vector<2x32xf32>
    %17 = tpu.matmul %16, %10, %cst_14 {dimension_numbers = #tpu.dot_dimension_numbers<[1], [0], [0], [1], [0, 0, 1, 1], [], []>} : vector<2x32xf32>, vector<32x32xf32>, vector<2x32xf32> -> vector<2x32xf32>
    %c0_i32 = arith.constant 0 : i32
    %18 = arith.cmpi eq, %arg1, %c0_i32 : i32
    %19 = arith.extui %18 : i1 to i32
    %c0_i32_15 = arith.constant 0 : i32
    %20 = arith.cmpi ne, %19, %c0_i32_15 : i32
    scf.if %20 {
      %cst_22 = arith.constant 0.000000e+00 : f32
      %25 = vector.broadcast %cst_22 : f32 to vector<1x2x32xf32>
      %c0_23 = arith.constant 0 : index
      %c0_24 = arith.constant 0 : index
      %c0_25 = arith.constant 0 : index
      %26 = vector.load %arg9[%c0_23, %c0_24, %c0_25] : memref<1x2x32xf32, #tpu.memory_space<vmem>>, vector<1x2x32xf32>
      tpu.vector_store %arg9[%c0_23, %c0_24, %c0_25], %25 {strides = array<i32>} : memref<1x2x32xf32, #tpu.memory_space<vmem>>, vector<1x2x32xf32>,
    } else {
    }
    %c0_16 = arith.constant 0 : index
    %c0_17 = arith.constant 0 : index
    %c0_18 = arith.constant 0 : index
    %21 = vector.load %arg9[%c0_16, %c0_17, %c0_18] : memref<1x2x32xf32, #tpu.memory_space<vmem>>, vector<1x2x32xf32>
    %22 = vector.shape_cast %17 : vector<2x32xf32> to vector<1x2x32xf32>
    %23 = arith.addf %21, %22 : vector<1x2x32xf32>
    %c0_19 = arith.constant 0 : index
    %c0_20 = arith.constant 0 : index
    %c0_21 = arith.constant 0 : index
    %24 = vector.load %arg9[%c0_19, %c0_20, %c0_21] : memref<1x2x32xf32, #tpu.memory_space<vmem>>, vector<1x2x32xf32>
    tpu.vector_store %arg9[%c0_19, %c0_20, %c0_21], %23 {strides = array<i32>} : memref<1x2x32xf32, #tpu.memory_space<vmem>>, vector<1x2x32xf32>,
    return
  }
  func.func @transform_0(%arg0: i32, %arg1: i32) -> (i32, i32) {
    %c1_i32 = arith.constant 1 : i32
    %0 = arith.muli %arg0, %c1_i32 : i32
    %1 = arith.addi %0, %arg1 : i32
    %c0_i32 = arith.constant 0 : i32
    %c0_i32_0 = arith.constant 0 : i32
    return %1, %c0_i32 : i32, i32
  }
  func.func @transform_1(%arg0: i32, %arg1: i32) -> (i32, i32) {
    %c0_i32 = arith.constant 0 : i32
    %c0_i32_0 = arith.constant 0 : i32
    %c0_i32_1 = arith.constant 0 : i32
    return %c0_i32, %c0_i32_0 : i32, i32
  }
  func.func @transform_2(%arg0: i32, %arg1: i32) -> (i32, i32) {
    %c1_i32 = arith.constant 1 : i32
    %0 = arith.muli %arg0, %c1_i32 : i32
    %1 = arith.addi %0, %arg1 : i32
    %c0_i32 = arith.constant 0 : i32
    %c0_i32_0 = arith.constant 0 : i32
    return %1, %c0_i32 : i32, i32
  }
  func.func @transform_3(%arg0: i32, %arg1: i32) -> (i32, i32) {
    %c0_i32 = arith.constant 0 : i32
    %c0_i32_0 = arith.constant 0 : i32
    %c0_i32_1 = arith.constant 0 : i32
    return %c0_i32, %c0_i32_0 : i32, i32
  }
  func.func @transform_4(%arg0: i32, %arg1: i32) -> (i32, i32) {
    %c1_i32 = arith.constant 1 : i32
    %0 = arith.muli %arg0, %c1_i32 : i32
    %1 = arith.addi %0, %arg1 : i32
    %c0_i32 = arith.constant 0 : i32
    %c0_i32_0 = arith.constant 0 : i32
    return %c0_i32, %1 : i32, i32
  }
  func.func @transform_5(%arg0: i32, %arg1: i32) -> (i32, i32) {
    %c1_i32 = arith.constant 1 : i32
    %0 = arith.muli %arg0, %c1_i32 : i32
    %1 = arith.addi %0, %arg1 : i32
    %c0_i32 = arith.constant 0 : i32
    %c0_i32_0 = arith.constant 0 : i32
    return %c0_i32, %1 : i32, i32
  }
  func.func @transform_6(%arg0: i32, %arg1: i32) -> (i32, i32) {
    %c1_i32 = arith.constant 1 : i32
    %0 = arith.muli %arg0, %c1_i32 : i32
    %1 = arith.addi %0, %arg1 : i32
    %c0_i32 = arith.constant 0 : i32
    %c0_i32_0 = arith.constant 0 : i32
    return %1, %c0_i32 : i32, i32
  }
  func.func @transform_7(%arg0: i32, %arg1: i32) -> (i32, i32, i32) {
    %c0_i32 = arith.constant 0 : i32
    %c0_i32_0 = arith.constant 0 : i32
    %c0_i32_1 = arith.constant 0 : i32
    return %arg0, %c0_i32, %c0_i32_0 : i32, i32, i32
  }
}

module attributes {stable_mosaic.version = 11 : i64} {
  func.func @_proj_head_kernel(%arg0: memref<2x64xf32, #tpu.memory_space<vmem>>, %arg1: memref<64x64xf32, #tpu.memory_space<vmem>>, %arg2: memref<1x64xf32, #tpu.memory_space<vmem>>, %arg3: memref<64x64xf32, #tpu.memory_space<vmem>>, %arg4: memref<1x64xf32, #tpu.memory_space<vmem>>, %arg5: memref<2x64xf32, #tpu.memory_space<vmem>>) attributes {dimension_semantics = [], scalar_prefetch = 0 : i64, scratch_operands = 0 : i64, tpu.core_type = #tpu.core_type<tc>} {
    %c0 = arith.constant 0 : index
    %c0_0 = arith.constant 0 : index
    %0 = vector.load %arg0[%c0, %c0_0] : memref<2x64xf32, #tpu.memory_space<vmem>>, vector<2x64xf32>
    %c0_1 = arith.constant 0 : index
    %c0_2 = arith.constant 0 : index
    %1 = vector.load %arg1[%c0_1, %c0_2] : memref<64x64xf32, #tpu.memory_space<vmem>>, vector<64x64xf32>
    %cst = arith.constant dense<0.000000e+00> : vector<2x64xf32>
    %2 = tpu.matmul %0, %1, %cst {dimension_numbers = #tpu.dot_dimension_numbers<[1], [0], [0], [1], [0, 0, 1, 1], [], []>} : vector<2x64xf32>, vector<64x64xf32>, vector<2x64xf32> -> vector<2x64xf32>
    %c0_3 = arith.constant 0 : index
    %c0_4 = arith.constant 0 : index
    %3 = vector.load %arg2[%c0_3, %c0_4] : memref<1x64xf32, #tpu.memory_space<vmem>>, vector<1x64xf32>
    %4 = vector.broadcast %3 : vector<1x64xf32> to vector<2x64xf32>
    %5 = arith.addf %2, %4 : vector<2x64xf32>
    %cst_5 = arith.constant 0.000000e+00 : f32
    %6 = vector.broadcast %cst_5 : f32 to vector<2x64xf32>
    %7 = arith.maximumf %5, %6 : vector<2x64xf32>
    %c0_6 = arith.constant 0 : index
    %c0_7 = arith.constant 0 : index
    %8 = vector.load %arg3[%c0_6, %c0_7] : memref<64x64xf32, #tpu.memory_space<vmem>>, vector<64x64xf32>
    %cst_8 = arith.constant dense<0.000000e+00> : vector<2x64xf32>
    %9 = tpu.matmul %7, %8, %cst_8 {dimension_numbers = #tpu.dot_dimension_numbers<[1], [0], [0], [1], [0, 0, 1, 1], [], []>} : vector<2x64xf32>, vector<64x64xf32>, vector<2x64xf32> -> vector<2x64xf32>
    %c0_9 = arith.constant 0 : index
    %c0_10 = arith.constant 0 : index
    %10 = vector.load %arg4[%c0_9, %c0_10] : memref<1x64xf32, #tpu.memory_space<vmem>>, vector<1x64xf32>
    %11 = vector.broadcast %10 : vector<1x64xf32> to vector<2x64xf32>
    %12 = arith.addf %9, %11 : vector<2x64xf32>
    %c0_11 = arith.constant 0 : index
    %c0_12 = arith.constant 0 : index
    %13 = vector.load %arg5[%c0_11, %c0_12] : memref<2x64xf32, #tpu.memory_space<vmem>>, vector<2x64xf32>
    tpu.vector_store %arg5[%c0_11, %c0_12], %12 {strides = array<i32>} : memref<2x64xf32, #tpu.memory_space<vmem>>, vector<2x64xf32>,
    return
  }
}

module attributes {stable_mosaic.version = 11 : i64} {
  func.func @_gin_pool_kernel(%arg0: i32, %arg1: i32, %arg2: memref<16x16xbf16, #tpu.memory_space<vmem>>, %arg3: memref<16x8xbf16, #tpu.memory_space<vmem>>, %arg4: memref<8x32xf32, #tpu.memory_space<vmem>>, %arg5: memref<1x32xf32, #tpu.memory_space<vmem>>, %arg6: memref<32x32xf32, #tpu.memory_space<vmem>>, %arg7: memref<1x32xf32, #tpu.memory_space<vmem>>, %arg8: memref<2x16xf32, #tpu.memory_space<vmem>>, %arg9: memref<1x16xf32, #tpu.memory_space<vmem>>, %arg10: memref<16x32xbf16, #tpu.memory_space<vmem>>, %arg11: memref<1x2x32xf32, #tpu.memory_space<vmem>>) attributes {dimension_semantics = [#tpu.dimension_semantics<parallel>, #tpu.dimension_semantics<arbitrary>], iteration_bounds = array<i64: 1, 1>, scalar_prefetch = 0 : i64, scratch_operands = 0 : i64, tpu.core_type = #tpu.core_type<tc>, window_params = [{transform_indices = @transform_0, window_bounds = array<i64: 16, 16>}, {pipeline_mode = #tpu.pipeline_mode<synchronous>, transform_indices = @transform_1, window_bounds = array<i64: 16, 8>}, {pipeline_mode = #tpu.pipeline_mode<synchronous>, transform_indices = @transform_2, window_bounds = array<i64: 8, 32>}, {pipeline_mode = #tpu.pipeline_mode<synchronous>, transform_indices = @transform_3, window_bounds = array<i64: 1, 32>}, {pipeline_mode = #tpu.pipeline_mode<synchronous>, transform_indices = @transform_4, window_bounds = array<i64: 32, 32>}, {pipeline_mode = #tpu.pipeline_mode<synchronous>, transform_indices = @transform_5, window_bounds = array<i64: 1, 32>}, {transform_indices = @transform_6, window_bounds = array<i64: 2, 16>}, {transform_indices = @transform_7, window_bounds = array<i64: 1, 16>}, {transform_indices = @transform_8, window_bounds = array<i64: 16, 32>}, {transform_indices = @transform_9, window_bounds = array<i64: 1, 2, 32>}]} {
    %c1_i32 = arith.constant 1 : i32
    %0 = arith.muli %arg0, %c1_i32 : i32
    %1 = arith.addi %0, %arg1 : i32
    %c16_i32 = arith.constant 16 : i32
    %2 = arith.muli %1, %c16_i32 : i32
    %3 = tpu.assume_multiple %2, 16 : i32
    %c0 = arith.constant 0 : index
    %c0_0 = arith.constant 0 : index
    %4 = vector.load %arg3[%c0, %c0_0] : memref<16x8xbf16, #tpu.memory_space<vmem>>, vector<16x8xbf16>
    %5 = arith.index_cast %3 : i32 to index
    %c0_1 = arith.constant 0 : index
    %6 = vector.load %arg3[%5, %c0_1] : memref<16x8xbf16, #tpu.memory_space<vmem>>, vector<16x8xbf16>
    %7 = arith.extf %6 : vector<16x8xbf16> to vector<16x8xf32>
    %c0_2 = arith.constant 0 : index
    %c0_3 = arith.constant 0 : index
    %8 = vector.load %arg2[%c0_2, %c0_3] : memref<16x16xbf16, #tpu.memory_space<vmem>>, vector<16x16xbf16>
    %cst = arith.constant dense<0.000000e+00> : vector<16x8xf32>
    %9 = tpu.matmul %8, %4, %cst {dimension_numbers = #tpu.dot_dimension_numbers<[1], [0], [0], [1], [0, 0, 1, 1], [], []>} : vector<16x16xbf16>, vector<16x8xbf16>, vector<16x8xf32> -> vector<16x8xf32>
    %10 = arith.addf %7, %9 : vector<16x8xf32>
    %c0_4 = arith.constant 0 : index
    %c0_5 = arith.constant 0 : index
    %11 = vector.load %arg4[%c0_4, %c0_5] : memref<8x32xf32, #tpu.memory_space<vmem>>, vector<8x32xf32>
    %cst_6 = arith.constant dense<0.000000e+00> : vector<16x32xf32>
    %12 = tpu.matmul %10, %11, %cst_6 {dimension_numbers = #tpu.dot_dimension_numbers<[1], [0], [0], [1], [0, 0, 1, 1], [], []>} : vector<16x8xf32>, vector<8x32xf32>, vector<16x32xf32> -> vector<16x32xf32>
    %c0_7 = arith.constant 0 : index
    %c0_8 = arith.constant 0 : index
    %13 = vector.load %arg5[%c0_7, %c0_8] : memref<1x32xf32, #tpu.memory_space<vmem>>, vector<1x32xf32>
    %14 = vector.broadcast %13 : vector<1x32xf32> to vector<16x32xf32>
    %15 = arith.addf %12, %14 : vector<16x32xf32>
    %cst_9 = arith.constant 0.000000e+00 : f32
    %16 = vector.broadcast %cst_9 : f32 to vector<16x32xf32>
    %17 = arith.maximumf %15, %16 : vector<16x32xf32>
    %c0_10 = arith.constant 0 : index
    %c0_11 = arith.constant 0 : index
    %18 = vector.load %arg6[%c0_10, %c0_11] : memref<32x32xf32, #tpu.memory_space<vmem>>, vector<32x32xf32>
    %cst_12 = arith.constant dense<0.000000e+00> : vector<16x32xf32>
    %19 = tpu.matmul %17, %18, %cst_12 {dimension_numbers = #tpu.dot_dimension_numbers<[1], [0], [0], [1], [0, 0, 1, 1], [], []>} : vector<16x32xf32>, vector<32x32xf32>, vector<16x32xf32> -> vector<16x32xf32>
    %c0_13 = arith.constant 0 : index
    %c0_14 = arith.constant 0 : index
    %20 = vector.load %arg7[%c0_13, %c0_14] : memref<1x32xf32, #tpu.memory_space<vmem>>, vector<1x32xf32>
    %21 = vector.broadcast %20 : vector<1x32xf32> to vector<16x32xf32>
    %22 = arith.addf %19, %21 : vector<16x32xf32>
    %cst_15 = arith.constant 0.000000e+00 : f32
    %23 = vector.broadcast %cst_15 : f32 to vector<16x32xf32>
    %24 = arith.maximumf %22, %23 : vector<16x32xf32>
    %25 = arith.truncf %24 : vector<16x32xf32> to vector<16x32xbf16>
    %c0_16 = arith.constant 0 : index
    %c0_17 = arith.constant 0 : index
    %26 = vector.load %arg10[%c0_16, %c0_17] : memref<16x32xbf16, #tpu.memory_space<vmem>>, vector<16x32xbf16>
    tpu.vector_store %arg10[%c0_16, %c0_17], %25 {strides = array<i32>} : memref<16x32xbf16, #tpu.memory_space<vmem>>, vector<16x32xbf16>,
    %c0_18 = arith.constant 0 : index
    %c0_19 = arith.constant 0 : index
    %27 = vector.load %arg8[%c0_18, %c0_19] : memref<2x16xf32, #tpu.memory_space<vmem>>, vector<2x16xf32>
    %c0_20 = arith.constant 0 : index
    %c0_21 = arith.constant 0 : index
    %28 = vector.load %arg9[%c0_20, %c0_21] : memref<1x16xf32, #tpu.memory_space<vmem>>, vector<1x16xf32>
    %29 = vector.broadcast %28 : vector<1x16xf32> to vector<2x16xf32>
    %30 = arith.mulf %27, %29 : vector<2x16xf32>
    %cst_22 = arith.constant dense<0.000000e+00> : vector<2x32xf32>
    %31 = tpu.matmul %30, %24, %cst_22 {dimension_numbers = #tpu.dot_dimension_numbers<[1], [0], [0], [1], [0, 0, 1, 1], [], []>} : vector<2x16xf32>, vector<16x32xf32>, vector<2x32xf32> -> vector<2x32xf32>
    %c0_i32 = arith.constant 0 : i32
    %32 = arith.cmpi eq, %arg1, %c0_i32 : i32
    %33 = arith.extui %32 : i1 to i32
    %c0_i32_23 = arith.constant 0 : i32
    %34 = arith.cmpi ne, %33, %c0_i32_23 : i32
    scf.if %34 {
      %cst_30 = arith.constant 0.000000e+00 : f32
      %39 = vector.broadcast %cst_30 : f32 to vector<1x2x32xf32>
      %c0_31 = arith.constant 0 : index
      %c0_32 = arith.constant 0 : index
      %c0_33 = arith.constant 0 : index
      %40 = vector.load %arg11[%c0_31, %c0_32, %c0_33] : memref<1x2x32xf32, #tpu.memory_space<vmem>>, vector<1x2x32xf32>
      tpu.vector_store %arg11[%c0_31, %c0_32, %c0_33], %39 {strides = array<i32>} : memref<1x2x32xf32, #tpu.memory_space<vmem>>, vector<1x2x32xf32>,
    } else {
    }
    %c0_24 = arith.constant 0 : index
    %c0_25 = arith.constant 0 : index
    %c0_26 = arith.constant 0 : index
    %35 = vector.load %arg11[%c0_24, %c0_25, %c0_26] : memref<1x2x32xf32, #tpu.memory_space<vmem>>, vector<1x2x32xf32>
    %36 = vector.shape_cast %31 : vector<2x32xf32> to vector<1x2x32xf32>
    %37 = arith.addf %35, %36 : vector<1x2x32xf32>
    %c0_27 = arith.constant 0 : index
    %c0_28 = arith.constant 0 : index
    %c0_29 = arith.constant 0 : index
    %38 = vector.load %arg11[%c0_27, %c0_28, %c0_29] : memref<1x2x32xf32, #tpu.memory_space<vmem>>, vector<1x2x32xf32>
    tpu.vector_store %arg11[%c0_27, %c0_28, %c0_29], %37 {strides = array<i32>} : memref<1x2x32xf32, #tpu.memory_space<vmem>>, vector<1x2x32xf32>,
    return
  }
  func.func @transform_0(%arg0: i32, %arg1: i32) -> (i32, i32) {
    %c1_i32 = arith.constant 1 : i32
    %0 = arith.muli %arg0, %c1_i32 : i32
    %1 = arith.addi %0, %arg1 : i32
    %c0_i32 = arith.constant 0 : i32
    %c0_i32_0 = arith.constant 0 : i32
    return %1, %c0_i32 : i32, i32
  }
  func.func @transform_1(%arg0: i32, %arg1: i32) -> (i32, i32) {
    %c0_i32 = arith.constant 0 : i32
    %c0_i32_0 = arith.constant 0 : i32
    %c0_i32_1 = arith.constant 0 : i32
    return %c0_i32, %c0_i32_0 : i32, i32
  }
  func.func @transform_2(%arg0: i32, %arg1: i32) -> (i32, i32) {
    %c0_i32 = arith.constant 0 : i32
    %c0_i32_0 = arith.constant 0 : i32
    %c0_i32_1 = arith.constant 0 : i32
    return %c0_i32, %c0_i32_0 : i32, i32
  }
  func.func @transform_3(%arg0: i32, %arg1: i32) -> (i32, i32) {
    %c0_i32 = arith.constant 0 : i32
    %c0_i32_0 = arith.constant 0 : i32
    %c0_i32_1 = arith.constant 0 : i32
    return %c0_i32, %c0_i32_0 : i32, i32
  }
  func.func @transform_4(%arg0: i32, %arg1: i32) -> (i32, i32) {
    %c0_i32 = arith.constant 0 : i32
    %c0_i32_0 = arith.constant 0 : i32
    %c0_i32_1 = arith.constant 0 : i32
    return %c0_i32, %c0_i32_0 : i32, i32
  }
  func.func @transform_5(%arg0: i32, %arg1: i32) -> (i32, i32) {
    %c0_i32 = arith.constant 0 : i32
    %c0_i32_0 = arith.constant 0 : i32
    %c0_i32_1 = arith.constant 0 : i32
    return %c0_i32, %c0_i32_0 : i32, i32
  }
  func.func @transform_6(%arg0: i32, %arg1: i32) -> (i32, i32) {
    %c1_i32 = arith.constant 1 : i32
    %0 = arith.muli %arg0, %c1_i32 : i32
    %1 = arith.addi %0, %arg1 : i32
    %c0_i32 = arith.constant 0 : i32
    %c0_i32_0 = arith.constant 0 : i32
    return %c0_i32, %1 : i32, i32
  }
  func.func @transform_7(%arg0: i32, %arg1: i32) -> (i32, i32) {
    %c1_i32 = arith.constant 1 : i32
    %0 = arith.muli %arg0, %c1_i32 : i32
    %1 = arith.addi %0, %arg1 : i32
    %c0_i32 = arith.constant 0 : i32
    %c0_i32_0 = arith.constant 0 : i32
    return %c0_i32, %1 : i32, i32
  }
  func.func @transform_8(%arg0: i32, %arg1: i32) -> (i32, i32) {
    %c1_i32 = arith.constant 1 : i32
    %0 = arith.muli %arg0, %c1_i32 : i32
    %1 = arith.addi %0, %arg1 : i32
    %c0_i32 = arith.constant 0 : i32
    %c0_i32_0 = arith.constant 0 : i32
    return %1, %c0_i32 : i32, i32
  }
  func.func @transform_9(%arg0: i32, %arg1: i32) -> (i32, i32, i32) {
    %c0_i32 = arith.constant 0 : i32
    %c0_i32_0 = arith.constant 0 : i32
    %c0_i32_1 = arith.constant 0 : i32
    return %arg0, %c0_i32, %c0_i32_0 : i32, i32, i32
  }
}

module attributes {stable_mosaic.version = 11 : i64} {
  func.func @_gin_pool_kernel(%arg0: i32, %arg1: i32, %arg2: memref<16x16xbf16, #tpu.memory_space<vmem>>, %arg3: memref<16x32xbf16, #tpu.memory_space<vmem>>, %arg4: memref<32x32xf32, #tpu.memory_space<vmem>>, %arg5: memref<1x32xf32, #tpu.memory_space<vmem>>, %arg6: memref<32x32xf32, #tpu.memory_space<vmem>>, %arg7: memref<1x32xf32, #tpu.memory_space<vmem>>, %arg8: memref<2x16xf32, #tpu.memory_space<vmem>>, %arg9: memref<1x16xf32, #tpu.memory_space<vmem>>, %arg10: memref<16x32xbf16, #tpu.memory_space<vmem>>, %arg11: memref<1x2x32xf32, #tpu.memory_space<vmem>>) attributes {dimension_semantics = [#tpu.dimension_semantics<parallel>, #tpu.dimension_semantics<arbitrary>], iteration_bounds = array<i64: 1, 1>, scalar_prefetch = 0 : i64, scratch_operands = 0 : i64, tpu.core_type = #tpu.core_type<tc>, window_params = [{transform_indices = @transform_0, window_bounds = array<i64: 16, 16>}, {pipeline_mode = #tpu.pipeline_mode<synchronous>, transform_indices = @transform_1, window_bounds = array<i64: 16, 32>}, {pipeline_mode = #tpu.pipeline_mode<synchronous>, transform_indices = @transform_2, window_bounds = array<i64: 32, 32>}, {pipeline_mode = #tpu.pipeline_mode<synchronous>, transform_indices = @transform_3, window_bounds = array<i64: 1, 32>}, {pipeline_mode = #tpu.pipeline_mode<synchronous>, transform_indices = @transform_4, window_bounds = array<i64: 32, 32>}, {pipeline_mode = #tpu.pipeline_mode<synchronous>, transform_indices = @transform_5, window_bounds = array<i64: 1, 32>}, {transform_indices = @transform_6, window_bounds = array<i64: 2, 16>}, {transform_indices = @transform_7, window_bounds = array<i64: 1, 16>}, {transform_indices = @transform_8, window_bounds = array<i64: 16, 32>}, {transform_indices = @transform_9, window_bounds = array<i64: 1, 2, 32>}]} {
    %c1_i32 = arith.constant 1 : i32
    %0 = arith.muli %arg0, %c1_i32 : i32
    %1 = arith.addi %0, %arg1 : i32
    %c16_i32 = arith.constant 16 : i32
    %2 = arith.muli %1, %c16_i32 : i32
    %3 = tpu.assume_multiple %2, 16 : i32
    %c0 = arith.constant 0 : index
    %c0_0 = arith.constant 0 : index
    %4 = vector.load %arg3[%c0, %c0_0] : memref<16x32xbf16, #tpu.memory_space<vmem>>, vector<16x32xbf16>
    %5 = arith.index_cast %3 : i32 to index
    %c0_1 = arith.constant 0 : index
    %6 = vector.load %arg3[%5, %c0_1] : memref<16x32xbf16, #tpu.memory_space<vmem>>, vector<16x32xbf16>
    %7 = arith.extf %6 : vector<16x32xbf16> to vector<16x32xf32>
    %c0_2 = arith.constant 0 : index
    %c0_3 = arith.constant 0 : index
    %8 = vector.load %arg2[%c0_2, %c0_3] : memref<16x16xbf16, #tpu.memory_space<vmem>>, vector<16x16xbf16>
    %cst = arith.constant dense<0.000000e+00> : vector<16x32xf32>
    %9 = tpu.matmul %8, %4, %cst {dimension_numbers = #tpu.dot_dimension_numbers<[1], [0], [0], [1], [0, 0, 1, 1], [], []>} : vector<16x16xbf16>, vector<16x32xbf16>, vector<16x32xf32> -> vector<16x32xf32>
    %10 = arith.addf %7, %9 : vector<16x32xf32>
    %c0_4 = arith.constant 0 : index
    %c0_5 = arith.constant 0 : index
    %11 = vector.load %arg4[%c0_4, %c0_5] : memref<32x32xf32, #tpu.memory_space<vmem>>, vector<32x32xf32>
    %cst_6 = arith.constant dense<0.000000e+00> : vector<16x32xf32>
    %12 = tpu.matmul %10, %11, %cst_6 {dimension_numbers = #tpu.dot_dimension_numbers<[1], [0], [0], [1], [0, 0, 1, 1], [], []>} : vector<16x32xf32>, vector<32x32xf32>, vector<16x32xf32> -> vector<16x32xf32>
    %c0_7 = arith.constant 0 : index
    %c0_8 = arith.constant 0 : index
    %13 = vector.load %arg5[%c0_7, %c0_8] : memref<1x32xf32, #tpu.memory_space<vmem>>, vector<1x32xf32>
    %14 = vector.broadcast %13 : vector<1x32xf32> to vector<16x32xf32>
    %15 = arith.addf %12, %14 : vector<16x32xf32>
    %cst_9 = arith.constant 0.000000e+00 : f32
    %16 = vector.broadcast %cst_9 : f32 to vector<16x32xf32>
    %17 = arith.maximumf %15, %16 : vector<16x32xf32>
    %c0_10 = arith.constant 0 : index
    %c0_11 = arith.constant 0 : index
    %18 = vector.load %arg6[%c0_10, %c0_11] : memref<32x32xf32, #tpu.memory_space<vmem>>, vector<32x32xf32>
    %cst_12 = arith.constant dense<0.000000e+00> : vector<16x32xf32>
    %19 = tpu.matmul %17, %18, %cst_12 {dimension_numbers = #tpu.dot_dimension_numbers<[1], [0], [0], [1], [0, 0, 1, 1], [], []>} : vector<16x32xf32>, vector<32x32xf32>, vector<16x32xf32> -> vector<16x32xf32>
    %c0_13 = arith.constant 0 : index
    %c0_14 = arith.constant 0 : index
    %20 = vector.load %arg7[%c0_13, %c0_14] : memref<1x32xf32, #tpu.memory_space<vmem>>, vector<1x32xf32>
    %21 = vector.broadcast %20 : vector<1x32xf32> to vector<16x32xf32>
    %22 = arith.addf %19, %21 : vector<16x32xf32>
    %cst_15 = arith.constant 0.000000e+00 : f32
    %23 = vector.broadcast %cst_15 : f32 to vector<16x32xf32>
    %24 = arith.maximumf %22, %23 : vector<16x32xf32>
    %25 = arith.truncf %24 : vector<16x32xf32> to vector<16x32xbf16>
    %c0_16 = arith.constant 0 : index
    %c0_17 = arith.constant 0 : index
    %26 = vector.load %arg10[%c0_16, %c0_17] : memref<16x32xbf16, #tpu.memory_space<vmem>>, vector<16x32xbf16>
    tpu.vector_store %arg10[%c0_16, %c0_17], %25 {strides = array<i32>} : memref<16x32xbf16, #tpu.memory_space<vmem>>, vector<16x32xbf16>,
    %c0_18 = arith.constant 0 : index
    %c0_19 = arith.constant 0 : index
    %27 = vector.load %arg8[%c0_18, %c0_19] : memref<2x16xf32, #tpu.memory_space<vmem>>, vector<2x16xf32>
    %c0_20 = arith.constant 0 : index
    %c0_21 = arith.constant 0 : index
    %28 = vector.load %arg9[%c0_20, %c0_21] : memref<1x16xf32, #tpu.memory_space<vmem>>, vector<1x16xf32>
    %29 = vector.broadcast %28 : vector<1x16xf32> to vector<2x16xf32>
    %30 = arith.mulf %27, %29 : vector<2x16xf32>
    %cst_22 = arith.constant dense<0.000000e+00> : vector<2x32xf32>
    %31 = tpu.matmul %30, %24, %cst_22 {dimension_numbers = #tpu.dot_dimension_numbers<[1], [0], [0], [1], [0, 0, 1, 1], [], []>} : vector<2x16xf32>, vector<16x32xf32>, vector<2x32xf32> -> vector<2x32xf32>
    %c0_i32 = arith.constant 0 : i32
    %32 = arith.cmpi eq, %arg1, %c0_i32 : i32
    %33 = arith.extui %32 : i1 to i32
    %c0_i32_23 = arith.constant 0 : i32
    %34 = arith.cmpi ne, %33, %c0_i32_23 : i32
    scf.if %34 {
      %cst_30 = arith.constant 0.000000e+00 : f32
      %39 = vector.broadcast %cst_30 : f32 to vector<1x2x32xf32>
      %c0_31 = arith.constant 0 : index
      %c0_32 = arith.constant 0 : index
      %c0_33 = arith.constant 0 : index
      %40 = vector.load %arg11[%c0_31, %c0_32, %c0_33] : memref<1x2x32xf32, #tpu.memory_space<vmem>>, vector<1x2x32xf32>
      tpu.vector_store %arg11[%c0_31, %c0_32, %c0_33], %39 {strides = array<i32>} : memref<1x2x32xf32, #tpu.memory_space<vmem>>, vector<1x2x32xf32>,
    } else {
    }
    %c0_24 = arith.constant 0 : index
    %c0_25 = arith.constant 0 : index
    %c0_26 = arith.constant 0 : index
    %35 = vector.load %arg11[%c0_24, %c0_25, %c0_26] : memref<1x2x32xf32, #tpu.memory_space<vmem>>, vector<1x2x32xf32>
    %36 = vector.shape_cast %31 : vector<2x32xf32> to vector<1x2x32xf32>
    %37 = arith.addf %35, %36 : vector<1x2x32xf32>
    %c0_27 = arith.constant 0 : index
    %c0_28 = arith.constant 0 : index
    %c0_29 = arith.constant 0 : index
    %38 = vector.load %arg11[%c0_27, %c0_28, %c0_29] : memref<1x2x32xf32, #tpu.memory_space<vmem>>, vector<1x2x32xf32>
    tpu.vector_store %arg11[%c0_27, %c0_28, %c0_29], %37 {strides = array<i32>} : memref<1x2x32xf32, #tpu.memory_space<vmem>>, vector<1x2x32xf32>,
    return
  }
  func.func @transform_0(%arg0: i32, %arg1: i32) -> (i32, i32) {
    %c1_i32 = arith.constant 1 : i32
    %0 = arith.muli %arg0, %c1_i32 : i32
    %1 = arith.addi %0, %arg1 : i32
    %c0_i32 = arith.constant 0 : i32
    %c0_i32_0 = arith.constant 0 : i32
    return %1, %c0_i32 : i32, i32
  }
  func.func @transform_1(%arg0: i32, %arg1: i32) -> (i32, i32) {
    %c0_i32 = arith.constant 0 : i32
    %c0_i32_0 = arith.constant 0 : i32
    %c0_i32_1 = arith.constant 0 : i32
    return %c0_i32, %c0_i32_0 : i32, i32
  }
  func.func @transform_2(%arg0: i32, %arg1: i32) -> (i32, i32) {
    %c0_i32 = arith.constant 0 : i32
    %c0_i32_0 = arith.constant 0 : i32
    %c0_i32_1 = arith.constant 0 : i32
    return %c0_i32, %c0_i32_0 : i32, i32
  }
  func.func @transform_3(%arg0: i32, %arg1: i32) -> (i32, i32) {
    %c0_i32 = arith.constant 0 : i32
    %c0_i32_0 = arith.constant 0 : i32
    %c0_i32_1 = arith.constant 0 : i32
    return %c0_i32, %c0_i32_0 : i32, i32
  }
  func.func @transform_4(%arg0: i32, %arg1: i32) -> (i32, i32) {
    %c0_i32 = arith.constant 0 : i32
    %c0_i32_0 = arith.constant 0 : i32
    %c0_i32_1 = arith.constant 0 : i32
    return %c0_i32, %c0_i32_0 : i32, i32
  }
  func.func @transform_5(%arg0: i32, %arg1: i32) -> (i32, i32) {
    %c0_i32 = arith.constant 0 : i32
    %c0_i32_0 = arith.constant 0 : i32
    %c0_i32_1 = arith.constant 0 : i32
    return %c0_i32, %c0_i32_0 : i32, i32
  }
  func.func @transform_6(%arg0: i32, %arg1: i32) -> (i32, i32) {
    %c1_i32 = arith.constant 1 : i32
    %0 = arith.muli %arg0, %c1_i32 : i32
    %1 = arith.addi %0, %arg1 : i32
    %c0_i32 = arith.constant 0 : i32
    %c0_i32_0 = arith.constant 0 : i32
    return %c0_i32, %1 : i32, i32
  }
  func.func @transform_7(%arg0: i32, %arg1: i32) -> (i32, i32) {
    %c1_i32 = arith.constant 1 : i32
    %0 = arith.muli %arg0, %c1_i32 : i32
    %1 = arith.addi %0, %arg1 : i32
    %c0_i32 = arith.constant 0 : i32
    %c0_i32_0 = arith.constant 0 : i32
    return %c0_i32, %1 : i32, i32
  }
  func.func @transform_8(%arg0: i32, %arg1: i32) -> (i32, i32) {
    %c1_i32 = arith.constant 1 : i32
    %0 = arith.muli %arg0, %c1_i32 : i32
    %1 = arith.addi %0, %arg1 : i32
    %c0_i32 = arith.constant 0 : i32
    %c0_i32_0 = arith.constant 0 : i32
    return %1, %c0_i32 : i32, i32
  }
  func.func @transform_9(%arg0: i32, %arg1: i32) -> (i32, i32, i32) {
    %c0_i32 = arith.constant 0 : i32
    %c0_i32_0 = arith.constant 0 : i32
    %c0_i32_1 = arith.constant 0 : i32
    return %arg0, %c0_i32, %c0_i32_0 : i32, i32, i32
  }
}

</mosaic_0001>

<llo_original>
// kernel: signet_forward.11
$region0: #{signet_forward.11}
  #allocation0 [shape = 'u32[]', space=smem, size = 0x4, offset = 0x4, fixed_abs, tag = 'smem constant byte address 0x4 - core index']
  #allocation1 [shape = 'u32[144,128]{1,0:T(1,128)}', space=vmem, size = 0x12000, scoped, tag = 'internal scratch']
  %s0 = inlined_call_operand.vmem [shape: f32[1,16], index: 0, kind: input, shape index: {}]
  %s1 = inlined_call_operand.vmem [shape: f32[2,16], index: 1, kind: input, shape index: {}]
  %s2 = inlined_call_operand.vmem [shape: f32[1,2], index: 2, kind: input, shape index: {}]
  %s3 = inlined_call_operand.vmem [shape: f32[1,2], index: 3, kind: input, shape index: {}]
  %s4 = inlined_call_operand.vmem [shape: f32[1,16], index: 4, kind: output, shape index: {}]
  %s5 = sld [smem:[#allocation0]]
  $region26: #{signet_forward.11} parent=0
    _
  %s7 = ssub.s32 1, %s5
  %s8 = scalar_select 0, %s7, %s5
  // Predicated region
  $region2: #{signet_forward.11} parent=0 // pred_check
    _
  $region3: #{signet_forward.11} parent=0 // pred_check_branch
    %10 = sbr.rel (0) target = $region5
  $region4: #{signet_forward.11} parent=0 // pred_region
    _
  $region5: #{signet_forward.11} parent=0 // pred_fallthru
    _
  // Predicated region
  $region6: #{signet_forward.11} parent=0 // pred_check
    _
  $region7: #{signet_forward.11} parent=0 // pred_check_branch
    %12 = sbr.rel (0) target = $region9
  $region8: #{signet_forward.11} parent=0 // pred_region
    _
  $region9: #{signet_forward.11} parent=0 // pred_fallthru
    _
  // Predicated region
  $region10: #{signet_forward.11} parent=0 // pred_check
    _
  $region11: #{signet_forward.11} parent=0 // pred_check_branch
    %14 = sbr.rel (0) target = $region13
  $region12: #{signet_forward.11} parent=0 // pred_region
    _
  $region13: #{signet_forward.11} parent=0 // pred_fallthru
    _
  // Predicated region
  $region14: #{signet_forward.11} parent=0 // pred_check
    _
  $region15: #{signet_forward.11} parent=0 // pred_check_branch
    %16 = sbr.rel (0) target = $region17
  $region16: #{signet_forward.11} parent=0 // pred_region
    _
  $region17: #{signet_forward.11} parent=0 // pred_fallthru
    _
  %v17 = vld [vmem:[%s1] sm:$0x3]
  %v18 = vld [vmem:[%s2] sm:$0x1]
  %vm19 = vcmask 15360
  %v21 = vsel %vm19, %v18, 0
  %vm23 = vcmask 1041408
  %v25 = vsel %vm23, %v17, 0
  %27 = vmatprep.subr.mxu0 0.0
  %28 = vmatpush1.msra.mxu0 %v25
  %29 = vmatprep.subr.mxu0 0.0
  %30 = vmatpush1.msra.mxu0 0.0
  %31 = vmatprep.subr.mxu0 0.0
  %32 = vmatpush1.msra.mxu0 0.0
  %33 = vmatprep.subr.mxu0 0.0
  %34 = vmatpush1.msra.mxu0 0.0
  %35 = vmatprep.subr.mxu0 0.0
  %36 = vmatpush1.msra.mxu0 0.0
  %37 = vmatprep.subr.mxu0 0.0
  %38 = vmatpush1.msra.mxu0 0.0
  %39 = vmatprep.subr.mxu0 0.0
  %40 = vmatpush1.msra.mxu0 0.0
  %41 = vmatprep.subr.mxu0 0.0
  %42 = vmatpush1.msra.mxu0 0.0
  %43 = vmatprep.subr.mxu0 0.0
  %44 = vmatpush1.msra.mxu0 0.0
  %45 = vmatprep.subr.mxu0 0.0
  %46 = vmatpush1.msra.mxu0 0.0
  %47 = vmatprep.subr.mxu0 0.0
  %48 = vmatpush1.msra.mxu0 0.0
  %49 = vmatprep.subr.mxu0 0.0
  %50 = vmatpush1.msra.mxu0 0.0
  %51 = vmatprep.subr.mxu0 0.0
  %52 = vmatpush1.msra.mxu0 0.0
  %53 = vmatprep.subr.mxu0 0.0
  %54 = vmatpush1.msra.mxu0 0.0
  %55 = vmatprep.subr.mxu0 0.0
  %56 = vmatpush1.msra.mxu0 0.0
  %57 = vmatprep.subr.mxu0 0.0
  %58 = vmatpush1.msra.mxu0 0.0
  %59 = vmatprep.subr.mxu0 0.0
  %60 = vmatpush1.msra.mxu0 0.0
  %61 = vmatprep.subr.mxu0 0.0
  %62 = vmatpush1.msra.mxu0 0.0
  %63 = vmatprep.subr.mxu0 0.0
  %64 = vmatpush1.msra.mxu0 0.0
  %65 = vmatprep.subr.mxu0 0.0
  %66 = vmatpush1.msra.mxu0 0.0
  %67 = vmatprep.subr.mxu0 0.0
  %68 = vmatpush1.msra.mxu0 0.0
  %69 = vmatprep.subr.mxu0 0.0
  %70 = vmatpush1.msra.mxu0 0.0
  %71 = vmatprep.subr.mxu0 0.0
  %72 = vmatpush1.msra.mxu0 0.0
  %73 = vmatprep.subr.mxu0 0.0
  %74 = vmatpush1.msra.mxu0 0.0
  %75 = vmatprep.subr.mxu0 0.0
  %76 = vmatpush1.msra.mxu0 0.0
  %77 = vmatprep.subr.mxu0 0.0
  %78 = vmatpush1.msra.mxu0 0.0
  %79 = vmatprep.subr.mxu0 0.0
  %80 = vmatpush1.msra.mxu0 0.0
  %81 = vmatprep.subr.mxu0 0.0
  %82 = vmatpush1.msra.mxu0 0.0
  %83 = vmatprep.subr.mxu0 0.0
  %84 = vmatpush1.msra.mxu0 0.0
  %85 = vmatprep.subr.mxu0 0.0
  %86 = vmatpush1.msra.mxu0 0.0
  %87 = vmatprep.subr.mxu0 0.0
  %88 = vmatpush1.msra.mxu0 0.0
  %89 = vmatprep.subr.mxu0 0.0
  %90 = vmatpush1.msra.mxu0 0.0
  %91 = vmatprep.mubr.f32.mxu0 0.0
  %92 = vmatmul.mubr.f32.gmra.mrb[0].mxu0 %v21
  %v93 = vpop.f32.mrb[0].mxu0
  %v94 = vadd.f32 0.0, %v93
  %v95 = vpop.f32.mrb[0].mxu0
  %96 = vdwg.mxu0
  %v97 = vld [vmem:[%s3] sm:$0x1]
  %v99 = vsel %vm19, %v97, 0
  %101 = vmatprep.subr.mxu0 0.0
  %102 = vmatpush1.msra.mxu0 %v25
  %103 = vmatprep.subr.mxu0 0.0
  %104 = vmatpush1.msra.mxu0 0.0
  %105 = vmatprep.subr.mxu0 0.0
  %106 = vmatpush1.msra.mxu0 0.0
  %107 = vmatprep.subr.mxu0 0.0
  %108 = vmatpush1.msra.mxu0 0.0
  %109 = vmatprep.subr.mxu0 0.0
  %110 = vmatpush1.msra.mxu0 0.0
  %111 = vmatprep.subr.mxu0 0.0
  %112 = vmatpush1.msra.mxu0 0.0
  %113 = vmatprep.subr.mxu0 0.0
  %114 = vmatpush1.msra.mxu0 0.0
  %115 = vmatprep.subr.mxu0 0.0
  %116 = vmatpush1.msra.mxu0 0.0
  %117 = vmatprep.subr.mxu0 0.0
  %118 = vmatpush1.msra.mxu0 0.0
  %119 = vmatprep.subr.mxu0 0.0
  %120 = vmatpush1.msra.mxu0 0.0
  %121 = vmatprep.subr.mxu0 0.0
  %122 = vmatpush1.msra.mxu0 0.0
  %123 = vmatprep.subr.mxu0 0.0
  %124 = vmatpush1.msra.mxu0 0.0
  %125 = vmatprep.subr.mxu0 0.0
  %126 = vmatpush1.msra.mxu0 0.0
  %127 = vmatprep.subr.mxu0 0.0
  %128 = vmatpush1.msra.mxu0 0.0
  %129 = vmatprep.subr.mxu0 0.0
  %130 = vmatpush1.msra.mxu0 0.0
  %131 = vmatprep.subr.mxu0 0.0
  %132 = vmatpush1.msra.mxu0 0.0
  %133 = vmatprep.subr.mxu0 0.0
  %134 = vmatpush1.msra.mxu0 0.0
  %135 = vmatprep.subr.mxu0 0.0
  %136 = vmatpush1.msra.mxu0 0.0
  %137 = vmatprep.subr.mxu0 0.0
  %138 = vmatpush1.msra.mxu0 0.0
  %139 = vmatprep.subr.mxu0 0.0
  %140 = vmatpush1.msra.mxu0 0.0
  %141 = vmatprep.subr.mxu0 0.0
  %142 = vmatpush1.msra.mxu0 0.0
  %143 = vmatprep.subr.mxu0 0.0
  %144 = vmatpush1.msra.mxu0 0.0
  %145 = vmatprep.subr.mxu0 0.0
  %146 = vmatpush1.msra.mxu0 0.0
  %147 = vmatprep.subr.mxu0 0.0
  %148 = vmatpush1.msra.mxu0 0.0
  %149 = vmatprep.subr.mxu0 0.0
  %150 = vmatpush1.msra.mxu0 0.0
  %151 = vmatprep.subr.mxu0 0.0
  %152 = vmatpush1.msra.mxu0 0.0
  %153 = vmatprep.subr.mxu0 0.0
  %154 = vmatpush1.msra.mxu0 0.0
  %155 = vmatprep.subr.mxu0 0.0
  %156 = vmatpush1.msra.mxu0 0.0
  %157 = vmatprep.subr.mxu0 0.0
  %158 = vmatpush1.msra.mxu0 0.0
  %159 = vmatprep.subr.mxu0 0.0
  %160 = vmatpush1.msra.mxu0 0.0
  %161 = vmatprep.subr.mxu0 0.0
  %162 = vmatpush1.msra.mxu0 0.0
  %163 = vmatprep.subr.mxu0 0.0
  %164 = vmatpush1.msra.mxu0 0.0
  %165 = vmatprep.mubr.f32.mxu0 0.0
  %166 = vmatmul.mubr.f32.gmra.mrb[0].mxu0 %v99
  %v167 = vpop.f32.mrb[0].mxu0
  %v168 = vadd.f32 0.0, %v167
  %v169 = vpop.f32.mrb[0].mxu0
  %170 = vdwg.mxu0
  %v171 = vld [vmem:[%s0] sm:$0x1]
  %v172 = vsub.f32 %v171, %v94
  %v173 = vmul.f32 %v172, 1.442695
  %v174 = vpow.pop %v173
  %v175 = vrcp.pop %v168
  %v176 = vmul.f32 %v174, %v175
  %vm177 = vcmask 122880
  %178 = vst.msk [vmem:[%s4] sm:$0x1] %vm177, %v176
  // Predicated region
  $region18: #{signet_forward.11} parent=0 // pred_check
    _
  $region19: #{signet_forward.11} parent=0 // pred_check_branch
    %180 = sbr.rel (0) target = $region21
  $region20: #{signet_forward.11} parent=0 // pred_region
    _
  $region21: #{signet_forward.11} parent=0 // pred_fallthru
    _
  // Predicated region
  $region22: #{signet_forward.11} parent=0 // pred_check
    _
  $region23: #{signet_forward.11} parent=0 // pred_check_branch
    %182 = sbr.rel (0) target = $region25
  $region24: #{signet_forward.11} parent=0 // pred_region
    _
  $region25: #{signet_forward.11} parent=0 // pred_fallthru
    _

// kernel: signet_forward.10
$region0: #{signet_forward.10}
  #allocation0 [shape = 'u32[]', space=smem, size = 0x4, offset = 0x4, fixed_abs, tag = 'smem constant byte address 0x4 - core index']
  #allocation1 [shape = 'u32[144,128]{1,0:T(1,128)}', space=vmem, size = 0x12000, scoped, tag = 'internal scratch']
  #allocation2 [shape = 'f32[1,1]{1,0:T(1,128)S(1)}', space=vmem, size = 0x200, scoped, tag = 'scoped memory for signet_forward.10']
  %s0 = inlined_call_operand.vmem [shape: f32[8,16], index: 0, kind: input, shape index: {}]
  %s1 = inlined_call_operand.vmem [shape: f32[16,8], index: 1, kind: input, shape index: {}]
  %s2 = inlined_call_operand.vmem [shape: f32[16,1], index: 2, kind: input, shape index: {}]
  %s3 = inlined_call_operand.vmem [shape: f32[16,16], index: 3, kind: input, shape index: {}]
  %s4 = inlined_call_operand.vmem [shape: f32[16,1], index: 4, kind: input, shape index: {}]
  %s5 = inlined_call_operand.vmem [shape: f32[1,16], index: 5, kind: input, shape index: {}]
  %s6 = inlined_call_operand.<no memory space> [shape: f32[1,1], index: 6, kind: input, shape index: {}]
  %s7 = inlined_call_operand.vmem [shape: f32[2,16], index: 7, kind: input, shape index: {}]
  %s8 = inlined_call_operand.vmem [shape: f32[1,16], index: 8, kind: output, shape index: {0}]
  %s9 = inlined_call_operand.vmem [shape: f32[2,1], index: 9, kind: output, shape index: {1}]
  %s10 = inlined_call_operand.vmem [shape: f32[2,1], index: 10, kind: output, shape index: {2}]
  %11 = xla_tuple %s8, %s9, %s10
  %s12 = sld [smem:[#allocation0]]
  $region62: #{signet_forward.10} parent=0
    _
  %s14 = ssub.s32 1, %s12
  %s15 = scalar_select 0, %s14, %s12
  %v16 = vstv %s6
  %17 = vst [vmem:[#allocation2] sm:$0x1] %v16
  // Predicated region
  $region2: #{signet_forward.10} parent=0 // pred_check
    _
  $region3: #{signet_forward.10} parent=0 // pred_check_branch
    %19 = sbr.rel (0) target = $region5
  $region4: #{signet_forward.10} parent=0 // pred_region
    _
  $region5: #{signet_forward.10} parent=0 // pred_fallthru
    _
  // Predicated region
  $region6: #{signet_forward.10} parent=0 // pred_check
    _
  $region7: #{signet_forward.10} parent=0 // pred_check_branch
    %21 = sbr.rel (0) target = $region9
  $region8: #{signet_forward.10} parent=0 // pred_region
    _
  $region9: #{signet_forward.10} parent=0 // pred_fallthru
    _
  // Predicated region
  $region10: #{signet_forward.10} parent=0 // pred_check
    _
  $region11: #{signet_forward.10} parent=0 // pred_check_branch
    %23 = sbr.rel (0) target = $region13
  $region12: #{signet_forward.10} parent=0 // pred_region
    _
  $region13: #{signet_forward.10} parent=0 // pred_fallthru
    _
  // Predicated region
  $region14: #{signet_forward.10} parent=0 // pred_check
    _
  $region15: #{signet_forward.10} parent=0 // pred_check_branch
    %25 = sbr.rel (0) target = $region17
  $region16: #{signet_forward.10} parent=0 // pred_region
    _
  $region17: #{signet_forward.10} parent=0 // pred_fallthru
    _
  // Predicated region
  $region18: #{signet_forward.10} parent=0 // pred_check
    _
  $region19: #{signet_forward.10} parent=0 // pred_check_branch
    %27 = sbr.rel (0) target = $region21
  $region20: #{signet_forward.10} parent=0 // pred_region
    _
  $region21: #{signet_forward.10} parent=0 // pred_fallthru
    _
  // Predicated region
  $region22: #{signet_forward.10} parent=0 // pred_check
    _
  $region23: #{signet_forward.10} parent=0 // pred_check_branch
    %29 = sbr.rel (0) target = $region25
  $region24: #{signet_forward.10} parent=0 // pred_region
    _
  $region25: #{signet_forward.10} parent=0 // pred_fallthru
    _
  // Predicated region
  $region26: #{signet_forward.10} parent=0 // pred_check
    _
  $region27: #{signet_forward.10} parent=0 // pred_check_branch
    %31 = sbr.rel (0) target = $region29
  $region28: #{signet_forward.10} parent=0 // pred_region
    _
  $region29: #{signet_forward.10} parent=0 // pred_fallthru
    _
  // Predicated region
  $region30: #{signet_forward.10} parent=0 // pred_check
    _
  $region31: #{signet_forward.10} parent=0 // pred_check_branch
    %33 = sbr.rel (0) target = $region33
  $region32: #{signet_forward.10} parent=0 // pred_region
    _
  $region33: #{signet_forward.10} parent=0 // pred_fallthru
    _
  %p34 = scmp.eq.s32.totalorder 0, 0
  // Predicated region
  $region34: #{signet_forward.10} parent=0 // pred_check
    %p35 = pneg %p34
  $region35: #{signet_forward.10} parent=0 // pred_check_branch
    %37 = sbr.rel (%p35) target = $region37
  $region36: #{signet_forward.10} parent=0 // pred_region
    %vm38 = vcmask 1024
    %39 = vst.msk [vmem:[%s9] sm:$0x3] %vm38, -1e+30
    %40 = vst.msk [vmem:[%s10] sm:$0x3] %vm38, 0.0
  $region37: #{signet_forward.10} parent=0 // pred_fallthru
    _
  %v41 = vld [vmem:[%s0] sm:$0xff]
  %v42 = vld [vmem:[%s1] sm:$0xff]
  %v43 = vld [vmem:[%s1 + $0x8] sm:$0xff]
  %v44 = vld [vmem:[%s2] sm:$0xff]
  %v45 = vld [vmem:[%s2 + $0x8] sm:$0xff]
  %47 = vset.pattern.permute.xlu0 0
  %48 = vperm.xlu0 %47, %v44
  %v49 = vpop.permute.xlu0 %48
  %52 = vset.pattern.permute.xlu0 0
  %53 = vperm.xlu0 %52, %v45
  %v54 = vpop.permute.xlu0 %53
  %vm56 = vcmask 64512
  %v58 = vsel %vm56, %v42, 0
  %v61 = vsel %vm56, %v43, 0
  %63 = vmatprep.subr.mxu0 0.0
  %64 = vmatpush1.msra.mxu0 %v41
  %65 = vmatprep.subr.mxu0 0.0
  %66 = vmatpush1.msra.mxu0 0.0
  %67 = vmatprep.subr.mxu0 0.0
  %68 = vmatpush1.msra.mxu0 0.0
  %69 = vmatprep.subr.mxu0 0.0
  %70 = vmatpush1.msra.mxu0 0.0
  %71 = vmatprep.subr.mxu0 0.0
  %72 = vmatpush1.msra.mxu0 0.0
  %73 = vmatprep.subr.mxu0 0.0
  %74 = vmatpush1.msra.mxu0 0.0
  %75 = vmatprep.subr.mxu0 0.0
  %76 = vmatpush1.msra.mxu0 0.0
  %77 = vmatprep.subr.mxu0 0.0
  %78 = vmatpush1.msra.mxu0 0.0
  %79 = vmatprep.subr.mxu0 0.0
  %80 = vmatpush1.msra.mxu0 0.0
  %81 = vmatprep.subr.mxu0 0.0
  %82 = vmatpush1.msra.mxu0 0.0
  %83 = vmatprep.subr.mxu0 0.0
  %84 = vmatpush1.msra.mxu0 0.0
  %85 = vmatprep.subr.mxu0 0.0
  %86 = vmatpush1.msra.mxu0 0.0
  %87 = vmatprep.subr.mxu0 0.0
  %88 = vmatpush1.msra.mxu0 0.0
  %89 = vmatprep.subr.mxu0 0.0
  %90 = vmatpush1.msra.mxu0 0.0
  %91 = vmatprep.subr.mxu0 0.0
  %92 = vmatpush1.msra.mxu0 0.0
  %93 = vmatprep.subr.mxu0 0.0
  %94 = vmatpush1.msra.mxu0 0.0
  %95 = vmatprep.subr.mxu0 0.0
  %96 = vmatpush1.msra.mxu0 0.0
  %97 = vmatprep.subr.mxu0 0.0
  %98 = vmatpush1.msra.mxu0 0.0
  %99 = vmatprep.subr.mxu0 0.0
  %100 = vmatpush1.msra.mxu0 0.0
  %101 = vmatprep.subr.mxu0 0.0
  %102 = vmatpush1.msra.mxu0 0.0
  %103 = vmatprep.subr.mxu0 0.0
  %104 = vmatpush1.msra.mxu0 0.0
  %105 = vmatprep.subr.mxu0 0.0
  %106 = vmatpush1.msra.mxu0 0.0
  %107 = vmatprep.subr.mxu0 0.0
  %108 = vmatpush1.msra.mxu0 0.0
  %109 = vmatprep.subr.mxu0 0.0
  %110 = vmatpush1.msra.mxu0 0.0
  %111 = vmatprep.subr.mxu0 0.0
  %112 = vmatpush1.msra.mxu0 0.0
  %113 = vmatprep.subr.mxu0 0.0
  %114 = vmatpush1.msra.mxu0 0.0
  %115 = vmatprep.subr.mxu0 0.0
  %116 = vmatpush1.msra.mxu0 0.0
  %117 = vmatprep.subr.mxu0 0.0
  %118 = vmatpush1.msra.mxu0 0.0
  %119 = vmatprep.subr.mxu0 0.0
  %120 = vmatpush1.msra.mxu0 0.0
  %121 = vmatprep.subr.mxu0 0.0
  %122 = vmatpush1.msra.mxu0 0.0
  %123 = vmatprep.subr.mxu0 0.0
  %124 = vmatpush1.msra.mxu0 0.0
  %125 = vmatprep.subr.mxu0 0.0
  %126 = vmatpush1.msra.mxu0 0.0
  %127 = vmatprep.mubr.f32.mxu0 0.0
  %128 = vmatmul.mubr.f32.gmra.mrb[0].mxu0 %v58
  %v129 = vpop.f32.mrb[0].mxu0
  %v130 = vadd.f32 %v49, %v129
  %v131 = vpop.f32.mrb[0].mxu0
  %132 = vmatprep.mubr.f32.mxu0 0.0
  %133 = vmatmul.mubr.f32.gmra.mrb[0].mxu0 %v61
  %v134 = vpop.f32.mrb[0].mxu0
  %v135 = vadd.f32 %v54, %v134
  %v136 = vpop.f32.mrb[0].mxu0
  %137 = vdwg.mxu0
  %v138 = vmax.f32 %v130, 0.0
  %v139 = vmax.f32 %v135, 0.0
  %v140 = vld [vmem:[%s3] sm:$0xff]
  %v141 = vld [vmem:[%s3 + $0x8] sm:$0xff]
  %v142 = vld [vmem:[%s4] sm:$0xff]
  %v143 = vld [vmem:[%s4 + $0x8] sm:$0xff]
  %145 = vset.pattern.permute.xlu0 0
  %146 = vperm.xlu0 %145, %v142
  %v147 = vpop.permute.xlu0 %146
  %150 = vset.pattern.permute.xlu0 0
  %151 = vperm.xlu0 %150, %v143
  %v152 = vpop.permute.xlu0 %151
  %vm154 = vcmask 130048
  %v156 = vsel %vm154, %v140, 0
  %v159 = vsel %vm154, %v141, 0
  %161 = vmatprep.subr.mxu0 0.0
  %162 = vmatpush1.msra.mxu0 %v138
  %163 = vmatprep.subr.mxu0 0.0
  %164 = vmatpush1.msra.mxu0 %v139
  %165 = vmatprep.subr.mxu0 0.0
  %166 = vmatpush1.msra.mxu0 0.0
  %167 = vmatprep.subr.mxu0 0.0
  %168 = vmatpush1.msra.mxu0 0.0
  %169 = vmatprep.subr.mxu0 0.0
  %170 = vmatpush1.msra.mxu0 0.0
  %171 = vmatprep.subr.mxu0 0.0
  %172 = vmatpush1.msra.mxu0 0.0
  %173 = vmatprep.subr.mxu0 0.0
  %174 = vmatpush1.msra.mxu0 0.0
  %175 = vmatprep.subr.mxu0 0.0
  %176 = vmatpush1.msra.mxu0 0.0
  %177 = vmatprep.subr.mxu0 0.0
  %178 = vmatpush1.msra.mxu0 0.0
  %179 = vmatprep.subr.mxu0 0.0
  %180 = vmatpush1.msra.mxu0 0.0
  %181 = vmatprep.subr.mxu0 0.0
  %182 = vmatpush1.msra.mxu0 0.0
  %183 = vmatprep.subr.mxu0 0.0
  %184 = vmatpush1.msra.mxu0 0.0
  %185 = vmatprep.subr.mxu0 0.0
  %186 = vmatpush1.msra.mxu0 0.0
  %187 = vmatprep.subr.mxu0 0.0
  %188 = vmatpush1.msra.mxu0 0.0
  %189 = vmatprep.subr.mxu0 0.0
  %190 = vmatpush1.msra.mxu0 0.0
  %191 = vmatprep.subr.mxu0 0.0
  %192 = vmatpush1.msra.mxu0 0.0
  %193 = vmatprep.subr.mxu0 0.0
  %194 = vmatpush1.msra.mxu0 0.0
  %195 = vmatprep.subr.mxu0 0.0
  %196 = vmatpush1.msra.mxu0 0.0
  %197 = vmatprep.subr.mxu0 0.0
  %198 = vmatpush1.msra.mxu0 0.0
  %199 = vmatprep.subr.mxu0 0.0
  %200 = vmatpush1.msra.mxu0 0.0
  %201 = vmatprep.subr.mxu0 0.0
  %202 = vmatpush1.msra.mxu0 0.0
  %203 = vmatprep.subr.mxu0 0.0
  %204 = vmatpush1.msra.mxu0 0.0
  %205 = vmatprep.subr.mxu0 0.0
  %206 = vmatpush1.msra.mxu0 0.0
  %207 = vmatprep.subr.mxu0 0.0
  %208 = vmatpush1.msra.mxu0 0.0
  %209 = vmatprep.subr.mxu0 0.0
  %210 = vmatpush1.msra.mxu0 0.0
  %211 = vmatprep.subr.mxu0 0.0
  %212 = vmatpush1.msra.mxu0 0.0
  %213 = vmatprep.subr.mxu0 0.0
  %214 = vmatpush1.msra.mxu0 0.0
  %215 = vmatprep.subr.mxu0 0.0
  %216 = vmatpush1.msra.mxu0 0.0
  %217 = vmatprep.subr.mxu0 0.0
  %218 = vmatpush1.msra.mxu0 0.0
  %219 = vmatprep.subr.mxu0 0.0
  %220 = vmatpush1.msra.mxu0 0.0
  %221 = vmatprep.subr.mxu0 0.0
  %222 = vmatpush1.msra.mxu0 0.0
  %223 = vmatprep.subr.mxu0 0.0
  %224 = vmatpush1.msra.mxu0 0.0
  %225 = vmatprep.mubr.f32.mxu0 0.0
  %226 = vmatmul.mubr.f32.gmra.mrb[0].mxu0 %v156
  %v227 = vpop.f32.mrb[0].mxu0
  %v228 = vadd.f32 %v147, %v227
  %v229 = vpop.f32.mrb[0].mxu0
  %230 = vmatprep.mubr.f32.mxu0 0.0
  %231 = vmatmul.mubr.f32.gmra.mrb[0].mxu0 %v159
  %v232 = vpop.f32.mrb[0].mxu0
  %v233 = vadd.f32 %v152, %v232
  %v234 = vpop.f32.mrb[0].mxu0
  %235 = vdwg.mxu0
  %v236 = vmax.f32 %v228, 0.0
  %v237 = vmax.f32 %v233, 0.0
  %v238 = vld [vmem:[%s5] sm:$0x1]
  %v239 = vld [vmem:[#allocation2] sm:$0x1]
  %241 = vset.pattern.permute.xlu0 0
  %242 = vperm.xlu0 %241, %v239
  %v243 = vpop.permute.xlu0 %242
  %v245 = vlaneseq
  %v246 = vshrl.u32 %v245, 7
  %v247 = vsub.s32 0, %v246
  %v248 = vrot.slane %v243, %v247
  %v250 = vsel %vm154, %v238, 0
  %252 = vmatprep.subr.mxu0 0.0
  %253 = vmatpush1.msra.mxu0 %v236
  %254 = vmatprep.subr.mxu0 0.0
  %255 = vmatpush1.msra.mxu0 %v237
  %256 = vmatprep.subr.mxu0 0.0
  %257 = vmatpush1.msra.mxu0 0.0
  %258 = vmatprep.subr.mxu0 0.0
  %259 = vmatpush1.msra.mxu0 0.0
  %260 = vmatprep.subr.mxu0 0.0
  %261 = vmatpush1.msra.mxu0 0.0
  %262 = vmatprep.subr.mxu0 0.0
  %263 = vmatpush1.msra.mxu0 0.0
  %264 = vmatprep.subr.mxu0 0.0
  %265 = vmatpush1.msra.mxu0 0.0
  %266 = vmatprep.subr.mxu0 0.0
  %267 = vmatpush1.msra.mxu0 0.0
  %268 = vmatprep.subr.mxu0 0.0
  %269 = vmatpush1.msra.mxu0 0.0
  %270 = vmatprep.subr.mxu0 0.0
  %271 = vmatpush1.msra.mxu0 0.0
  %272 = vmatprep.subr.mxu0 0.0
  %273 = vmatpush1.msra.mxu0 0.0
  %274 = vmatprep.subr.mxu0 0.0
  %275 = vmatpush1.msra.mxu0 0.0
  %276 = vmatprep.subr.mxu0 0.0
  %277 = vmatpush1.msra.mxu0 0.0
  %278 = vmatprep.subr.mxu0 0.0
  %279 = vmatpush1.msra.mxu0 0.0
  %280 = vmatprep.subr.mxu0 0.0
  %281 = vmatpush1.msra.mxu0 0.0
  %282 = vmatprep.subr.mxu0 0.0
  %283 = vmatpush1.msra.mxu0 0.0
  %284 = vmatprep.subr.mxu0 0.0
  %285 = vmatpush1.msra.mxu0 0.0
  %286 = vmatprep.subr.mxu0 0.0
  %287 = vmatpush1.msra.mxu0 0.0
  %288 = vmatprep.subr.mxu0 0.0
  %289 = vmatpush1.msra.mxu0 0.0
  %290 = vmatprep.subr.mxu0 0.0
  %291 = vmatpush1.msra.mxu0 0.0
  %292 = vmatprep.subr.mxu0 0.0
  %293 = vmatpush1.msra.mxu0 0.0
  %294 = vmatprep.subr.mxu0 0.0
  %295 = vmatpush1.msra.mxu0 0.0
  %296 = vmatprep.subr.mxu0 0.0
  %297 = vmatpush1.msra.mxu0 0.0
  %298 = vmatprep.subr.mxu0 0.0
  %299 = vmatpush1.msra.mxu0 0.0
  %300 = vmatprep.subr.mxu0 0.0
  %301 = vmatpush1.msra.mxu0 0.0
  %302 = vmatprep.subr.mxu0 0.0
  %303 = vmatpush1.msra.mxu0 0.0
  %304 = vmatprep.subr.mxu0 0.0
  %305 = vmatpush1.msra.mxu0 0.0
  %306 = vmatprep.subr.mxu0 0.0
  %307 = vmatpush1.msra.mxu0 0.0
  %308 = vmatprep.subr.mxu0 0.0
  %309 = vmatpush1.msra.mxu0 0.0
  %310 = vmatprep.subr.mxu0 0.0
  %311 = vmatpush1.msra.mxu0 0.0
  %312 = vmatprep.subr.mxu0 0.0
  %313 = vmatpush1.msra.mxu0 0.0
  %314 = vmatprep.subr.mxu0 0.0
  %315 = vmatpush1.msra.mxu0 0.0
  %316 = vmatprep.mubr.f32.mxu0 0.0
  %317 = vmatmul.mubr.f32.gmra.mrb[0].mxu0 %v250
  %v318 = vpop.f32.mrb[0].mxu0
  %v319 = vadd.f32 %v248, %v318
  %v320 = vpop.f32.mrb[0].mxu0
  %321 = vdwg.mxu0
  %vm322 = vcmask 122880
  %323 = vst.msk [vmem:[%s8] sm:$0x1] %vm322, %v319
  %v324 = vld [vmem:[%s7] sm:$0x3]
  %vm325 = vcmp.gt.f32.partialorder %v324, 0.5
  %v326 = vlaneseq
  %v327 = vshrl.u32 %v326, 7
  %v328 = vsub.s32 0, %v327
  %v329 = vrot.slane %v319, %v328
  %v330 = vsel %vm325, %v329, -1e+30
  %vm331 = vcmask 123904
  %v332 = vsel %vm331, %v330, -inf
  %333 = vmax.xlane.f32.xlu0 %v332
  %v334 = vpop.xlane.xlu0 %333
  %v335 = vld [vmem:[%s9] sm:$0x3]
  %v336 = vmax.f32 %v335, %v334
  %338 = vset.pattern.permute.xlu0 0
  %339 = vperm.xlu0 %338, %v336
  %v340 = vpop.permute.xlu0 %339
  %v342 = vsub.f32 %v329, %v340
  %v343 = vmul.f32 %v342, 1.442695
  %v344 = vpow.pop %v343
  %v345 = vsel %vm325, %v344, 0.0
  %v346 = vsel %vm331, %v345, 0.0
  %347 = vadd.xlane.f32.xlu0 %v346
  %v348 = vpop.xlane.xlu0 %347
  %v349 = vld [vmem:[%s10] sm:$0x3]
  %v350 = vsub.f32 %v335, %v336
  %v351 = vmul.f32 %v350, 1.442695
  %v352 = vpow.pop %v351
  %v353 = vmul.f32 %v349, %v352
  %v354 = vadd.f32 %v353, %v348
  %vm355 = vcmask 1024
  %356 = vst.msk [vmem:[%s10] sm:$0x3] %vm355, %v354
  %357 = vst.msk [vmem:[%s9] sm:$0x3] %vm355, %v336
  // Predicated region
  $region38: #{signet_forward.10} parent=0 // pred_check
    _
  $region39: #{signet_forward.10} parent=0 // pred_check_branch
    %359 = sbr.rel (0) target = $region41
  $region40: #{signet_forward.10} parent=0 // pred_region
    _
  $region41: #{signet_forward.10} parent=0 // pred_fallthru
    _
  // Predicated region
  $region42: #{signet_forward.10} parent=0 // pred_check
    _
  $region43: #{signet_forward.10} parent=0 // pred_check_branch
    %361 = sbr.rel (0) target = $region45
  $region44: #{signet_forward.10} parent=0 // pred_region
    _
  $region45: #{signet_forward.10} parent=0 // pred_fallthru
    _
  // Predicated region
  $region46: #{signet_forward.10} parent=0 // pred_check
    _
  $region47: #{signet_forward.10} parent=0 // pred_check_branch
    %363 = sbr.rel (0) target = $region49
  $region48: #{signet_forward.10} parent=0 // pred_region
    _
  $region49: #{signet_forward.10} parent=0 // pred_fallthru
    _
  // Predicated region
  $region50: #{signet_forward.10} parent=0 // pred_check
    _
  $region51: #{signet_forward.10} parent=0 // pred_check_branch
    %365 = sbr.rel (0) target = $region53
  $region52: #{signet_forward.10} parent=0 // pred_region
    _
  $region53: #{signet_forward.10} parent=0 // pred_fallthru
    _
  // Predicated region
  $region54: #{signet_forward.10} parent=0 // pred_check
    _
  $region55: #{signet_forward.10} parent=0 // pred_check_branch
    %367 = sbr.rel (0) target = $region57
  $region56: #{signet_forward.10} parent=0 // pred_region
    _
  $region57: #{signet_forward.10} parent=0 // pred_fallthru
    _
  // Predicated region
  $region58: #{signet_forward.10} parent=0 // pred_check
    _
  $region59: #{signet_forward.10} parent=0 // pred_check_branch
    %369 = sbr.rel (0) target = $region61
  $region60: #{signet_forward.10} parent=0 // pred_region
    _
  $region61: #{signet_forward.10} parent=0 // pred_fallthru
    _

// kernel: signet_forward.14
$region0: #{signet_forward.14}
  #allocation0 [shape = 'u32[]', space=smem, size = 0x4, offset = 0x4, fixed_abs, tag = 'smem constant byte address 0x4 - core index']
  #allocation1 [shape = 'u32[144,128]{1,0:T(1,128)}', space=vmem, size = 0x12000, scoped, tag = 'internal scratch']
  %s0 = inlined_call_operand.vmem [shape: bf16[16,32], index: 0, kind: input, shape index: {}]
  %s1 = inlined_call_operand.vmem [shape: bf16[32,4], index: 1, kind: input, shape index: {}]
  %s2 = inlined_call_operand.vmem [shape: f32[4,32], index: 2, kind: input, shape index: {}]
  %s3 = inlined_call_operand.vmem [shape: f32[16,1], index: 3, kind: input, shape index: {}]
  %s4 = inlined_call_operand.vmem [shape: bf16[16,32], index: 4, kind: output, shape index: {}]
  %s5 = sld [smem:[#allocation0]]
  $region26: #{signet_forward.14} parent=0
    _
  %s7 = ssub.s32 1, %s5
  %s8 = scalar_select 0, %s7, %s5
  // Predicated region
  $region2: #{signet_forward.14} parent=0 // pred_check
    _
  $region3: #{signet_forward.14} parent=0 // pred_check_branch
    %10 = sbr.rel (0) target = $region5
  $region4: #{signet_forward.14} parent=0 // pred_region
    _
  $region5: #{signet_forward.14} parent=0 // pred_fallthru
    _
  // Predicated region
  $region6: #{signet_forward.14} parent=0 // pred_check
    _
  $region7: #{signet_forward.14} parent=0 // pred_check_branch
    %12 = sbr.rel (0) target = $region9
  $region8: #{signet_forward.14} parent=0 // pred_region
    _
  $region9: #{signet_forward.14} parent=0 // pred_fallthru
    _
  // Predicated region
  $region10: #{signet_forward.14} parent=0 // pred_check
    _
  $region11: #{signet_forward.14} parent=0 // pred_check_branch
    %14 = sbr.rel (0) target = $region13
  $region12: #{signet_forward.14} parent=0 // pred_region
    _
  $region13: #{signet_forward.14} parent=0 // pred_fallthru
    _
  // Predicated region
  $region14: #{signet_forward.14} parent=0 // pred_check
    _
  $region15: #{signet_forward.14} parent=0 // pred_check_branch
    %16 = sbr.rel (0) target = $region17
  $region16: #{signet_forward.14} parent=0 // pred_region
    _
  $region17: #{signet_forward.14} parent=0 // pred_fallthru
    _
  %v18 = vld [vmem:[%s0] sm:$0xf]
  %v19 = vld [vmem:[%s0 + $0x4] sm:$0xf]
  %v20 = vld [vmem:[%s1] sm:$0xf]
  %v21 = vld [vmem:[%s1 + $0x4] sm:$0xf]
  %v22 = vld [vmem:[%s1 + $0x8] sm:$0xf]
  %v23 = vld [vmem:[%s1 + $0xc] sm:$0xf]
  %v26 = vunpack.c.l.b16 %v18
  %v27 = vunpack.c.l.b16 %v19
  %v28 = vpack.c.b16 %v27, %v26
  %v33 = vunpack.c.l.b16 %v20
  %v34 = vunpack.c.l.b16 %v21
  %v35 = vunpack.c.l.b16 %v22
  %v36 = vunpack.c.l.b16 %v23
  %v37 = vpack.c.b16 %v34, %v33
  %v38 = vpack.c.b16 %v36, %v35
  %vm41 = vcmask 261120
  %v43 = vsel %vm41, %v28, 0
  %45 = vmatprep.subr.bf16.mxu0 0
  %46 = vmatpush1.bf16.msra.mxu0 %v37
  %47 = vmatprep.subr.bf16.mxu0 0
  %48 = vmatpush1.bf16.msra.mxu0 %v38
  %49 = vmatprep.subr.bf16.mxu0 0
  %50 = vmatpush1.bf16.msra.mxu0 0
  %51 = vmatprep.subr.bf16.mxu0 0
  %52 = vmatpush1.bf16.msra.mxu0 0
  %53 = vmatprep.subr.bf16.mxu0 0
  %54 = vmatpush1.bf16.msra.mxu0 0
  %55 = vmatprep.subr.bf16.mxu0 0
  %56 = vmatpush1.bf16.msra.mxu0 0
  %57 = vmatprep.subr.bf16.mxu0 0
  %58 = vmatpush1.bf16.msra.mxu0 0
  %59 = vmatprep.subr.bf16.mxu0 0
  %60 = vmatpush1.bf16.msra.mxu0 0
  %61 = vmatprep.subr.bf16.mxu0 0
  %62 = vmatpush1.bf16.msra.mxu0 0
  %63 = vmatprep.subr.bf16.mxu0 0
  %64 = vmatpush1.bf16.msra.mxu0 0
  %65 = vmatprep.subr.bf16.mxu0 0
  %66 = vmatpush1.bf16.msra.mxu0 0
  %67 = vmatprep.subr.bf16.mxu0 0
  %68 = vmatpush1.bf16.msra.mxu0 0
  %69 = vmatprep.subr.bf16.mxu0 0
  %70 = vmatpush1.bf16.msra.mxu0 0
  %71 = vmatprep.subr.bf16.mxu0 0
  %72 = vmatpush1.bf16.msra.mxu0 0
  %73 = vmatprep.subr.bf16.mxu0 0
  %74 = vmatpush1.bf16.msra.mxu0 0
  %75 = vmatprep.subr.bf16.mxu0 0
  %76 = vmatpush1.bf16.msra.mxu0 0
  %77 = vmatprep.mubr.bf16.mxu0 0
  %78 = vmatmul.mubr.bf16.gmra.mrb[0].mxu0 %v43
  %v79 = vpop.f32.mrb[0].mxu0
  %v80 = vadd.f32 0.0, %v79
  %v81 = vpop.f32.mrb[0].mxu0
  %v82 = vpop.f32.mrb[0].mxu0
  %v83 = vadd.f32 0.0, %v82
  %v84 = vpop.f32.mrb[0].mxu0
  %85 = vdwg.mxu0
  %v86 = vld [vmem:[%s2] sm:$0xf]
  %vm87 = vcmask 31744
  %v89 = vsel %vm87, %v80, 0
  %v92 = vsel %vm87, %v83, 0
  %vm94 = vcmask 1043456
  %v96 = vsel %vm94, %v86, 0
  %98 = vmatprep.subr.mxu0 0.0
  %99 = vmatpush1.msra.mxu0 %v96
  %100 = vmatprep.subr.mxu0 0.0
  %101 = vmatpush1.msra.mxu0 0.0
  %102 = vmatprep.subr.mxu0 0.0
  %103 = vmatpush1.msra.mxu0 0.0
  %104 = vmatprep.subr.mxu0 0.0
  %105 = vmatpush1.msra.mxu0 0.0
  %106 = vmatprep.subr.mxu0 0.0
  %107 = vmatpush1.msra.mxu0 0.0
  %108 = vmatprep.subr.mxu0 0.0
  %109 = vmatpush1.msra.mxu0 0.0
  %110 = vmatprep.subr.mxu0 0.0
  %111 = vmatpush1.msra.mxu0 0.0
  %112 = vmatprep.subr.mxu0 0.0
  %113 = vmatpush1.msra.mxu0 0.0
  %114 = vmatprep.subr.mxu0 0.0
  %115 = vmatpush1.msra.mxu0 0.0
  %116 = vmatprep.subr.mxu0 0.0
  %117 = vmatpush1.msra.mxu0 0.0
  %118 = vmatprep.subr.mxu0 0.0
  %119 = vmatpush1.msra.mxu0 0.0
  %120 = vmatprep.subr.mxu0 0.0
  %121 = vmatpush1.msra.mxu0 0.0
  %122 = vmatprep.subr.mxu0 0.0
  %123 = vmatpush1.msra.mxu0 0.0
  %124 = vmatprep.subr.mxu0 0.0
  %125 = vmatpush1.msra.mxu0 0.0
  %126 = vmatprep.subr.mxu0 0.0
  %127 = vmatpush1.msra.mxu0 0.0
  %128 = vmatprep.subr.mxu0 0.0
  %129 = vmatpush1.msra.mxu0 0.0
  %130 = vmatprep.subr.mxu0 0.0
  %131 = vmatpush1.msra.mxu0 0.0
  %132 = vmatprep.subr.mxu0 0.0
  %133 = vmatpush1.msra.mxu0 0.0
  %134 = vmatprep.subr.mxu0 0.0
  %135 = vmatpush1.msra.mxu0 0.0
  %136 = vmatprep.subr.mxu0 0.0
  %137 = vmatpush1.msra.mxu0 0.0
  %138 = vmatprep.subr.mxu0 0.0
  %139 = vmatpush1.msra.mxu0 0.0
  %140 = vmatprep.subr.mxu0 0.0
  %141 = vmatpush1.msra.mxu0 0.0
  %142 = vmatprep.subr.mxu0 0.0
  %143 = vmatpush1.msra.mxu0 0.0
  %144 = vmatprep.subr.mxu0 0.0
  %145 = vmatpush1.msra.mxu0 0.0
  %146 = vmatprep.subr.mxu0 0.0
  %147 = vmatpush1.msra.mxu0 0.0
  %148 = vmatprep.subr.mxu0 0.0
  %149 = vmatpush1.msra.mxu0 0.0
  %150 = vmatprep.subr.mxu0 0.0
  %151 = vmatpush1.msra.mxu0 0.0
  %152 = vmatprep.subr.mxu0 0.0
  %153 = vmatpush1.msra.mxu0 0.0
  %154 = vmatprep.subr.mxu0 0.0
  %155 = vmatpush1.msra.mxu0 0.0
  %156 = vmatprep.subr.mxu0 0.0
  %157 = vmatpush1.msra.mxu0 0.0
  %158 = vmatprep.subr.mxu0 0.0
  %159 = vmatpush1.msra.mxu0 0.0
  %160 = vmatprep.subr.mxu0 0.0
  %161 = vmatpush1.msra.mxu0 0.0
  %162 = vmatprep.mubr.f32.mxu0 0.0
  %163 = vmatmul.mubr.f32.gmra.mrb[0].mxu0 %v89
  %v164 = vpop.f32.mrb[0].mxu0
  %v165 = vadd.f32 0.0, %v164
  %v166 = vpop.f32.mrb[0].mxu0
  %167 = vmatprep.mubr.f32.mxu0 0.0
  %168 = vmatmul.mubr.f32.gmra.mrb[0].mxu0 %v92
  %v169 = vpop.f32.mrb[0].mxu0
  %v170 = vadd.f32 0.0, %v169
  %v171 = vpop.f32.mrb[0].mxu0
  %172 = vdwg.mxu0
  %v173 = vld [vmem:[%s3] sm:$0xff]
  %v174 = vld [vmem:[%s3 + $0x8] sm:$0xff]
  %176 = vset.pattern.permute.xlu0 0
  %177 = vperm.xlu0 %176, %v173
  %v178 = vpop.permute.xlu0 %177
  %181 = vset.pattern.permute.xlu0 0
  %182 = vperm.xlu0 %181, %v174
  %v183 = vpop.permute.xlu0 %182
  %v185 = vmul.f32 %v165, %v178
  %v186 = vmul.f32 %v170, %v183
  %v187 = vpack.c.bf16 %v186, %v185
  %v189 = vunpack.c.l.b16 %v187
  %v190 = vunpack.c.h.b16 %v187
  %v191 = vpack.c.b16 %v189, %v189
  %v192 = vpack.c.b16 %v190, %v190
  %vm195 = vcmask 257024
  %196 = vst.msk [vmem:[%s4] sm:$0xf] %vm195, %v191
  %197 = vst.msk [vmem:[%s4 + $0x4] sm:$0xf] %vm195, %v192
  // Predicated region
  $region18: #{signet_forward.14} parent=0 // pred_check
    _
  $region19: #{signet_forward.14} parent=0 // pred_check_branch
    %199 = sbr.rel (0) target = $region21
  $region20: #{signet_forward.14} parent=0 // pred_region
    _
  $region21: #{signet_forward.14} parent=0 // pred_fallthru
    _
  // Predicated region
  $region22: #{signet_forward.14} parent=0 // pred_check
    _
  $region23: #{signet_forward.14} parent=0 // pred_check_branch
    %201 = sbr.rel (0) target = $region25
  $region24: #{signet_forward.14} parent=0 // pred_region
    _
  $region25: #{signet_forward.14} parent=0 // pred_fallthru
    _

// kernel: signet_forward.16
$region0: #{signet_forward.16}
  #allocation0 [shape = 'u32[]', space=smem, size = 0x4, offset = 0x4, fixed_abs, tag = 'smem constant byte address 0x4 - core index']
  #allocation1 [shape = 'u32[144,128]{1,0:T(1,128)}', space=vmem, size = 0x12000, scoped, tag = 'internal scratch']
  %s0 = inlined_call_operand.vmem [shape: bf16[16,32], index: 0, kind: input, shape index: {}]
  %s1 = inlined_call_operand.vmem [shape: bf16[32,32], index: 1, kind: input, shape index: {}]
  %s2 = inlined_call_operand.vmem [shape: f32[32,32], index: 2, kind: input, shape index: {}]
  %s3 = inlined_call_operand.vmem [shape: f32[16,1], index: 3, kind: input, shape index: {}]
  %s4 = inlined_call_operand.vmem [shape: bf16[16,32], index: 4, kind: output, shape index: {}]
  %s5 = sld [smem:[#allocation0]]
  $region26: #{signet_forward.16} parent=0
    _
  %s7 = ssub.s32 1, %s5
  %s8 = scalar_select 0, %s7, %s5
  // Predicated region
  $region2: #{signet_forward.16} parent=0 // pred_check
    _
  $region3: #{signet_forward.16} parent=0 // pred_check_branch
    %10 = sbr.rel (0) target = $region5
  $region4: #{signet_forward.16} parent=0 // pred_region
    _
  $region5: #{signet_forward.16} parent=0 // pred_fallthru
    _
  // Predicated region
  $region6: #{signet_forward.16} parent=0 // pred_check
    _
  $region7: #{signet_forward.16} parent=0 // pred_check_branch
    %12 = sbr.rel (0) target = $region9
  $region8: #{signet_forward.16} parent=0 // pred_region
    _
  $region9: #{signet_forward.16} parent=0 // pred_fallthru
    _
  // Predicated region
  $region10: #{signet_forward.16} parent=0 // pred_check
    _
  $region11: #{signet_forward.16} parent=0 // pred_check_branch
    %14 = sbr.rel (0) target = $region13
  $region12: #{signet_forward.16} parent=0 // pred_region
    _
  $region13: #{signet_forward.16} parent=0 // pred_fallthru
    _
  // Predicated region
  $region14: #{signet_forward.16} parent=0 // pred_check
    _
  $region15: #{signet_forward.16} parent=0 // pred_check_branch
    %16 = sbr.rel (0) target = $region17
  $region16: #{signet_forward.16} parent=0 // pred_region
    _
  $region17: #{signet_forward.16} parent=0 // pred_fallthru
    _
  %v18 = vld [vmem:[%s0] sm:$0xf]
  %v19 = vld [vmem:[%s0 + $0x4] sm:$0xf]
  %v20 = vld [vmem:[%s1] sm:$0xf]
  %v21 = vld [vmem:[%s1 + $0x4] sm:$0xf]
  %v22 = vld [vmem:[%s1 + $0x8] sm:$0xf]
  %v23 = vld [vmem:[%s1 + $0xc] sm:$0xf]
  %v26 = vunpack.c.l.b16 %v18
  %v27 = vunpack.c.l.b16 %v19
  %v28 = vpack.c.b16 %v27, %v26
  %v33 = vunpack.c.l.b16 %v20
  %v34 = vunpack.c.l.b16 %v21
  %v35 = vunpack.c.l.b16 %v22
  %v36 = vunpack.c.l.b16 %v23
  %v37 = vpack.c.b16 %v34, %v33
  %v38 = vpack.c.b16 %v36, %v35
  %vm41 = vcmask 261120
  %v43 = vsel %vm41, %v28, 0
  %45 = vmatprep.subr.bf16.mxu0 0
  %46 = vmatpush1.bf16.msra.mxu0 %v37
  %47 = vmatprep.subr.bf16.mxu0 0
  %48 = vmatpush1.bf16.msra.mxu0 %v38
  %49 = vmatprep.subr.bf16.mxu0 0
  %50 = vmatpush1.bf16.msra.mxu0 0
  %51 = vmatprep.subr.bf16.mxu0 0
  %52 = vmatpush1.bf16.msra.mxu0 0
  %53 = vmatprep.subr.bf16.mxu0 0
  %54 = vmatpush1.bf16.msra.mxu0 0
  %55 = vmatprep.subr.bf16.mxu0 0
  %56 = vmatpush1.bf16.msra.mxu0 0
  %57 = vmatprep.subr.bf16.mxu0 0
  %58 = vmatpush1.bf16.msra.mxu0 0
  %59 = vmatprep.subr.bf16.mxu0 0
  %60 = vmatpush1.bf16.msra.mxu0 0
  %61 = vmatprep.subr.bf16.mxu0 0
  %62 = vmatpush1.bf16.msra.mxu0 0
  %63 = vmatprep.subr.bf16.mxu0 0
  %64 = vmatpush1.bf16.msra.mxu0 0
  %65 = vmatprep.subr.bf16.mxu0 0
  %66 = vmatpush1.bf16.msra.mxu0 0
  %67 = vmatprep.subr.bf16.mxu0 0
  %68 = vmatpush1.bf16.msra.mxu0 0
  %69 = vmatprep.subr.bf16.mxu0 0
  %70 = vmatpush1.bf16.msra.mxu0 0
  %71 = vmatprep.subr.bf16.mxu0 0
  %72 = vmatpush1.bf16.msra.mxu0 0
  %73 = vmatprep.subr.bf16.mxu0 0
  %74 = vmatpush1.bf16.msra.mxu0 0
  %75 = vmatprep.subr.bf16.mxu0 0
  %76 = vmatpush1.bf16.msra.mxu0 0
  %77 = vmatprep.mubr.bf16.mxu0 0
  %78 = vmatmul.mubr.bf16.gmra.mrb[0].mxu0 %v43
  %v79 = vpop.f32.mrb[0].mxu0
  %v80 = vadd.f32 0.0, %v79
  %v81 = vpop.f32.mrb[0].mxu0
  %v82 = vpop.f32.mrb[0].mxu0
  %v83 = vadd.f32 0.0, %v82
  %v84 = vpop.f32.mrb[0].mxu0
  %85 = vdwg.mxu0
  %v86 = vld [vmem:[%s2] sm:$0xff]
  %v87 = vld [vmem:[%s2 + $0x8] sm:$0xff]
  %v88 = vld [vmem:[%s2 + $0x10] sm:$0xff]
  %v89 = vld [vmem:[%s2 + $0x18] sm:$0xff]
  %v91 = vsel %vm41, %v80, 0
  %v94 = vsel %vm41, %v83, 0
  %96 = vmatprep.subr.mxu0 0.0
  %97 = vmatpush1.msra.mxu0 %v86
  %98 = vmatprep.subr.mxu0 0.0
  %99 = vmatpush1.msra.mxu0 %v87
  %100 = vmatprep.subr.mxu0 0.0
  %101 = vmatpush1.msra.mxu0 %v88
  %102 = vmatprep.subr.mxu0 0.0
  %103 = vmatpush1.msra.mxu0 %v89
  %104 = vmatprep.subr.mxu0 0.0
  %105 = vmatpush1.msra.mxu0 0.0
  %106 = vmatprep.subr.mxu0 0.0
  %107 = vmatpush1.msra.mxu0 0.0
  %108 = vmatprep.subr.mxu0 0.0
  %109 = vmatpush1.msra.mxu0 0.0
  %110 = vmatprep.subr.mxu0 0.0
  %111 = vmatpush1.msra.mxu0 0.0
  %112 = vmatprep.subr.mxu0 0.0
  %113 = vmatpush1.msra.mxu0 0.0
  %114 = vmatprep.subr.mxu0 0.0
  %115 = vmatpush1.msra.mxu0 0.0
  %116 = vmatprep.subr.mxu0 0.0
  %117 = vmatpush1.msra.mxu0 0.0
  %118 = vmatprep.subr.mxu0 0.0
  %119 = vmatpush1.msra.mxu0 0.0
  %120 = vmatprep.subr.mxu0 0.0
  %121 = vmatpush1.msra.mxu0 0.0
  %122 = vmatprep.subr.mxu0 0.0
  %123 = vmatpush1.msra.mxu0 0.0
  %124 = vmatprep.subr.mxu0 0.0
  %125 = vmatpush1.msra.mxu0 0.0
  %126 = vmatprep.subr.mxu0 0.0
  %127 = vmatpush1.msra.mxu0 0.0
  %128 = vmatprep.subr.mxu0 0.0
  %129 = vmatpush1.msra.mxu0 0.0
  %130 = vmatprep.subr.mxu0 0.0
  %131 = vmatpush1.msra.mxu0 0.0
  %132 = vmatprep.subr.mxu0 0.0
  %133 = vmatpush1.msra.mxu0 0.0
  %134 = vmatprep.subr.mxu0 0.0
  %135 = vmatpush1.msra.mxu0 0.0
  %136 = vmatprep.subr.mxu0 0.0
  %137 = vmatpush1.msra.mxu0 0.0
  %138 = vmatprep.subr.mxu0 0.0
  %139 = vmatpush1.msra.mxu0 0.0
  %140 = vmatprep.subr.mxu0 0.0
  %141 = vmatpush1.msra.mxu0 0.0
  %142 = vmatprep.subr.mxu0 0.0
  %143 = vmatpush1.msra.mxu0 0.0
  %144 = vmatprep.subr.mxu0 0.0
  %145 = vmatpush1.msra.mxu0 0.0
  %146 = vmatprep.subr.mxu0 0.0
  %147 = vmatpush1.msra.mxu0 0.0
  %148 = vmatprep.subr.mxu0 0.0
  %149 = vmatpush1.msra.mxu0 0.0
  %150 = vmatprep.subr.mxu0 0.0
  %151 = vmatpush1.msra.mxu0 0.0
  %152 = vmatprep.subr.mxu0 0.0
  %153 = vmatpush1.msra.mxu0 0.0
  %154 = vmatprep.subr.mxu0 0.0
  %155 = vmatpush1.msra.mxu0 0.0
  %156 = vmatprep.subr.mxu0 0.0
  %157 = vmatpush1.msra.mxu0 0.0
  %158 = vmatprep.subr.mxu0 0.0
  %159 = vmatpush1.msra.mxu0 0.0
  %160 = vmatprep.mubr.f32.mxu0 0.0
  %161 = vmatmul.mubr.f32.gmra.mrb[0].mxu0 %v91
  %v162 = vpop.f32.mrb[0].mxu0
  %v163 = vadd.f32 0.0, %v162
  %v164 = vpop.f32.mrb[0].mxu0
  %165 = vmatprep.mubr.f32.mxu0 0.0
  %166 = vmatmul.mubr.f32.gmra.mrb[0].mxu0 %v94
  %v167 = vpop.f32.mrb[0].mxu0
  %v168 = vadd.f32 0.0, %v167
  %v169 = vpop.f32.mrb[0].mxu0
  %170 = vdwg.mxu0
  %v171 = vld [vmem:[%s3] sm:$0xff]
  %v172 = vld [vmem:[%s3 + $0x8] sm:$0xff]
  %174 = vset.pattern.permute.xlu0 0
  %175 = vperm.xlu0 %174, %v171
  %v176 = vpop.permute.xlu0 %175
  %179 = vset.pattern.permute.xlu0 0
  %180 = vperm.xlu0 %179, %v172
  %v181 = vpop.permute.xlu0 %180
  %v183 = vmul.f32 %v163, %v176
  %v184 = vmul.f32 %v168, %v181
  %v185 = vpack.c.bf16 %v184, %v183
  %v187 = vunpack.c.l.b16 %v185
  %v188 = vunpack.c.h.b16 %v185
  %v189 = vpack.c.b16 %v187, %v187
  %v190 = vpack.c.b16 %v188, %v188
  %vm193 = vcmask 257024
  %194 = vst.msk [vmem:[%s4] sm:$0xf] %vm193, %v189
  %195 = vst.msk [vmem:[%s4 + $0x4] sm:$0xf] %vm193, %v190
  // Predicated region
  $region18: #{signet_forward.16} parent=0 // pred_check
    _
  $region19: #{signet_forward.16} parent=0 // pred_check_branch
    %197 = sbr.rel (0) target = $region21
  $region20: #{signet_forward.16} parent=0 // pred_region
    _
  $region21: #{signet_forward.16} parent=0 // pred_fallthru
    _
  // Predicated region
  $region22: #{signet_forward.16} parent=0 // pred_check
    _
  $region23: #{signet_forward.16} parent=0 // pred_check_branch
    %199 = sbr.rel (0) target = $region25
  $region24: #{signet_forward.16} parent=0 // pred_region
    _
  $region25: #{signet_forward.16} parent=0 // pred_fallthru
    _

// kernel: signet_forward.17
$region0: #{signet_forward.17}
  #allocation0 [shape = 'u32[]', space=smem, size = 0x4, offset = 0x4, fixed_abs, tag = 'smem constant byte address 0x4 - core index']
  #allocation1 [shape = 'u32[144,128]{1,0:T(1,128)}', space=vmem, size = 0x12000, scoped, tag = 'internal scratch']
  %s0 = inlined_call_operand.vmem [shape: bf16[32,16], index: 0, kind: input, shape index: {}]
  %s1 = inlined_call_operand.vmem [shape: bf16[16,32], index: 1, kind: input, shape index: {}]
  %s2 = inlined_call_operand.vmem [shape: f32[32,1], index: 2, kind: input, shape index: {}]
  %s3 = inlined_call_operand.vmem [shape: f32[1,32], index: 3, kind: input, shape index: {}]
  %s4 = inlined_call_operand.vmem [shape: f32[2,32], index: 4, kind: input, shape index: {}]
  %s5 = inlined_call_operand.vmem [shape: f32[1,32], index: 5, kind: input, shape index: {}]
  %s6 = inlined_call_operand.hbm [shape: bf16[32,32], index: 6, kind: output, shape index: {0}]
  %s7 = inlined_call_operand.vmem [shape: f32[1,2,32], index: 7, kind: output, shape index: {1}]
  %8 = xla_tuple %s6, %s7
  %s9 = sld [smem:[#allocation0]]
  $region46: #{signet_forward.17} parent=0
    _
  %s11 = ssub.s32 1, %s9
  %s12 = scalar_select 0, %s11, %s9
  $region1: #{signet_forward.17} parent=0
    #allocation2 [shape = 'u8[8192]{0}', space=vmem, size = 0x2000, scoped, tag = 'output window, operand 0, single buffered']
    #allocation3 [shape = 's32[1]{0}', space=sflag, size = 0x4, scoped, tag = 'scoped memory for signet_forward.17']
    %13 = vsyncpa [#allocation3], 0
    // Predicated region
    $region2: #{signet_forward.17} parent=1 // pred_check
      _
    $region3: #{signet_forward.17} parent=1 // pred_check_branch
      %15 = sbr.rel (0) target = $region5
    $region4: #{signet_forward.17} parent=1 // pred_region
      %s16 = sadd.s32 0, 0
      %s17 = smul.u32 4, %s16
      %p18 = scmp.lt.s32.totalorder %s17, 3
      %s19 = scalar_select %p18, %s17, 3
      %s20 = smul.addr %s19, 4
      %s21 = scalar_lea.vmem %s0, %s20
      %s22 = sadd.s32 0, 0
      %s23 = smul.u32 4, %s22
    $region5: #{signet_forward.17} parent=1 // pred_fallthru
      _
    // Predicated region
    $region6: #{signet_forward.17} parent=1 // pred_check
      _
    $region7: #{signet_forward.17} parent=1 // pred_check_branch
      %25 = sbr.rel (0) target = $region9
    $region8: #{signet_forward.17} parent=1 // pred_region
      _
    $region9: #{signet_forward.17} parent=1 // pred_fallthru
      _
    // Predicated region
    $region10: #{signet_forward.17} parent=1 // pred_check
      _
    $region11: #{signet_forward.17} parent=1 // pred_check_branch
      %27 = sbr.rel (0) target = $region13
    $region12: #{signet_forward.17} parent=1 // pred_region
      %s28 = sadd.s32 0, 0
      %s29 = smul.u32 4, %s28
      %p30 = scmp.lt.s32.totalorder %s29, 3
      %s31 = scalar_select %p30, %s29, 3
      %s32 = smul.addr %s31, 8
      %s33 = scalar_lea.vmem %s2, %s32
      %s34 = sadd.s32 0, 0
      %s35 = smul.u32 4, %s34
    $region13: #{signet_forward.17} parent=1 // pred_fallthru
      _
    // Predicated region
    $region14: #{signet_forward.17} parent=1 // pred_check
      _
    $region15: #{signet_forward.17} parent=1 // pred_check_branch
      %37 = sbr.rel (0) target = $region17
    $region16: #{signet_forward.17} parent=1 // pred_region
      _
    $region17: #{signet_forward.17} parent=1 // pred_fallthru
      _
    // Predicated region
    $region18: #{signet_forward.17} parent=1 // pred_check
      _
    $region19: #{signet_forward.17} parent=1 // pred_check_branch
      %39 = sbr.rel (0) target = $region21
    $region20: #{signet_forward.17} parent=1 // pred_region
      %s40 = sadd.s32 0, 0
      %p41 = scmp.lt.s32.totalorder %s40, 0
      %s42 = scalar_select %p41, %s40, 0
      %s43 = smul.addr %s42, 2
      %s44 = scalar_lea.vmem %s4, %s43
      %s45 = sadd.s32 0, 0
    $region21: #{signet_forward.17} parent=1 // pred_fallthru
      _
    // Predicated region
    $region22: #{signet_forward.17} parent=1 // pred_check
      _
    $region23: #{signet_forward.17} parent=1 // pred_check_branch
      %47 = sbr.rel (0) target = $region25
    $region24: #{signet_forward.17} parent=1 // pred_region
      %s48 = sadd.s32 0, 0
      %p49 = scmp.lt.s32.totalorder %s48, 0
      %s50 = scalar_select %p49, %s48, 0
      %s51 = scalar_lea.vmem %s5, %s50
      %s52 = sadd.s32 0, 0
    $region25: #{signet_forward.17} parent=1 // pred_fallthru
      _
    %s53 = sadd.s32 0, 0
    %s54 = smul.u32 4, %s53
    %p55 = scmp.lt.s32.totalorder %s54, 3
    %s56 = scalar_select %p55, %s54, 3
    %s57 = smul.addr %s56, 4
    %s58 = scalar_lea.vmem %s0, %s57
    %s59 = sadd.s32 0, 0
    %s60 = smul.u32 4, %s59
    %p61 = scmp.lt.s32.totalorder %s60, 3
    %s62 = scalar_select %p61, %s60, 3
    %s63 = smul.addr %s62, 8
    %s64 = scalar_lea.vmem %s2, %s63
    %s65 = sadd.s32 0, 0
    %p66 = scmp.lt.s32.totalorder %s65, 0
    %s67 = scalar_select %p66, %s65, 0
    %s68 = smul.addr %s67, 2
    %s69 = scalar_lea.vmem %s4, %s68
    %s70 = sadd.s32 0, 0
    %p71 = scmp.lt.s32.totalorder %s70, 0
    %s72 = scalar_select %p71, %s70, 0
    %s73 = scalar_lea.vmem %s5, %s72
    %s74 = sadd.s32 0, 0
    %s75 = smul.u32 4, %s74
    %p76 = scmp.lt.s32.totalorder %s75, 3
    %s77 = scalar_select %p76, %s75, 3
    %s78 = smul.addr %s77, 4
    %s79 = scalar_lea.vmem %s0, %s78
    %s80 = sadd.s32 0, 0
    %s81 = smul.u32 4, %s80
    %s82 = sadd.s32 0, 0
    %s83 = smul.u32 4, %s82
    %p84 = scmp.lt.s32.totalorder %s83, 3
    %s85 = scalar_select %p84, %s83, 3
    %s86 = smul.addr %s85, 8
    %s87 = scalar_lea.vmem %s2, %s86
    %s88 = sadd.s32 0, 0
    %s89 = smul.u32 4, %s88
    %s90 = sadd.s32 0, 0
    %p91 = scmp.lt.s32.totalorder %s90, 0
    %s92 = scalar_select %p91, %s90, 0
    %s93 = smul.addr %s92, 2
    %s94 = scalar_lea.vmem %s4, %s93
    %s95 = sadd.s32 0, 0
    %s96 = sadd.s32 0, 0
    %p97 = scmp.lt.s32.totalorder %s96, 0
    %s98 = scalar_select %p97, %s96, 0
    %s99 = scalar_lea.vmem %s5, %s98
    %s100 = sadd.s32 0, 0
    %s101 = sadd.s32 0, 0
    %s102 = smul.u32 4, %s101
    %v104 = vld [vmem:[%s79] sm:$0xf]
    %v105 = vld [vmem:[%s79 + $0x4] sm:$0xf]
    %v106 = vld [vmem:[%s79 + $0x8] sm:$0xf]
    %v107 = vld [vmem:[%s79 + $0xc] sm:$0xf]
    %v108 = vld [vmem:[%s1] sm:$0xf]
    %v109 = vld [vmem:[%s1 + $0x4] sm:$0xf]
    %v114 = vunpack.c.l.b16 %v104
    %v115 = vunpack.c.l.b16 %v105
    %v116 = vunpack.c.l.b16 %v106
    %v117 = vunpack.c.l.b16 %v107
    %v118 = vpack.c.b16 %v115, %v114
    %v119 = vpack.c.b16 %v117, %v116
    %v122 = vunpack.c.l.b16 %v108
    %v123 = vunpack.c.l.b16 %v109
    %v124 = vpack.c.b16 %v123, %v122
    %vm126 = vcmask 130048
    %v128 = vsel %vm126, %v118, 0
    %v131 = vsel %vm126, %v119, 0
    %133 = vmatprep.subr.bf16.mxu0 0
    %134 = vmatpush1.bf16.msra.mxu0 %v124
    %135 = vmatprep.subr.bf16.mxu0 0
    %136 = vmatpush1.bf16.msra.mxu0 0
    %137 = vmatprep.subr.bf16.mxu0 0
    %138 = vmatpush1.bf16.msra.mxu0 0
    %139 = vmatprep.subr.bf16.mxu0 0
    %140 = vmatpush1.bf16.msra.mxu0 0
    %141 = vmatprep.subr.bf16.mxu0 0
    %142 = vmatpush1.bf16.msra.mxu0 0
    %143 = vmatprep.subr.bf16.mxu0 0
    %144 = vmatpush1.bf16.msra.mxu0 0
    %145 = vmatprep.subr.bf16.mxu0 0
    %146 = vmatpush1.bf16.msra.mxu0 0
    %147 = vmatprep.subr.bf16.mxu0 0
    %148 = vmatpush1.bf16.msra.mxu0 0
    %149 = vmatprep.subr.bf16.mxu0 0
    %150 = vmatpush1.bf16.msra.mxu0 0
    %151 = vmatprep.subr.bf16.mxu0 0
    %152 = vmatpush1.bf16.msra.mxu0 0
    %153 = vmatprep.subr.bf16.mxu0 0
    %154 = vmatpush1.bf16.msra.mxu0 0
    %155 = vmatprep.subr.bf16.mxu0 0
    %156 = vmatpush1.bf16.msra.mxu0 0
    %157 = vmatprep.subr.bf16.mxu0 0
    %158 = vmatpush1.bf16.msra.mxu0 0
    %159 = vmatprep.subr.bf16.mxu0 0
    %160 = vmatpush1.bf16.msra.mxu0 0
    %161 = vmatprep.subr.bf16.mxu0 0
    %162 = vmatpush1.bf16.msra.mxu0 0
    %163 = vmatprep.subr.bf16.mxu0 0
    %164 = vmatpush1.bf16.msra.mxu0 0
    %165 = vmatprep.mubr.bf16.mxu0 0
    %166 = vmatmul.mubr.bf16.gmra.mrb[0].mxu0 %v128
    %v167 = vpop.f32.mrb[0].mxu0
    %v168 = vadd.f32 0.0, %v167
    %v169 = vpop.f32.mrb[0].mxu0
    %v170 = vpop.f32.mrb[0].mxu0
    %v171 = vadd.f32 0.0, %v170
    %v172 = vpop.f32.mrb[0].mxu0
    %173 = vmatprep.mubr.bf16.mxu0 0
    %174 = vmatmul.mubr.bf16.gmra.mrb[0].mxu0 %v131
    %v175 = vpop.f32.mrb[0].mxu0
    %v176 = vadd.f32 0.0, %v175
    %v177 = vpop.f32.mrb[0].mxu0
    %v178 = vpop.f32.mrb[0].mxu0
    %v179 = vadd.f32 0.0, %v178
    %v180 = vpop.f32.mrb[0].mxu0
    %181 = vdwg.mxu0
    %v182 = vld [vmem:[%s87] sm:$0xff]
    %v183 = vld [vmem:[%s87 + $0x8] sm:$0xff]
    %v184 = vld [vmem:[%s87 + $0x10] sm:$0xff]
    %v185 = vld [vmem:[%s87 + $0x18] sm:$0xff]
    %187 = vset.pattern.permute.xlu0 0
    %188 = vperm.xlu0 %187, %v182
    %v189 = vpop.permute.xlu0 %188
    %192 = vset.pattern.permute.xlu0 0
    %193 = vperm.xlu0 %192, %v183
    %v194 = vpop.permute.xlu0 %193
    %197 = vset.pattern.permute.xlu0 0
    %198 = vperm.xlu0 %197, %v184
    %v199 = vpop.permute.xlu0 %198
    %202 = vset.pattern.permute.xlu0 0
    %203 = vperm.xlu0 %202, %v185
    %v204 = vpop.permute.xlu0 %203
    %v206 = vmul.f32 %v168, %v189
    %v207 = vmul.f32 %v171, %v194
    %v208 = vmul.f32 %v176, %v199
    %v209 = vmul.f32 %v179, %v204
    %v210 = vld [vmem:[%s3] sm:$0x1]
    %v212 = vlaneseq
    %v213 = vshrl.u32 %v212, 7
    %v214 = vsub.s32 0, %v213
    %v215 = vrot.slane %v210, %v214
    %v217 = vadd.f32 %v206, %v215
    %v218 = vadd.f32 %v207, %v215
    %v219 = vadd.f32 %v208, %v215
    %v220 = vadd.f32 %v209, %v215
    %v221 = vmax.f32 %v217, 0.0
    %v222 = vmax.f32 %v218, 0.0
    %v223 = vmax.f32 %v219, 0.0
    %v224 = vmax.f32 %v220, 0.0
    %v225 = vpack.c.bf16 %v222, %v221
    %v226 = vpack.c.bf16 %v224, %v223
    %v229 = vunpack.c.l.b16 %v225
    %v230 = vunpack.c.h.b16 %v225
    %v231 = vunpack.c.l.b16 %v226
    %v232 = vunpack.c.h.b16 %v226
    %v233 = vpack.c.b16 %v229, %v229
    %v234 = vpack.c.b16 %v230, %v230
    %v235 = vpack.c.b16 %v231, %v231
    %v236 = vpack.c.b16 %v232, %v232
    %vm241 = vcmask 257024
    %242 = vst.msk [vmem:[#allocation2] sm:$0xf] %vm241, %v233
    %243 = vst.msk [vmem:[#allocation2 + $0x4] sm:$0xf] %vm241, %v234
    %244 = vst.msk [vmem:[#allocation2 + $0x8] sm:$0xf] %vm241, %v235
    %245 = vst.msk [vmem:[#allocation2 + $0xc] sm:$0xf] %vm241, %v236
    %v246 = vld [vmem:[%s94] sm:$0x3]
    %v247 = vld [vmem:[%s99] sm:$0x1]
    %v249 = vlaneseq
    %v250 = vshrl.u32 %v249, 7
    %v251 = vsub.s32 0, %v250
    %v252 = vrot.slane %v247, %v251
    %v254 = vmul.f32 %v246, %v252
    %vm255 = vcmask 261120
    %v257 = vsel %vm255, %v254, 0
    %259 = vmatprep.subr.mxu0 0.0
    %260 = vmatpush1.msra.mxu0 %v221
    %261 = vmatprep.subr.mxu0 0.0
    %262 = vmatpush1.msra.mxu0 %v222
    %263 = vmatprep.subr.mxu0 0.0
    %264 = vmatpush1.msra.mxu0 %v223
    %265 = vmatprep.subr.mxu0 0.0
    %266 = vmatpush1.msra.mxu0 %v224
    %267 = vmatprep.subr.mxu0 0.0
    %268 = vmatpush1.msra.mxu0 0.0
    %269 = vmatprep.subr.mxu0 0.0
    %270 = vmatpush1.msra.mxu0 0.0
    %271 = vmatprep.subr.mxu0 0.0
    %272 = vmatpush1.msra.mxu0 0.0
    %273 = vmatprep.subr.mxu0 0.0
    %274 = vmatpush1.msra.mxu0 0.0
    %275 = vmatprep.subr.mxu0 0.0
    %276 = vmatpush1.msra.mxu0 0.0
    %277 = vmatprep.subr.mxu0 0.0
    %278 = vmatpush1.msra.mxu0 0.0
    %279 = vmatprep.subr.mxu0 0.0
    %280 = vmatpush1.msra.mxu0 0.0
    %281 = vmatprep.subr.mxu0 0.0
    %282 = vmatpush1.msra.mxu0 0.0
    %283 = vmatprep.subr.mxu0 0.0
    %284 = vmatpush1.msra.mxu0 0.0
    %285 = vmatprep.subr.mxu0 0.0
    %286 = vmatpush1.msra.mxu0 0.0
    %287 = vmatprep.subr.mxu0 0.0
    %288 = vmatpush1.msra.mxu0 0.0
    %289 = vmatprep.subr.mxu0 0.0
    %290 = vmatpush1.msra.mxu0 0.0
    %291 = vmatprep.subr.mxu0 0.0
    %292 = vmatpush1.msra.mxu0 0.0
    %293 = vmatprep.subr.mxu0 0.0
    %294 = vmatpush1.msra.mxu0 0.0
    %295 = vmatprep.subr.mxu0 0.0
    %296 = vmatpush1.msra.mxu0 0.0
    %297 = vmatprep.subr.mxu0 0.0
    %298 = vmatpush1.msra.mxu0 0.0
    %299 = vmatprep.subr.mxu0 0.0
    %300 = vmatpush1.msra.mxu0 0.0
    %301 = vmatprep.subr.mxu0 0.0
    %302 = vmatpush1.msra.mxu0 0.0
    %303 = vmatprep.subr.mxu0 0.0
    %304 = vmatpush1.msra.mxu0 0.0
    %305 = vmatprep.subr.mxu0 0.0
    %306 = vmatpush1.msra.mxu0 0.0
    %307 = vmatprep.subr.mxu0 0.0
    %308 = vmatpush1.msra.mxu0 0.0
    %309 = vmatprep.subr.mxu0 0.0
    %310 = vmatpush1.msra.mxu0 0.0
    %311 = vmatprep.subr.mxu0 0.0
    %312 = vmatpush1.msra.mxu0 0.0
    %313 = vmatprep.subr.mxu0 0.0
    %314 = vmatpush1.msra.mxu0 0.0
    %315 = vmatprep.subr.mxu0 0.0
    %316 = vmatpush1.msra.mxu0 0.0
    %317 = vmatprep.subr.mxu0 0.0
    %318 = vmatpush1.msra.mxu0 0.0
    %319 = vmatprep.subr.mxu0 0.0
    %320 = vmatpush1.msra.mxu0 0.0
    %321 = vmatprep.subr.mxu0 0.0
    %322 = vmatpush1.msra.mxu0 0.0
    %323 = vmatprep.mubr.f32.mxu0 0.0
    %324 = vmatmul.mubr.f32.gmra.mrb[0].mxu0 %v257
    %v325 = vpop.f32.mrb[0].mxu0
    %v326 = vadd.f32 0.0, %v325
    %v327 = vpop.f32.mrb[0].mxu0
    %328 = vdwg.mxu0
    %p329 = scmp.eq.s32.totalorder 0, 0
    // Predicated region
    $region26: #{signet_forward.17} parent=1 // pred_check
      %p330 = pneg %p329
    $region27: #{signet_forward.17} parent=1 // pred_check_branch
      %332 = sbr.rel (%p330) target = $region29
    $region28: #{signet_forward.17} parent=1 // pred_region
      %vm333 = vcmask 254976
      %334 = vst.msk [vmem:[%s7] sm:$0x3] %vm333, 0.0
    $region29: #{signet_forward.17} parent=1 // pred_fallthru
      _
    %v335 = vld [vmem:[%s7] sm:$0x3]
    %v336 = vadd.f32 %v335, %v326
    %vm337 = vcmask 254976
    %338 = vst.msk [vmem:[%s7] sm:$0x3] %vm337, %v336
    // Predicated region
    $region30: #{signet_forward.17} parent=1 // pred_check
      _
    $region31: #{signet_forward.17} parent=1 // pred_check_branch
      %340 = sbr.rel (0) target = $region33
    $region32: #{signet_forward.17} parent=1 // pred_region
      %s341 = sadd.s32 0, 0
      %s342 = smul.u32 4, %s341
      %s344 = ssub.s32 256, 256
      %345 = vsyncadd [#allocation3], %s344
      %s346 = smul.addr %s342, 64
      %s347 = scalar_lea.hbm %s6, %s346
      %s348 = sshll.u32 [#allocation2], 4
      %s349 = int_to_ptr.vmem [resolvable:$true] %s348
      %354 = dma.vmem_to_hbm [thread:$0]  %s349, 256, %s347, [#allocation3], 64, 64, 4
    $region33: #{signet_forward.17} parent=1 // pred_fallthru
      _
    // Predicated region
    $region34: #{signet_forward.17} parent=1 // pred_check
      _
    $region35: #{signet_forward.17} parent=1 // pred_check_branch
      %356 = sbr.rel (0) target = $region37
    $region36: #{signet_forward.17} parent=1 // pred_region
      _
    $region37: #{signet_forward.17} parent=1 // pred_fallthru
      _
    // Predicated region
    $region38: #{signet_forward.17} parent=1 // pred_check
      _
    $region39: #{signet_forward.17} parent=1 // pred_check_branch
      %358 = sbr.rel (0) target = $region41
    $region40: #{signet_forward.17} parent=1 // pred_region
      %359 = dma.done [#allocation3], 256
    $region41: #{signet_forward.17} parent=1 // pred_fallthru
      _
    // Predicated region
    $region42: #{signet_forward.17} parent=1 // pred_check
      _
    $region43: #{signet_forward.17} parent=1 // pred_check_branch
      %361 = sbr.rel (0) target = $region45
    $region44: #{signet_forward.17} parent=1 // pred_region
      _
    $region45: #{signet_forward.17} parent=1 // pred_fallthru
      _
    %362 = vsyncpa [#allocation3], 1

// kernel: signet_forward.15
$region0: #{signet_forward.15}
  #allocation0 [shape = 'u32[]', space=smem, size = 0x4, offset = 0x4, fixed_abs, tag = 'smem constant byte address 0x4 - core index']
  #allocation1 [shape = 'u32[144,128]{1,0:T(1,128)}', space=vmem, size = 0x12000, scoped, tag = 'internal scratch']
  %s0 = inlined_call_operand.vmem [shape: bf16[32,16], index: 0, kind: input, shape index: {}]
  %s1 = inlined_call_operand.vmem [shape: bf16[16,32], index: 1, kind: input, shape index: {}]
  %s2 = inlined_call_operand.vmem [shape: f32[32,1], index: 2, kind: input, shape index: {}]
  %s3 = inlined_call_operand.vmem [shape: f32[1,32], index: 3, kind: input, shape index: {}]
  %s4 = inlined_call_operand.vmem [shape: f32[2,32], index: 4, kind: input, shape index: {}]
  %s5 = inlined_call_operand.vmem [shape: f32[1,32], index: 5, kind: input, shape index: {}]
  %s6 = inlined_call_operand.vmem [shape: bf16[32,32], index: 6, kind: output, shape index: {0}]
  %s7 = inlined_call_operand.vmem [shape: f32[1,2,32], index: 7, kind: output, shape index: {1}]
  %8 = xla_tuple %s6, %s7
  %s9 = sld [smem:[#allocation0]]
  $region46: #{signet_forward.15} parent=0
    _
  %s11 = ssub.s32 1, %s9
  %s12 = scalar_select 0, %s11, %s9
  // Predicated region
  $region2: #{signet_forward.15} parent=0 // pred_check
    _
  $region3: #{signet_forward.15} parent=0 // pred_check_branch
    %14 = sbr.rel (0) target = $region5
  $region4: #{signet_forward.15} parent=0 // pred_region
    %s15 = sadd.s32 0, 0
    %s16 = smul.u32 4, %s15
    %p17 = scmp.lt.s32.totalorder %s16, 3
    %s18 = scalar_select %p17, %s16, 3
    %s19 = smul.addr %s18, 4
    %s20 = scalar_lea.vmem %s0, %s19
    %s21 = sadd.s32 0, 0
    %s22 = smul.u32 4, %s21
  $region5: #{signet_forward.15} parent=0 // pred_fallthru
    _
  // Predicated region
  $region6: #{signet_forward.15} parent=0 // pred_check
    _
  $region7: #{signet_forward.15} parent=0 // pred_check_branch
    %24 = sbr.rel (0) target = $region9
  $region8: #{signet_forward.15} parent=0 // pred_region
    _
  $region9: #{signet_forward.15} parent=0 // pred_fallthru
    _
  // Predicated region
  $region10: #{signet_forward.15} parent=0 // pred_check
    _
  $region11: #{signet_forward.15} parent=0 // pred_check_branch
    %26 = sbr.rel (0) target = $region13
  $region12: #{signet_forward.15} parent=0 // pred_region
    %s27 = sadd.s32 0, 0
    %s28 = smul.u32 4, %s27
    %p29 = scmp.lt.s32.totalorder %s28, 3
    %s30 = scalar_select %p29, %s28, 3
    %s31 = smul.addr %s30, 8
    %s32 = scalar_lea.vmem %s2, %s31
    %s33 = sadd.s32 0, 0
    %s34 = smul.u32 4, %s33
  $region13: #{signet_forward.15} parent=0 // pred_fallthru
    _
  // Predicated region
  $region14: #{signet_forward.15} parent=0 // pred_check
    _
  $region15: #{signet_forward.15} parent=0 // pred_check_branch
    %36 = sbr.rel (0) target = $region17
  $region16: #{signet_forward.15} parent=0 // pred_region
    _
  $region17: #{signet_forward.15} parent=0 // pred_fallthru
    _
  // Predicated region
  $region18: #{signet_forward.15} parent=0 // pred_check
    _
  $region19: #{signet_forward.15} parent=0 // pred_check_branch
    %38 = sbr.rel (0) target = $region21
  $region20: #{signet_forward.15} parent=0 // pred_region
    %s39 = sadd.s32 0, 0
    %p40 = scmp.lt.s32.totalorder %s39, 0
    %s41 = scalar_select %p40, %s39, 0
    %s42 = smul.addr %s41, 2
    %s43 = scalar_lea.vmem %s4, %s42
    %s44 = sadd.s32 0, 0
  $region21: #{signet_forward.15} parent=0 // pred_fallthru
    _
  // Predicated region
  $region22: #{signet_forward.15} parent=0 // pred_check
    _
  $region23: #{signet_forward.15} parent=0 // pred_check_branch
    %46 = sbr.rel (0) target = $region25
  $region24: #{signet_forward.15} parent=0 // pred_region
    %s47 = sadd.s32 0, 0
    %p48 = scmp.lt.s32.totalorder %s47, 0
    %s49 = scalar_select %p48, %s47, 0
    %s50 = scalar_lea.vmem %s5, %s49
    %s51 = sadd.s32 0, 0
  $region25: #{signet_forward.15} parent=0 // pred_fallthru
    _
  %s52 = sadd.s32 0, 0
  %s53 = smul.u32 4, %s52
  %p54 = scmp.lt.s32.totalorder %s53, 3
  %s55 = scalar_select %p54, %s53, 3
  %s56 = smul.addr %s55, 4
  %s57 = scalar_lea.vmem %s0, %s56
  %s58 = sadd.s32 0, 0
  %s59 = smul.u32 4, %s58
  %p60 = scmp.lt.s32.totalorder %s59, 3
  %s61 = scalar_select %p60, %s59, 3
  %s62 = smul.addr %s61, 8
  %s63 = scalar_lea.vmem %s2, %s62
  %s64 = sadd.s32 0, 0
  %p65 = scmp.lt.s32.totalorder %s64, 0
  %s66 = scalar_select %p65, %s64, 0
  %s67 = smul.addr %s66, 2
  %s68 = scalar_lea.vmem %s4, %s67
  %s69 = sadd.s32 0, 0
  %p70 = scmp.lt.s32.totalorder %s69, 0
  %s71 = scalar_select %p70, %s69, 0
  %s72 = scalar_lea.vmem %s5, %s71
  %s73 = sadd.s32 0, 0
  %s74 = smul.u32 4, %s73
  %p75 = scmp.lt.s32.totalorder %s74, 3
  %s76 = scalar_select %p75, %s74, 3
  %s77 = smul.addr %s76, 4
  %s78 = scalar_lea.vmem %s6, %s77
  %s79 = sadd.s32 0, 0
  %s80 = smul.u32 4, %s79
  %p81 = scmp.lt.s32.totalorder %s80, 3
  %s82 = scalar_select %p81, %s80, 3
  %s83 = smul.addr %s82, 4
  %s84 = scalar_lea.vmem %s0, %s83
  %s85 = sadd.s32 0, 0
  %s86 = smul.u32 4, %s85
  %s87 = sadd.s32 0, 0
  %s88 = smul.u32 4, %s87
  %p89 = scmp.lt.s32.totalorder %s88, 3
  %s90 = scalar_select %p89, %s88, 3
  %s91 = smul.addr %s90, 8
  %s92 = scalar_lea.vmem %s2, %s91
  %s93 = sadd.s32 0, 0
  %s94 = smul.u32 4, %s93
  %s95 = sadd.s32 0, 0
  %p96 = scmp.lt.s32.totalorder %s95, 0
  %s97 = scalar_select %p96, %s95, 0
  %s98 = smul.addr %s97, 2
  %s99 = scalar_lea.vmem %s4, %s98
  %s100 = sadd.s32 0, 0
  %s101 = sadd.s32 0, 0
  %p102 = scmp.lt.s32.totalorder %s101, 0
  %s103 = scalar_select %p102, %s101, 0
  %s104 = scalar_lea.vmem %s5, %s103
  %s105 = sadd.s32 0, 0
  %s106 = sadd.s32 0, 0
  %s107 = smul.u32 4, %s106
  %p108 = scmp.lt.s32.totalorder %s107, 3
  %s109 = scalar_select %p108, %s107, 3
  %s110 = smul.addr %s109, 4
  %s111 = scalar_lea.vmem %s6, %s110
  %s112 = sadd.s32 0, 0
  %s113 = smul.u32 4, %s112
  %v115 = vld [vmem:[%s84] sm:$0xf]
  %v116 = vld [vmem:[%s84 + $0x4] sm:$0xf]
  %v117 = vld [vmem:[%s84 + $0x8] sm:$0xf]
  %v118 = vld [vmem:[%s84 + $0xc] sm:$0xf]
  %v119 = vld [vmem:[%s1] sm:$0xf]
  %v120 = vld [vmem:[%s1 + $0x4] sm:$0xf]
  %v125 = vunpack.c.l.b16 %v115
  %v126 = vunpack.c.l.b16 %v116
  %v127 = vunpack.c.l.b16 %v117
  %v128 = vunpack.c.l.b16 %v118
  %v129 = vpack.c.b16 %v126, %v125
  %v130 = vpack.c.b16 %v128, %v127
  %v133 = vunpack.c.l.b16 %v119
  %v134 = vunpack.c.l.b16 %v120
  %v135 = vpack.c.b16 %v134, %v133
  %vm137 = vcmask 130048
  %v139 = vsel %vm137, %v129, 0
  %v142 = vsel %vm137, %v130, 0
  %144 = vmatprep.subr.bf16.mxu0 0
  %145 = vmatpush1.bf16.msra.mxu0 %v135
  %146 = vmatprep.subr.bf16.mxu0 0
  %147 = vmatpush1.bf16.msra.mxu0 0
  %148 = vmatprep.subr.bf16.mxu0 0
  %149 = vmatpush1.bf16.msra.mxu0 0
  %150 = vmatprep.subr.bf16.mxu0 0
  %151 = vmatpush1.bf16.msra.mxu0 0
  %152 = vmatprep.subr.bf16.mxu0 0
  %153 = vmatpush1.bf16.msra.mxu0 0
  %154 = vmatprep.subr.bf16.mxu0 0
  %155 = vmatpush1.bf16.msra.mxu0 0
  %156 = vmatprep.subr.bf16.mxu0 0
  %157 = vmatpush1.bf16.msra.mxu0 0
  %158 = vmatprep.subr.bf16.mxu0 0
  %159 = vmatpush1.bf16.msra.mxu0 0
  %160 = vmatprep.subr.bf16.mxu0 0
  %161 = vmatpush1.bf16.msra.mxu0 0
  %162 = vmatprep.subr.bf16.mxu0 0
  %163 = vmatpush1.bf16.msra.mxu0 0
  %164 = vmatprep.subr.bf16.mxu0 0
  %165 = vmatpush1.bf16.msra.mxu0 0
  %166 = vmatprep.subr.bf16.mxu0 0
  %167 = vmatpush1.bf16.msra.mxu0 0
  %168 = vmatprep.subr.bf16.mxu0 0
  %169 = vmatpush1.bf16.msra.mxu0 0
  %170 = vmatprep.subr.bf16.mxu0 0
  %171 = vmatpush1.bf16.msra.mxu0 0
  %172 = vmatprep.subr.bf16.mxu0 0
  %173 = vmatpush1.bf16.msra.mxu0 0
  %174 = vmatprep.subr.bf16.mxu0 0
  %175 = vmatpush1.bf16.msra.mxu0 0
  %176 = vmatprep.mubr.bf16.mxu0 0
  %177 = vmatmul.mubr.bf16.gmra.mrb[0].mxu0 %v139
  %v178 = vpop.f32.mrb[0].mxu0
  %v179 = vadd.f32 0.0, %v178
  %v180 = vpop.f32.mrb[0].mxu0
  %v181 = vpop.f32.mrb[0].mxu0
  %v182 = vadd.f32 0.0, %v181
  %v183 = vpop.f32.mrb[0].mxu0
  %184 = vmatprep.mubr.bf16.mxu0 0
  %185 = vmatmul.mubr.bf16.gmra.mrb[0].mxu0 %v142
  %v186 = vpop.f32.mrb[0].mxu0
  %v187 = vadd.f32 0.0, %v186
  %v188 = vpop.f32.mrb[0].mxu0
  %v189 = vpop.f32.mrb[0].mxu0
  %v190 = vadd.f32 0.0, %v189
  %v191 = vpop.f32.mrb[0].mxu0
  %192 = vdwg.mxu0
  %v193 = vld [vmem:[%s92] sm:$0xff]
  %v194 = vld [vmem:[%s92 + $0x8] sm:$0xff]
  %v195 = vld [vmem:[%s92 + $0x10] sm:$0xff]
  %v196 = vld [vmem:[%s92 + $0x18] sm:$0xff]
  %198 = vset.pattern.permute.xlu0 0
  %199 = vperm.xlu0 %198, %v193
  %v200 = vpop.permute.xlu0 %199
  %203 = vset.pattern.permute.xlu0 0
  %204 = vperm.xlu0 %203, %v194
  %v205 = vpop.permute.xlu0 %204
  %208 = vset.pattern.permute.xlu0 0
  %209 = vperm.xlu0 %208, %v195
  %v210 = vpop.permute.xlu0 %209
  %213 = vset.pattern.permute.xlu0 0
  %214 = vperm.xlu0 %213, %v196
  %v215 = vpop.permute.xlu0 %214
  %v217 = vmul.f32 %v179, %v200
  %v218 = vmul.f32 %v182, %v205
  %v219 = vmul.f32 %v187, %v210
  %v220 = vmul.f32 %v190, %v215
  %v221 = vld [vmem:[%s3] sm:$0x1]
  %v223 = vlaneseq
  %v224 = vshrl.u32 %v223, 7
  %v225 = vsub.s32 0, %v224
  %v226 = vrot.slane %v221, %v225
  %v228 = vadd.f32 %v217, %v226
  %v229 = vadd.f32 %v218, %v226
  %v230 = vadd.f32 %v219, %v226
  %v231 = vadd.f32 %v220, %v226
  %v232 = vmax.f32 %v228, 0.0
  %v233 = vmax.f32 %v229, 0.0
  %v234 = vmax.f32 %v230, 0.0
  %v235 = vmax.f32 %v231, 0.0
  %v236 = vpack.c.bf16 %v233, %v232
  %v237 = vpack.c.bf16 %v235, %v234
  %v240 = vunpack.c.l.b16 %v236
  %v241 = vunpack.c.h.b16 %v236
  %v242 = vunpack.c.l.b16 %v237
  %v243 = vunpack.c.h.b16 %v237
  %v244 = vpack.c.b16 %v240, %v240
  %v245 = vpack.c.b16 %v241, %v241
  %v246 = vpack.c.b16 %v242, %v242
  %v247 = vpack.c.b16 %v243, %v243
  %vm252 = vcmask 257024
  %253 = vst.msk [vmem:[%s111] sm:$0xf] %vm252, %v244
  %254 = vst.msk [vmem:[%s111 + $0x4] sm:$0xf] %vm252, %v245
  %255 = vst.msk [vmem:[%s111 + $0x8] sm:$0xf] %vm252, %v246
  %256 = vst.msk [vmem:[%s111 + $0xc] sm:$0xf] %vm252, %v247
  %v257 = vld [vmem:[%s99] sm:$0x3]
  %v258 = vld [vmem:[%s104] sm:$0x1]
  %v260 = vlaneseq
  %v261 = vshrl.u32 %v260, 7
  %v262 = vsub.s32 0, %v261
  %v263 = vrot.slane %v258, %v262
  %v265 = vmul.f32 %v257, %v263
  %vm266 = vcmask 261120
  %v268 = vsel %vm266, %v265, 0
  %270 = vmatprep.subr.mxu0 0.0
  %271 = vmatpush1.msra.mxu0 %v232
  %272 = vmatprep.subr.mxu0 0.0
  %273 = vmatpush1.msra.mxu0 %v233
  %274 = vmatprep.subr.mxu0 0.0
  %275 = vmatpush1.msra.mxu0 %v234
  %276 = vmatprep.subr.mxu0 0.0
  %277 = vmatpush1.msra.mxu0 %v235
  %278 = vmatprep.subr.mxu0 0.0
  %279 = vmatpush1.msra.mxu0 0.0
  %280 = vmatprep.subr.mxu0 0.0
  %281 = vmatpush1.msra.mxu0 0.0
  %282 = vmatprep.subr.mxu0 0.0
  %283 = vmatpush1.msra.mxu0 0.0
  %284 = vmatprep.subr.mxu0 0.0
  %285 = vmatpush1.msra.mxu0 0.0
  %286 = vmatprep.subr.mxu0 0.0
  %287 = vmatpush1.msra.mxu0 0.0
  %288 = vmatprep.subr.mxu0 0.0
  %289 = vmatpush1.msra.mxu0 0.0
  %290 = vmatprep.subr.mxu0 0.0
  %291 = vmatpush1.msra.mxu0 0.0
  %292 = vmatprep.subr.mxu0 0.0
  %293 = vmatpush1.msra.mxu0 0.0
  %294 = vmatprep.subr.mxu0 0.0
  %295 = vmatpush1.msra.mxu0 0.0
  %296 = vmatprep.subr.mxu0 0.0
  %297 = vmatpush1.msra.mxu0 0.0
  %298 = vmatprep.subr.mxu0 0.0
  %299 = vmatpush1.msra.mxu0 0.0
  %300 = vmatprep.subr.mxu0 0.0
  %301 = vmatpush1.msra.mxu0 0.0
  %302 = vmatprep.subr.mxu0 0.0
  %303 = vmatpush1.msra.mxu0 0.0
  %304 = vmatprep.subr.mxu0 0.0
  %305 = vmatpush1.msra.mxu0 0.0
  %306 = vmatprep.subr.mxu0 0.0
  %307 = vmatpush1.msra.mxu0 0.0
  %308 = vmatprep.subr.mxu0 0.0
  %309 = vmatpush1.msra.mxu0 0.0
  %310 = vmatprep.subr.mxu0 0.0
  %311 = vmatpush1.msra.mxu0 0.0
  %312 = vmatprep.subr.mxu0 0.0
  %313 = vmatpush1.msra.mxu0 0.0
  %314 = vmatprep.subr.mxu0 0.0
  %315 = vmatpush1.msra.mxu0 0.0
  %316 = vmatprep.subr.mxu0 0.0
  %317 = vmatpush1.msra.mxu0 0.0
  %318 = vmatprep.subr.mxu0 0.0
  %319 = vmatpush1.msra.mxu0 0.0
  %320 = vmatprep.subr.mxu0 0.0
  %321 = vmatpush1.msra.mxu0 0.0
  %322 = vmatprep.subr.mxu0 0.0
  %323 = vmatpush1.msra.mxu0 0.0
  %324 = vmatprep.subr.mxu0 0.0
  %325 = vmatpush1.msra.mxu0 0.0
  %326 = vmatprep.subr.mxu0 0.0
  %327 = vmatpush1.msra.mxu0 0.0
  %328 = vmatprep.subr.mxu0 0.0
  %329 = vmatpush1.msra.mxu0 0.0
  %330 = vmatprep.subr.mxu0 0.0
  %331 = vmatpush1.msra.mxu0 0.0
  %332 = vmatprep.subr.mxu0 0.0
  %333 = vmatpush1.msra.mxu0 0.0
  %334 = vmatprep.mubr.f32.mxu0 0.0
  %335 = vmatmul.mubr.f32.gmra.mrb[0].mxu0 %v268
  %v336 = vpop.f32.mrb[0].mxu0
  %v337 = vadd.f32 0.0, %v336
  %v338 = vpop.f32.mrb[0].mxu0
  %339 = vdwg.mxu0
  %p340 = scmp.eq.s32.totalorder 0, 0
  // Predicated region
  $region26: #{signet_forward.15} parent=0 // pred_check
    %p341 = pneg %p340
  $region27: #{signet_forward.15} parent=0 // pred_check_branch
    %343 = sbr.rel (%p341) target = $region29
  $region28: #{signet_forward.15} parent=0 // pred_region
    %vm344 = vcmask 254976
    %345 = vst.msk [vmem:[%s7] sm:$0x3] %vm344, 0.0
  $region29: #{signet_forward.15} parent=0 // pred_fallthru
    _
  %v346 = vld [vmem:[%s7] sm:$0x3]
  %v347 = vadd.f32 %v346, %v337
  %vm348 = vcmask 254976
  %349 = vst.msk [vmem:[%s7] sm:$0x3] %vm348, %v347
  %s350 = sadd.s32 0, 0
  %s351 = smul.u32 4, %s350
  %p352 = scmp.lt.s32.totalorder %s351, 3
  %s353 = scalar_select %p352, %s351, 3
  %s354 = smul.addr %s353, 4
  %s355 = scalar_lea.vmem %s6, %s354
  // Predicated region
  $region30: #{signet_forward.15} parent=0 // pred_check
    _
  $region31: #{signet_forward.15} parent=0 // pred_check_branch
    %357 = sbr.rel (0) target = $region33
  $region32: #{signet_forward.15} parent=0 // pred_region
    %s358 = sadd.s32 0, 0
    %s359 = smul.u32 4, %s358
  $region33: #{signet_forward.15} parent=0 // pred_fallthru
    _
  // Predicated region
  $region34: #{signet_forward.15} parent=0 // pred_check
    _
  $region35: #{signet_forward.15} parent=0 // pred_check_branch
    %361 = sbr.rel (0) target = $region37
  $region36: #{signet_forward.15} parent=0 // pred_region
    _
  $region37: #{signet_forward.15} parent=0 // pred_fallthru
    _
  // Predicated region
  $region38: #{signet_forward.15} parent=0 // pred_check
    _
  $region39: #{signet_forward.15} parent=0 // pred_check_branch
    %363 = sbr.rel (0) target = $region41
  $region40: #{signet_forward.15} parent=0 // pred_region
    %s364 = sadd.s32 0, 0
    %s365 = smul.u32 4, %s364
    %p366 = scmp.lt.s32.totalorder %s365, 3
    %s367 = scalar_select %p366, %s365, 3
    %s368 = smul.addr %s367, 4
    %s369 = scalar_lea.vmem %s6, %s368
  $region41: #{signet_forward.15} parent=0 // pred_fallthru
    _
  // Predicated region
  $region42: #{signet_forward.15} parent=0 // pred_check
    _
  $region43: #{signet_forward.15} parent=0 // pred_check_branch
    %371 = sbr.rel (0) target = $region45
  $region44: #{signet_forward.15} parent=0 // pred_region
    _
  $region45: #{signet_forward.15} parent=0 // pred_fallthru
    _

// kernel: signet_forward.19
$region0: #{signet_forward.19}
  #allocation0 [shape = 'u32[]', space=smem, size = 0x4, offset = 0x4, fixed_abs, tag = 'smem constant byte address 0x4 - core index']
  #allocation1 [shape = 'u32[144,128]{1,0:T(1,128)}', space=vmem, size = 0x12000, scoped, tag = 'internal scratch']
  %s0 = inlined_call_operand.vmem [shape: f32[2,64], index: 0, kind: input, shape index: {}]
  %s1 = inlined_call_operand.vmem [shape: f32[64,64], index: 1, kind: input, shape index: {}]
  %s2 = inlined_call_operand.vmem [shape: f32[1,64], index: 2, kind: input, shape index: {}]
  %s3 = inlined_call_operand.vmem [shape: f32[64,64], index: 3, kind: input, shape index: {}]
  %s4 = inlined_call_operand.vmem [shape: f32[1,64], index: 4, kind: input, shape index: {}]
  %s5 = inlined_call_operand.hbm [shape: f32[2,64], index: 5, kind: output, shape index: {}]
  %s6 = sld [smem:[#allocation0]]
  $region30: #{signet_forward.19} parent=0
    _
  %s8 = ssub.s32 1, %s6
  %s9 = scalar_select 0, %s8, %s6
  $region1: #{signet_forward.19} parent=0
    #allocation2 [shape = 'u8[1024]{0}', space=vmem, size = 0x400, scoped, tag = 'output window, operand 0, single buffered']
    #allocation3 [shape = 's32[1]{0}', space=sflag, size = 0x4, scoped, tag = 'scoped memory for signet_forward.19']
    %10 = vsyncpa [#allocation3], 0
    // Predicated region
    $region2: #{signet_forward.19} parent=1 // pred_check
      _
    $region3: #{signet_forward.19} parent=1 // pred_check_branch
      %12 = sbr.rel (0) target = $region5
    $region4: #{signet_forward.19} parent=1 // pred_region
      _
    $region5: #{signet_forward.19} parent=1 // pred_fallthru
      _
    // Predicated region
    $region6: #{signet_forward.19} parent=1 // pred_check
      _
    $region7: #{signet_forward.19} parent=1 // pred_check_branch
      %14 = sbr.rel (0) target = $region9
    $region8: #{signet_forward.19} parent=1 // pred_region
      _
    $region9: #{signet_forward.19} parent=1 // pred_fallthru
      _
    // Predicated region
    $region10: #{signet_forward.19} parent=1 // pred_check
      _
    $region11: #{signet_forward.19} parent=1 // pred_check_branch
      %16 = sbr.rel (0) target = $region13
    $region12: #{signet_forward.19} parent=1 // pred_region
      _
    $region13: #{signet_forward.19} parent=1 // pred_fallthru
      _
    // Predicated region
    $region14: #{signet_forward.19} parent=1 // pred_check
      _
    $region15: #{signet_forward.19} parent=1 // pred_check_branch
      %18 = sbr.rel (0) target = $region17
    $region16: #{signet_forward.19} parent=1 // pred_region
      _
    $region17: #{signet_forward.19} parent=1 // pred_fallthru
      _
    // Predicated region
    $region18: #{signet_forward.19} parent=1 // pred_check
      _
    $region19: #{signet_forward.19} parent=1 // pred_check_branch
      %20 = sbr.rel (0) target = $region21
    $region20: #{signet_forward.19} parent=1 // pred_region
      _
    $region21: #{signet_forward.19} parent=1 // pred_fallthru
      _
    %v21 = vld [vmem:[%s0] sm:$0x3]
    %v22 = vld [vmem:[%s1] sm:$0xff]
    %v23 = vld [vmem:[%s1 + $0x8] sm:$0xff]
    %v24 = vld [vmem:[%s1 + $0x10] sm:$0xff]
    %v25 = vld [vmem:[%s1 + $0x18] sm:$0xff]
    %v26 = vld [vmem:[%s1 + $0x20] sm:$0xff]
    %v27 = vld [vmem:[%s1 + $0x28] sm:$0xff]
    %v28 = vld [vmem:[%s1 + $0x30] sm:$0xff]
    %v29 = vld [vmem:[%s1 + $0x38] sm:$0xff]
    %v30 = vld [vmem:[%s2] sm:$0x1]
    %v32 = vlaneseq
    %v33 = vshrl.u32 %v32, 7
    %v34 = vsub.s32 0, %v33
    %v35 = vrot.slane %v30, %v34
    %vm37 = vcmask 523264
    %v39 = vsel %vm37, %v21, 0
    %41 = vmatprep.subr.mxu0 0.0
    %42 = vmatpush1.msra.mxu0 %v22
    %43 = vmatprep.subr.mxu0 0.0
    %44 = vmatpush1.msra.mxu0 %v23
    %45 = vmatprep.subr.mxu0 0.0
    %46 = vmatpush1.msra.mxu0 %v24
    %47 = vmatprep.subr.mxu0 0.0
    %48 = vmatpush1.msra.mxu0 %v25
    %49 = vmatprep.subr.mxu0 0.0
    %50 = vmatpush1.msra.mxu0 %v26
    %51 = vmatprep.subr.mxu0 0.0
    %52 = vmatpush1.msra.mxu0 %v27
    %53 = vmatprep.subr.mxu0 0.0
    %54 = vmatpush1.msra.mxu0 %v28
    %55 = vmatprep.subr.mxu0 0.0
    %56 = vmatpush1.msra.mxu0 %v29
    %57 = vmatprep.subr.mxu0 0.0
    %58 = vmatpush1.msra.mxu0 0.0
    %59 = vmatprep.subr.mxu0 0.0
    %60 = vmatpush1.msra.mxu0 0.0
    %61 = vmatprep.subr.mxu0 0.0
    %62 = vmatpush1.msra.mxu0 0.0
    %63 = vmatprep.subr.mxu0 0.0
    %64 = vmatpush1.msra.mxu0 0.0
    %65 = vmatprep.subr.mxu0 0.0
    %66 = vmatpush1.msra.mxu0 0.0
    %67 = vmatprep.subr.mxu0 0.0
    %68 = vmatpush1.msra.mxu0 0.0
    %69 = vmatprep.subr.mxu0 0.0
    %70 = vmatpush1.msra.mxu0 0.0
    %71 = vmatprep.subr.mxu0 0.0
    %72 = vmatpush1.msra.mxu0 0.0
    %73 = vmatprep.subr.mxu0 0.0
    %74 = vmatpush1.msra.mxu0 0.0
    %75 = vmatprep.subr.mxu0 0.0
    %76 = vmatpush1.msra.mxu0 0.0
    %77 = vmatprep.subr.mxu0 0.0
    %78 = vmatpush1.msra.mxu0 0.0
    %79 = vmatprep.subr.mxu0 0.0
    %80 = vmatpush1.msra.mxu0 0.0
    %81 = vmatprep.subr.mxu0 0.0
    %82 = vmatpush1.msra.mxu0 0.0
    %83 = vmatprep.subr.mxu0 0.0
    %84 = vmatpush1.msra.mxu0 0.0
    %85 = vmatprep.subr.mxu0 0.0
    %86 = vmatpush1.msra.mxu0 0.0
    %87 = vmatprep.subr.mxu0 0.0
    %88 = vmatpush1.msra.mxu0 0.0
    %89 = vmatprep.subr.mxu0 0.0
    %90 = vmatpush1.msra.mxu0 0.0
    %91 = vmatprep.subr.mxu0 0.0
    %92 = vmatpush1.msra.mxu0 0.0
    %93 = vmatprep.subr.mxu0 0.0
    %94 = vmatpush1.msra.mxu0 0.0
    %95 = vmatprep.subr.mxu0 0.0
    %96 = vmatpush1.msra.mxu0 0.0
    %97 = vmatprep.subr.mxu0 0.0
    %98 = vmatpush1.msra.mxu0 0.0
    %99 = vmatprep.subr.mxu0 0.0
    %100 = vmatpush1.msra.mxu0 0.0
    %101 = vmatprep.subr.mxu0 0.0
    %102 = vmatpush1.msra.mxu0 0.0
    %103 = vmatprep.subr.mxu0 0.0
    %104 = vmatpush1.msra.mxu0 0.0
    %105 = vmatprep.mubr.f32.mxu0 0.0
    %106 = vmatmul.mubr.f32.gmra.mrb[0].mxu0 %v39
    %v107 = vpop.f32.mrb[0].mxu0
    %v108 = vadd.f32 %v35, %v107
    %v109 = vpop.f32.mrb[0].mxu0
    %110 = vdwg.mxu0
    %v111 = vmax.f32 %v108, 0.0
    %v112 = vld [vmem:[%s3] sm:$0xff]
    %v113 = vld [vmem:[%s3 + $0x8] sm:$0xff]
    %v114 = vld [vmem:[%s3 + $0x10] sm:$0xff]
    %v115 = vld [vmem:[%s3 + $0x18] sm:$0xff]
    %v116 = vld [vmem:[%s3 + $0x20] sm:$0xff]
    %v117 = vld [vmem:[%s3 + $0x28] sm:$0xff]
    %v118 = vld [vmem:[%s3 + $0x30] sm:$0xff]
    %v119 = vld [vmem:[%s3 + $0x38] sm:$0xff]
    %v120 = vld [vmem:[%s4] sm:$0x1]
    %v122 = vlaneseq
    %v123 = vshrl.u32 %v122, 7
    %v124 = vsub.s32 0, %v123
    %v125 = vrot.slane %v120, %v124
    %v128 = vsel %vm37, %v111, 0
    %130 = vmatprep.subr.mxu0 0.0
    %131 = vmatpush1.msra.mxu0 %v112
    %132 = vmatprep.subr.mxu0 0.0
    %133 = vmatpush1.msra.mxu0 %v113
    %134 = vmatprep.subr.mxu0 0.0
    %135 = vmatpush1.msra.mxu0 %v114
    %136 = vmatprep.subr.mxu0 0.0
    %137 = vmatpush1.msra.mxu0 %v115
    %138 = vmatprep.subr.mxu0 0.0
    %139 = vmatpush1.msra.mxu0 %v116
    %140 = vmatprep.subr.mxu0 0.0
    %141 = vmatpush1.msra.mxu0 %v117
    %142 = vmatprep.subr.mxu0 0.0
    %143 = vmatpush1.msra.mxu0 %v118
    %144 = vmatprep.subr.mxu0 0.0
    %145 = vmatpush1.msra.mxu0 %v119
    %146 = vmatprep.subr.mxu0 0.0
    %147 = vmatpush1.msra.mxu0 0.0
    %148 = vmatprep.subr.mxu0 0.0
    %149 = vmatpush1.msra.mxu0 0.0
    %150 = vmatprep.subr.mxu0 0.0
    %151 = vmatpush1.msra.mxu0 0.0
    %152 = vmatprep.subr.mxu0 0.0
    %153 = vmatpush1.msra.mxu0 0.0
    %154 = vmatprep.subr.mxu0 0.0
    %155 = vmatpush1.msra.mxu0 0.0
    %156 = vmatprep.subr.mxu0 0.0
    %157 = vmatpush1.msra.mxu0 0.0
    %158 = vmatprep.subr.mxu0 0.0
    %159 = vmatpush1.msra.mxu0 0.0
    %160 = vmatprep.subr.mxu0 0.0
    %161 = vmatpush1.msra.mxu0 0.0
    %162 = vmatprep.subr.mxu0 0.0
    %163 = vmatpush1.msra.mxu0 0.0
    %164 = vmatprep.subr.mxu0 0.0
    %165 = vmatpush1.msra.mxu0 0.0
    %166 = vmatprep.subr.mxu0 0.0
    %167 = vmatpush1.msra.mxu0 0.0
    %168 = vmatprep.subr.mxu0 0.0
    %169 = vmatpush1.msra.mxu0 0.0
    %170 = vmatprep.subr.mxu0 0.0
    %171 = vmatpush1.msra.mxu0 0.0
    %172 = vmatprep.subr.mxu0 0.0
    %173 = vmatpush1.msra.mxu0 0.0
    %174 = vmatprep.subr.mxu0 0.0
    %175 = vmatpush1.msra.mxu0 0.0
    %176 = vmatprep.subr.mxu0 0.0
    %177 = vmatpush1.msra.mxu0 0.0
    %178 = vmatprep.subr.mxu0 0.0
    %179 = vmatpush1.msra.mxu0 0.0
    %180 = vmatprep.subr.mxu0 0.0
    %181 = vmatpush1.msra.mxu0 0.0
    %182 = vmatprep.subr.mxu0 0.0
    %183 = vmatpush1.msra.mxu0 0.0
    %184 = vmatprep.subr.mxu0 0.0
    %185 = vmatpush1.msra.mxu0 0.0
    %186 = vmatprep.subr.mxu0 0.0
    %187 = vmatpush1.msra.mxu0 0.0
    %188 = vmatprep.subr.mxu0 0.0
    %189 = vmatpush1.msra.mxu0 0.0
    %190 = vmatprep.subr.mxu0 0.0
    %191 = vmatpush1.msra.mxu0 0.0
    %192 = vmatprep.subr.mxu0 0.0
    %193 = vmatpush1.msra.mxu0 0.0
    %194 = vmatprep.mubr.f32.mxu0 0.0
    %195 = vmatmul.mubr.f32.gmra.mrb[0].mxu0 %v128
    %v196 = vpop.f32.mrb[0].mxu0
    %v197 = vadd.f32 %v125, %v196
    %v198 = vpop.f32.mrb[0].mxu0
    %199 = vdwg.mxu0
    %vm200 = vcmask 517120
    %201 = vst.msk [vmem:[#allocation2] sm:$0x3] %vm200, %v197
    // Predicated region
    $region22: #{signet_forward.19} parent=1 // pred_check
      _
    $region23: #{signet_forward.19} parent=1 // pred_check_branch
      %203 = sbr.rel (0) target = $region25
    $region24: #{signet_forward.19} parent=1 // pred_region
      %s205 = ssub.s32 32, 32
      %206 = vsyncadd [#allocation3], %s205
      %s208 = sshll.u32 [#allocation2], 4
      %s209 = int_to_ptr.vmem [resolvable:$true] %s208
      %211 = dma.vmem_to_hbm [thread:$0]  %s209, 32, %s5, [#allocation3]
    $region25: #{signet_forward.19} parent=1 // pred_fallthru
      _
    // Predicated region
    $region26: #{signet_forward.19} parent=1 // pred_check
      _
    $region27: #{signet_forward.19} parent=1 // pred_check_branch
      %213 = sbr.rel (0) target = $region29
    $region28: #{signet_forward.19} parent=1 // pred_region
      %214 = dma.done [#allocation3], 32
    $region29: #{signet_forward.19} parent=1 // pred_fallthru
      _
    %215 = vsyncpa [#allocation3], 1

// kernel: signet_forward.12
$region0: #{signet_forward.12}
  #allocation0 [shape = 'u32[]', space=smem, size = 0x4, offset = 0x4, fixed_abs, tag = 'smem constant byte address 0x4 - core index']
  #allocation1 [shape = 'u32[144,128]{1,0:T(1,128)}', space=vmem, size = 0x12000, scoped, tag = 'internal scratch']
  %s0 = inlined_call_operand.vmem [shape: bf16[16,16], index: 0, kind: input, shape index: {}]
  %s1 = inlined_call_operand.vmem [shape: bf16[16,8], index: 1, kind: input, shape index: {}]
  %s2 = inlined_call_operand.vmem [shape: f32[8,32], index: 2, kind: input, shape index: {}]
  %s3 = inlined_call_operand.vmem [shape: f32[1,32], index: 3, kind: input, shape index: {}]
  %s4 = inlined_call_operand.vmem [shape: f32[32,32], index: 4, kind: input, shape index: {}]
  %s5 = inlined_call_operand.vmem [shape: f32[1,32], index: 5, kind: input, shape index: {}]
  %s6 = inlined_call_operand.vmem [shape: f32[2,16], index: 6, kind: input, shape index: {}]
  %s7 = inlined_call_operand.vmem [shape: f32[1,16], index: 7, kind: input, shape index: {}]
  %s8 = inlined_call_operand.vmem [shape: bf16[16,32], index: 8, kind: output, shape index: {0}]
  %s9 = inlined_call_operand.vmem [shape: f32[1,2,32], index: 9, kind: output, shape index: {1}]
  %10 = xla_tuple %s8, %s9
  %s11 = sld [smem:[#allocation0]]
  $region54: #{signet_forward.12} parent=0
    _
  %s13 = ssub.s32 1, %s11
  %s14 = scalar_select 0, %s13, %s11
  // Predicated region
  $region2: #{signet_forward.12} parent=0 // pred_check
    _
  $region3: #{signet_forward.12} parent=0 // pred_check_branch
    %16 = sbr.rel (0) target = $region5
  $region4: #{signet_forward.12} parent=0 // pred_region
    %s17 = sadd.s32 0, 0
    %s18 = smul.u32 2, %s17
    %p19 = scmp.lt.s32.totalorder %s18, 1
    %s20 = scalar_select %p19, %s18, 1
    %s21 = smul.addr %s20, 4
    %s22 = scalar_lea.vmem %s0, %s21
    %s23 = sadd.s32 0, 0
    %s24 = smul.u32 2, %s23
  $region5: #{signet_forward.12} parent=0 // pred_fallthru
    _
  // Predicated region
  $region6: #{signet_forward.12} parent=0 // pred_check
    _
  $region7: #{signet_forward.12} parent=0 // pred_check_branch
    %26 = sbr.rel (0) target = $region9
  $region8: #{signet_forward.12} parent=0 // pred_region
    _
  $region9: #{signet_forward.12} parent=0 // pred_fallthru
    _
  // Predicated region
  $region10: #{signet_forward.12} parent=0 // pred_check
    _
  $region11: #{signet_forward.12} parent=0 // pred_check_branch
    %28 = sbr.rel (0) target = $region13
  $region12: #{signet_forward.12} parent=0 // pred_region
    _
  $region13: #{signet_forward.12} parent=0 // pred_fallthru
    _
  // Predicated region
  $region14: #{signet_forward.12} parent=0 // pred_check
    _
  $region15: #{signet_forward.12} parent=0 // pred_check_branch
    %30 = sbr.rel (0) target = $region17
  $region16: #{signet_forward.12} parent=0 // pred_region
    _
  $region17: #{signet_forward.12} parent=0 // pred_fallthru
    _
  // Predicated region
  $region18: #{signet_forward.12} parent=0 // pred_check
    _
  $region19: #{signet_forward.12} parent=0 // pred_check_branch
    %32 = sbr.rel (0) target = $region21
  $region20: #{signet_forward.12} parent=0 // pred_region
    _
  $region21: #{signet_forward.12} parent=0 // pred_fallthru
    _
  // Predicated region
  $region22: #{signet_forward.12} parent=0 // pred_check
    _
  $region23: #{signet_forward.12} parent=0 // pred_check_branch
    %34 = sbr.rel (0) target = $region25
  $region24: #{signet_forward.12} parent=0 // pred_region
    _
  $region25: #{signet_forward.12} parent=0 // pred_fallthru
    _
  // Predicated region
  $region26: #{signet_forward.12} parent=0 // pred_check
    _
  $region27: #{signet_forward.12} parent=0 // pred_check_branch
    %36 = sbr.rel (0) target = $region29
  $region28: #{signet_forward.12} parent=0 // pred_region
    %s37 = sadd.s32 0, 0
    %p38 = scmp.lt.s32.totalorder %s37, 0
    %s39 = scalar_select %p38, %s37, 0
    %s40 = smul.addr %s39, 2
    %s41 = scalar_lea.vmem %s6, %s40
    %s42 = sadd.s32 0, 0
  $region29: #{signet_forward.12} parent=0 // pred_fallthru
    _
  // Predicated region
  $region30: #{signet_forward.12} parent=0 // pred_check
    _
  $region31: #{signet_forward.12} parent=0 // pred_check_branch
    %44 = sbr.rel (0) target = $region33
  $region32: #{signet_forward.12} parent=0 // pred_region
    %s45 = sadd.s32 0, 0
    %p46 = scmp.lt.s32.totalorder %s45, 0
    %s47 = scalar_select %p46, %s45, 0
    %s48 = scalar_lea.vmem %s7, %s47
    %s49 = sadd.s32 0, 0
  $region33: #{signet_forward.12} parent=0 // pred_fallthru
    _
  %s50 = sadd.s32 0, 0
  %s51 = smul.u32 2, %s50
  %p52 = scmp.lt.s32.totalorder %s51, 1
  %s53 = scalar_select %p52, %s51, 1
  %s54 = smul.addr %s53, 4
  %s55 = scalar_lea.vmem %s0, %s54
  %s56 = sadd.s32 0, 0
  %p57 = scmp.lt.s32.totalorder %s56, 0
  %s58 = scalar_select %p57, %s56, 0
  %s59 = smul.addr %s58, 2
  %s60 = scalar_lea.vmem %s6, %s59
  %s61 = sadd.s32 0, 0
  %p62 = scmp.lt.s32.totalorder %s61, 0
  %s63 = scalar_select %p62, %s61, 0
  %s64 = scalar_lea.vmem %s7, %s63
  %s65 = sadd.s32 0, 0
  %s66 = smul.u32 2, %s65
  %p67 = scmp.lt.s32.totalorder %s66, 1
  %s68 = scalar_select %p67, %s66, 1
  %s69 = smul.addr %s68, 4
  %s70 = scalar_lea.vmem %s8, %s69
  %s71 = sadd.s32 0, 0
  %s72 = smul.u32 2, %s71
  %p73 = scmp.lt.s32.totalorder %s72, 1
  %s74 = scalar_select %p73, %s72, 1
  %s75 = smul.addr %s74, 4
  %s76 = scalar_lea.vmem %s0, %s75
  %s77 = sadd.s32 0, 0
  %s78 = smul.u32 2, %s77
  %s79 = sadd.s32 0, 0
  %p80 = scmp.lt.s32.totalorder %s79, 0
  %s81 = scalar_select %p80, %s79, 0
  %s82 = smul.addr %s81, 2
  %s83 = scalar_lea.vmem %s6, %s82
  %s84 = sadd.s32 0, 0
  %s85 = sadd.s32 0, 0
  %p86 = scmp.lt.s32.totalorder %s85, 0
  %s87 = scalar_select %p86, %s85, 0
  %s88 = scalar_lea.vmem %s7, %s87
  %s89 = sadd.s32 0, 0
  %s90 = sadd.s32 0, 0
  %s91 = smul.u32 2, %s90
  %p92 = scmp.lt.s32.totalorder %s91, 1
  %s93 = scalar_select %p92, %s91, 1
  %s94 = smul.addr %s93, 4
  %s95 = scalar_lea.vmem %s8, %s94
  %s96 = sadd.s32 0, 0
  %s97 = smul.u32 2, %s96
  %s99 = sadd.s32 0, 0
  %s100 = smul.u32 %s99, 16
  %v101 = vld [vmem:[%s1] sm:$0xf]
  %v102 = vld [vmem:[%s1 + $0x4] sm:$0xf]
  %s103 = sshra.s32 %s100, 3
  %s104 = sand.u32 %s100, 7
  %s105 = smul.addr %s103, 4
  %s106 = scalar_lea.vmem %s1, %s105
  %v107 = vld [vmem:[%s106] sm:$0xf]
  %v108 = vld [vmem:[%s106 + $0x4] sm:$0xf]
  %v109 = vunpack.c.l.bf16 %v107
  %v110 = vunpack.c.l.bf16 %v108
  %v111 = vld [vmem:[%s76] sm:$0xf]
  %v112 = vld [vmem:[%s76 + $0x4] sm:$0xf]
  %v115 = vunpack.c.l.b16 %v111
  %v116 = vunpack.c.l.b16 %v112
  %v117 = vpack.c.b16 %v116, %v115
  %v120 = vunpack.c.l.b16 %v101
  %v121 = vunpack.c.l.b16 %v102
  %v122 = vpack.c.b16 %v121, %v120
  %vm124 = vcmask 130048
  %v126 = vsel %vm124, %v117, 0
  %128 = vmatprep.subr.bf16.mxu0 0
  %129 = vmatpush1.bf16.msra.mxu0 %v122
  %130 = vmatprep.subr.bf16.mxu0 0
  %131 = vmatpush1.bf16.msra.mxu0 0
  %132 = vmatprep.subr.bf16.mxu0 0
  %133 = vmatpush1.bf16.msra.mxu0 0
  %134 = vmatprep.subr.bf16.mxu0 0
  %135 = vmatpush1.bf16.msra.mxu0 0
  %136 = vmatprep.subr.bf16.mxu0 0
  %137 = vmatpush1.bf16.msra.mxu0 0
  %138 = vmatprep.subr.bf16.mxu0 0
  %139 = vmatpush1.bf16.msra.mxu0 0
  %140 = vmatprep.subr.bf16.mxu0 0
  %141 = vmatpush1.bf16.msra.mxu0 0
  %142 = vmatprep.subr.bf16.mxu0 0
  %143 = vmatpush1.bf16.msra.mxu0 0
  %144 = vmatprep.subr.bf16.mxu0 0
  %145 = vmatpush1.bf16.msra.mxu0 0
  %146 = vmatprep.subr.bf16.mxu0 0
  %147 = vmatpush1.bf16.msra.mxu0 0
  %148 = vmatprep.subr.bf16.mxu0 0
  %149 = vmatpush1.bf16.msra.mxu0 0
  %150 = vmatprep.subr.bf16.mxu0 0
  %151 = vmatpush1.bf16.msra.mxu0 0
  %152 = vmatprep.subr.bf16.mxu0 0
  %153 = vmatpush1.bf16.msra.mxu0 0
  %154 = vmatprep.subr.bf16.mxu0 0
  %155 = vmatpush1.bf16.msra.mxu0 0
  %156 = vmatprep.subr.bf16.mxu0 0
  %157 = vmatpush1.bf16.msra.mxu0 0
  %158 = vmatprep.subr.bf16.mxu0 0
  %159 = vmatpush1.bf16.msra.mxu0 0
  %160 = vmatprep.mubr.bf16.mxu0 0
  %161 = vmatmul.mubr.bf16.gmra.mrb[0].mxu0 %v126
  %v162 = vpop.f32.mrb[0].mxu0
  %v163 = vadd.f32 0.0, %v162
  %v164 = vpop.f32.mrb[0].mxu0
  %v165 = vpop.f32.mrb[0].mxu0
  %v166 = vadd.f32 0.0, %v165
  %v167 = vpop.f32.mrb[0].mxu0
  %168 = vdwg.mxu0
  %v169 = vadd.f32 %v109, %v163
  %v170 = vadd.f32 %v110, %v166
  %v171 = vld [vmem:[%s2] sm:$0xff]
  %v172 = vld [vmem:[%s3] sm:$0x1]
  %v174 = vlaneseq
  %v175 = vshrl.u32 %v174, 7
  %v176 = vsub.s32 0, %v175
  %v177 = vrot.slane %v172, %v176
  %vm179 = vcmask 64512
  %v181 = vsel %vm179, %v169, 0
  %v184 = vsel %vm179, %v170, 0
  %186 = vmatprep.subr.mxu0 0.0
  %187 = vmatpush1.msra.mxu0 %v171
  %188 = vmatprep.subr.mxu0 0.0
  %189 = vmatpush1.msra.mxu0 0.0
  %190 = vmatprep.subr.mxu0 0.0
  %191 = vmatpush1.msra.mxu0 0.0
  %192 = vmatprep.subr.mxu0 0.0
  %193 = vmatpush1.msra.mxu0 0.0
  %194 = vmatprep.subr.mxu0 0.0
  %195 = vmatpush1.msra.mxu0 0.0
  %196 = vmatprep.subr.mxu0 0.0
  %197 = vmatpush1.msra.mxu0 0.0
  %198 = vmatprep.subr.mxu0 0.0
  %199 = vmatpush1.msra.mxu0 0.0
  %200 = vmatprep.subr.mxu0 0.0
  %201 = vmatpush1.msra.mxu0 0.0
  %202 = vmatprep.subr.mxu0 0.0
  %203 = vmatpush1.msra.mxu0 0.0
  %204 = vmatprep.subr.mxu0 0.0
  %205 = vmatpush1.msra.mxu0 0.0
  %206 = vmatprep.subr.mxu0 0.0
  %207 = vmatpush1.msra.mxu0 0.0
  %208 = vmatprep.subr.mxu0 0.0
  %209 = vmatpush1.msra.mxu0 0.0
  %210 = vmatprep.subr.mxu0 0.0
  %211 = vmatpush1.msra.mxu0 0.0
  %212 = vmatprep.subr.mxu0 0.0
  %213 = vmatpush1.msra.mxu0 0.0
  %214 = vmatprep.subr.mxu0 0.0
  %215 = vmatpush1.msra.mxu0 0.0
  %216 = vmatprep.subr.mxu0 0.0
  %217 = vmatpush1.msra.mxu0 0.0
  %218 = vmatprep.subr.mxu0 0.0
  %219 = vmatpush1.msra.mxu0 0.0
  %220 = vmatprep.subr.mxu0 0.0
  %221 = vmatpush1.msra.mxu0 0.0
  %222 = vmatprep.subr.mxu0 0.0
  %223 = vmatpush1.msra.mxu0 0.0
  %224 = vmatprep.subr.mxu0 0.0
  %225 = vmatpush1.msra.mxu0 0.0
  %226 = vmatprep.subr.mxu0 0.0
  %227 = vmatpush1.msra.mxu0 0.0
  %228 = vmatprep.subr.mxu0 0.0
  %229 = vmatpush1.msra.mxu0 0.0
  %230 = vmatprep.subr.mxu0 0.0
  %231 = vmatpush1.msra.mxu0 0.0
  %232 = vmatprep.subr.mxu0 0.0
  %233 = vmatpush1.msra.mxu0 0.0
  %234 = vmatprep.subr.mxu0 0.0
  %235 = vmatpush1.msra.mxu0 0.0
  %236 = vmatprep.subr.mxu0 0.0
  %237 = vmatpush1.msra.mxu0 0.0
  %238 = vmatprep.subr.mxu0 0.0
  %239 = vmatpush1.msra.mxu0 0.0
  %240 = vmatprep.subr.mxu0 0.0
  %241 = vmatpush1.msra.mxu0 0.0
  %242 = vmatprep.subr.mxu0 0.0
  %243 = vmatpush1.msra.mxu0 0.0
  %244 = vmatprep.subr.mxu0 0.0
  %245 = vmatpush1.msra.mxu0 0.0
  %246 = vmatprep.subr.mxu0 0.0
  %247 = vmatpush1.msra.mxu0 0.0
  %248 = vmatprep.subr.mxu0 0.0
  %249 = vmatpush1.msra.mxu0 0.0
  %250 = vmatprep.mubr.f32.mxu0 0.0
  %251 = vmatmul.mubr.f32.gmra.mrb[0].mxu0 %v181
  %v252 = vpop.f32.mrb[0].mxu0
  %v253 = vadd.f32 %v177, %v252
  %v254 = vpop.f32.mrb[0].mxu0
  %255 = vmatprep.mubr.f32.mxu0 0.0
  %256 = vmatmul.mubr.f32.gmra.mrb[0].mxu0 %v184
  %v257 = vpop.f32.mrb[0].mxu0
  %v258 = vadd.f32 %v177, %v257
  %v259 = vpop.f32.mrb[0].mxu0
  %260 = vdwg.mxu0
  %v261 = vmax.f32 %v253, 0.0
  %v262 = vmax.f32 %v258, 0.0
  %v263 = vld [vmem:[%s4] sm:$0xff]
  %v264 = vld [vmem:[%s4 + $0x8] sm:$0xff]
  %v265 = vld [vmem:[%s4 + $0x10] sm:$0xff]
  %v266 = vld [vmem:[%s4 + $0x18] sm:$0xff]
  %v267 = vld [vmem:[%s5] sm:$0x1]
  %v269 = vlaneseq
  %v270 = vshrl.u32 %v269, 7
  %v271 = vsub.s32 0, %v270
  %v272 = vrot.slane %v267, %v271
  %vm274 = vcmask 261120
  %v276 = vsel %vm274, %v261, 0
  %v279 = vsel %vm274, %v262, 0
  %281 = vmatprep.subr.mxu0 0.0
  %282 = vmatpush1.msra.mxu0 %v263
  %283 = vmatprep.subr.mxu0 0.0
  %284 = vmatpush1.msra.mxu0 %v264
  %285 = vmatprep.subr.mxu0 0.0
  %286 = vmatpush1.msra.mxu0 %v265
  %287 = vmatprep.subr.mxu0 0.0
  %288 = vmatpush1.msra.mxu0 %v266
  %289 = vmatprep.subr.mxu0 0.0
  %290 = vmatpush1.msra.mxu0 0.0
  %291 = vmatprep.subr.mxu0 0.0
  %292 = vmatpush1.msra.mxu0 0.0
  %293 = vmatprep.subr.mxu0 0.0
  %294 = vmatpush1.msra.mxu0 0.0
  %295 = vmatprep.subr.mxu0 0.0
  %296 = vmatpush1.msra.mxu0 0.0
  %297 = vmatprep.subr.mxu0 0.0
  %298 = vmatpush1.msra.mxu0 0.0
  %299 = vmatprep.subr.mxu0 0.0
  %300 = vmatpush1.msra.mxu0 0.0
  %301 = vmatprep.subr.mxu0 0.0
  %302 = vmatpush1.msra.mxu0 0.0
  %303 = vmatprep.subr.mxu0 0.0
  %304 = vmatpush1.msra.mxu0 0.0
  %305 = vmatprep.subr.mxu0 0.0
  %306 = vmatpush1.msra.mxu0 0.0
  %307 = vmatprep.subr.mxu0 0.0
  %308 = vmatpush1.msra.mxu0 0.0
  %309 = vmatprep.subr.mxu0 0.0
  %310 = vmatpush1.msra.mxu0 0.0
  %311 = vmatprep.subr.mxu0 0.0
  %312 = vmatpush1.msra.mxu0 0.0
  %313 = vmatprep.subr.mxu0 0.0
  %314 = vmatpush1.msra.mxu0 0.0
  %315 = vmatprep.subr.mxu0 0.0
  %316 = vmatpush1.msra.mxu0 0.0
  %317 = vmatprep.subr.mxu0 0.0
  %318 = vmatpush1.msra.mxu0 0.0
  %319 = vmatprep.subr.mxu0 0.0
  %320 = vmatpush1.msra.mxu0 0.0
  %321 = vmatprep.subr.mxu0 0.0
  %322 = vmatpush1.msra.mxu0 0.0
  %323 = vmatprep.subr.mxu0 0.0
  %324 = vmatpush1.msra.mxu0 0.0
  %325 = vmatprep.subr.mxu0 0.0
  %326 = vmatpush1.msra.mxu0 0.0
  %327 = vmatprep.subr.mxu0 0.0
  %328 = vmatpush1.msra.mxu0 0.0
  %329 = vmatprep.subr.mxu0 0.0
  %330 = vmatpush1.msra.mxu0 0.0
  %331 = vmatprep.subr.mxu0 0.0
  %332 = vmatpush1.msra.mxu0 0.0
  %333 = vmatprep.subr.mxu0 0.0
  %334 = vmatpush1.msra.mxu0 0.0
  %335 = vmatprep.subr.mxu0 0.0
  %336 = vmatpush1.msra.mxu0 0.0
  %337 = vmatprep.subr.mxu0 0.0
  %338 = vmatpush1.msra.mxu0 0.0
  %339 = vmatprep.subr.mxu0 0.0
  %340 = vmatpush1.msra.mxu0 0.0
  %341 = vmatprep.subr.mxu0 0.0
  %342 = vmatpush1.msra.mxu0 0.0
  %343 = vmatprep.subr.mxu0 0.0
  %344 = vmatpush1.msra.mxu0 0.0
  %345 = vmatprep.mubr.f32.mxu0 0.0
  %346 = vmatmul.mubr.f32.gmra.mrb[0].mxu0 %v276
  %v347 = vpop.f32.mrb[0].mxu0
  %v348 = vadd.f32 %v272, %v347
  %v349 = vpop.f32.mrb[0].mxu0
  %350 = vmatprep.mubr.f32.mxu0 0.0
  %351 = vmatmul.mubr.f32.gmra.mrb[0].mxu0 %v279
  %v352 = vpop.f32.mrb[0].mxu0
  %v353 = vadd.f32 %v272, %v352
  %v354 = vpop.f32.mrb[0].mxu0
  %355 = vdwg.mxu0
  %v356 = vmax.f32 %v348, 0.0
  %v357 = vmax.f32 %v353, 0.0
  %v358 = vpack.c.bf16 %v357, %v356
  %v360 = vunpack.c.l.b16 %v358
  %v361 = vunpack.c.h.b16 %v358
  %v362 = vpack.c.b16 %v360, %v360
  %v363 = vpack.c.b16 %v361, %v361
  %vm366 = vcmask 257024
  %367 = vst.msk [vmem:[%s95] sm:$0xf] %vm366, %v362
  %368 = vst.msk [vmem:[%s95 + $0x4] sm:$0xf] %vm366, %v363
  %v369 = vld [vmem:[%s83] sm:$0x3]
  %v370 = vld [vmem:[%s88] sm:$0x1]
  %v372 = vlaneseq
  %v373 = vshrl.u32 %v372, 7
  %v374 = vsub.s32 0, %v373
  %v375 = vrot.slane %v370, %v374
  %v377 = vmul.f32 %v369, %v375
  %v379 = vsel %vm124, %v377, 0
  %381 = vmatprep.subr.mxu0 0.0
  %382 = vmatpush1.msra.mxu0 %v356
  %383 = vmatprep.subr.mxu0 0.0
  %384 = vmatpush1.msra.mxu0 %v357
  %385 = vmatprep.subr.mxu0 0.0
  %386 = vmatpush1.msra.mxu0 0.0
  %387 = vmatprep.subr.mxu0 0.0
  %388 = vmatpush1.msra.mxu0 0.0
  %389 = vmatprep.subr.mxu0 0.0
  %390 = vmatpush1.msra.mxu0 0.0
  %391 = vmatprep.subr.mxu0 0.0
  %392 = vmatpush1.msra.mxu0 0.0
  %393 = vmatprep.subr.mxu0 0.0
  %394 = vmatpush1.msra.mxu0 0.0
  %395 = vmatprep.subr.mxu0 0.0
  %396 = vmatpush1.msra.mxu0 0.0
  %397 = vmatprep.subr.mxu0 0.0
  %398 = vmatpush1.msra.mxu0 0.0
  %399 = vmatprep.subr.mxu0 0.0
  %400 = vmatpush1.msra.mxu0 0.0
  %401 = vmatprep.subr.mxu0 0.0
  %402 = vmatpush1.msra.mxu0 0.0
  %403 = vmatprep.subr.mxu0 0.0
  %404 = vmatpush1.msra.mxu0 0.0
  %405 = vmatprep.subr.mxu0 0.0
  %406 = vmatpush1.msra.mxu0 0.0
  %407 = vmatprep.subr.mxu0 0.0
  %408 = vmatpush1.msra.mxu0 0.0
  %409 = vmatprep.subr.mxu0 0.0
  %410 = vmatpush1.msra.mxu0 0.0
  %411 = vmatprep.subr.mxu0 0.0
  %412 = vmatpush1.msra.mxu0 0.0
  %413 = vmatprep.subr.mxu0 0.0
  %414 = vmatpush1.msra.mxu0 0.0
  %415 = vmatprep.subr.mxu0 0.0
  %416 = vmatpush1.msra.mxu0 0.0
  %417 = vmatprep.subr.mxu0 0.0
  %418 = vmatpush1.msra.mxu0 0.0
  %419 = vmatprep.subr.mxu0 0.0
  %420 = vmatpush1.msra.mxu0 0.0
  %421 = vmatprep.subr.mxu0 0.0
  %422 = vmatpush1.msra.mxu0 0.0
  %423 = vmatprep.subr.mxu0 0.0
  %424 = vmatpush1.msra.mxu0 0.0
  %425 = vmatprep.subr.mxu0 0.0
  %426 = vmatpush1.msra.mxu0 0.0
  %427 = vmatprep.subr.mxu0 0.0
  %428 = vmatpush1.msra.mxu0 0.0
  %429 = vmatprep.subr.mxu0 0.0
  %430 = vmatpush1.msra.mxu0 0.0
  %431 = vmatprep.subr.mxu0 0.0
  %432 = vmatpush1.msra.mxu0 0.0
  %433 = vmatprep.subr.mxu0 0.0
  %434 = vmatpush1.msra.mxu0 0.0
  %435 = vmatprep.subr.mxu0 0.0
  %436 = vmatpush1.msra.mxu0 0.0
  %437 = vmatprep.subr.mxu0 0.0
  %438 = vmatpush1.msra.mxu0 0.0
  %439 = vmatprep.subr.mxu0 0.0
  %440 = vmatpush1.msra.mxu0 0.0
  %441 = vmatprep.subr.mxu0 0.0
  %442 = vmatpush1.msra.mxu0 0.0
  %443 = vmatprep.subr.mxu0 0.0
  %444 = vmatpush1.msra.mxu0 0.0
  %445 = vmatprep.mubr.f32.mxu0 0.0
  %446 = vmatmul.mubr.f32.gmra.mrb[0].mxu0 %v379
  %v447 = vpop.f32.mrb[0].mxu0
  %v448 = vadd.f32 0.0, %v447
  %v449 = vpop.f32.mrb[0].mxu0
  %450 = vdwg.mxu0
  %p451 = scmp.eq.s32.totalorder 0, 0
  // Predicated region
  $region34: #{signet_forward.12} parent=0 // pred_check
    %p452 = pneg %p451
  $region35: #{signet_forward.12} parent=0 // pred_check_branch
    %454 = sbr.rel (%p452) target = $region37
  $region36: #{signet_forward.12} parent=0 // pred_region
    %vm455 = vcmask 254976
    %456 = vst.msk [vmem:[%s9] sm:$0x3] %vm455, 0.0
  $region37: #{signet_forward.12} parent=0 // pred_fallthru
    _
  %v457 = vld [vmem:[%s9] sm:$0x3]
  %v458 = vadd.f32 %v457, %v448
  %vm459 = vcmask 254976
  %460 = vst.msk [vmem:[%s9] sm:$0x3] %vm459, %v458
  %s461 = sadd.s32 0, 0
  %s462 = smul.u32 2, %s461
  %p463 = scmp.lt.s32.totalorder %s462, 1
  %s464 = scalar_select %p463, %s462, 1
  %s465 = smul.addr %s464, 4
  %s466 = scalar_lea.vmem %s8, %s465
  // Predicated region
  $region38: #{signet_forward.12} parent=0 // pred_check
    _
  $region39: #{signet_forward.12} parent=0 // pred_check_branch
    %468 = sbr.rel (0) target = $region41
  $region40: #{signet_forward.12} parent=0 // pred_region
    %s469 = sadd.s32 0, 0
    %s470 = smul.u32 2, %s469
  $region41: #{signet_forward.12} parent=0 // pred_fallthru
    _
  // Predicated region
  $region42: #{signet_forward.12} parent=0 // pred_check
    _
  $region43: #{signet_forward.12} parent=0 // pred_check_branch
    %472 = sbr.rel (0) target = $region45
  $region44: #{signet_forward.12} parent=0 // pred_region
    _
  $region45: #{signet_forward.12} parent=0 // pred_fallthru
    _
  // Predicated region
  $region46: #{signet_forward.12} parent=0 // pred_check
    _
  $region47: #{signet_forward.12} parent=0 // pred_check_branch
    %474 = sbr.rel (0) target = $region49
  $region48: #{signet_forward.12} parent=0 // pred_region
    %s475 = sadd.s32 0, 0
    %s476 = smul.u32 2, %s475
    %p477 = scmp.lt.s32.totalorder %s476, 1
    %s478 = scalar_select %p477, %s476, 1
    %s479 = smul.addr %s478, 4
    %s480 = scalar_lea.vmem %s8, %s479
  $region49: #{signet_forward.12} parent=0 // pred_fallthru
    _
  // Predicated region
  $region50: #{signet_forward.12} parent=0 // pred_check
    _
  $region51: #{signet_forward.12} parent=0 // pred_check_branch
    %482 = sbr.rel (0) target = $region53
  $region52: #{signet_forward.12} parent=0 // pred_region
    _
  $region53: #{signet_forward.12} parent=0 // pred_fallthru
    _

// kernel: signet_forward.13
$region0: #{signet_forward.13}
  #allocation0 [shape = 'u32[]', space=smem, size = 0x4, offset = 0x4, fixed_abs, tag = 'smem constant byte address 0x4 - core index']
  #allocation1 [shape = 'u32[144,128]{1,0:T(1,128)}', space=vmem, size = 0x12000, scoped, tag = 'internal scratch']
  %s0 = inlined_call_operand.vmem [shape: bf16[16,16], index: 0, kind: input, shape index: {}]
  %s1 = inlined_call_operand.vmem [shape: bf16[16,32], index: 1, kind: input, shape index: {}]
  %s2 = inlined_call_operand.vmem [shape: f32[32,32], index: 2, kind: input, shape index: {}]
  %s3 = inlined_call_operand.vmem [shape: f32[1,32], index: 3, kind: input, shape index: {}]
  %s4 = inlined_call_operand.vmem [shape: f32[32,32], index: 4, kind: input, shape index: {}]
  %s5 = inlined_call_operand.vmem [shape: f32[1,32], index: 5, kind: input, shape index: {}]
  %s6 = inlined_call_operand.vmem [shape: f32[2,16], index: 6, kind: input, shape index: {}]
  %s7 = inlined_call_operand.vmem [shape: f32[1,16], index: 7, kind: input, shape index: {}]
  %s8 = inlined_call_operand.hbm [shape: bf16[16,32], index: 8, kind: output, shape index: {0}]
  %s9 = inlined_call_operand.vmem [shape: f32[1,2,32], index: 9, kind: output, shape index: {1}]
  %10 = xla_tuple %s8, %s9
  %s11 = sld [smem:[#allocation0]]
  $region54: #{signet_forward.13} parent=0
    _
  %s13 = ssub.s32 1, %s11
  %s14 = scalar_select 0, %s13, %s11
  $region1: #{signet_forward.13} parent=0
    #allocation2 [shape = 'u8[4096]{0}', space=vmem, size = 0x1000, scoped, tag = 'output window, operand 0, single buffered']
    #allocation3 [shape = 's32[1]{0}', space=sflag, size = 0x4, scoped, tag = 'scoped memory for signet_forward.13']
    %15 = vsyncpa [#allocation3], 0
    // Predicated region
    $region2: #{signet_forward.13} parent=1 // pred_check
      _
    $region3: #{signet_forward.13} parent=1 // pred_check_branch
      %17 = sbr.rel (0) target = $region5
    $region4: #{signet_forward.13} parent=1 // pred_region
      %s18 = sadd.s32 0, 0
      %s19 = smul.u32 2, %s18
      %p20 = scmp.lt.s32.totalorder %s19, 1
      %s21 = scalar_select %p20, %s19, 1
      %s22 = smul.addr %s21, 4
      %s23 = scalar_lea.vmem %s0, %s22
      %s24 = sadd.s32 0, 0
      %s25 = smul.u32 2, %s24
    $region5: #{signet_forward.13} parent=1 // pred_fallthru
      _
    // Predicated region
    $region6: #{signet_forward.13} parent=1 // pred_check
      _
    $region7: #{signet_forward.13} parent=1 // pred_check_branch
      %27 = sbr.rel (0) target = $region9
    $region8: #{signet_forward.13} parent=1 // pred_region
      _
    $region9: #{signet_forward.13} parent=1 // pred_fallthru
      _
    // Predicated region
    $region10: #{signet_forward.13} parent=1 // pred_check
      _
    $region11: #{signet_forward.13} parent=1 // pred_check_branch
      %29 = sbr.rel (0) target = $region13
    $region12: #{signet_forward.13} parent=1 // pred_region
      _
    $region13: #{signet_forward.13} parent=1 // pred_fallthru
      _
    // Predicated region
    $region14: #{signet_forward.13} parent=1 // pred_check
      _
    $region15: #{signet_forward.13} parent=1 // pred_check_branch
      %31 = sbr.rel (0) target = $region17
    $region16: #{signet_forward.13} parent=1 // pred_region
      _
    $region17: #{signet_forward.13} parent=1 // pred_fallthru
      _
    // Predicated region
    $region18: #{signet_forward.13} parent=1 // pred_check
      _
    $region19: #{signet_forward.13} parent=1 // pred_check_branch
      %33 = sbr.rel (0) target = $region21
    $region20: #{signet_forward.13} parent=1 // pred_region
      _
    $region21: #{signet_forward.13} parent=1 // pred_fallthru
      _
    // Predicated region
    $region22: #{signet_forward.13} parent=1 // pred_check
      _
    $region23: #{signet_forward.13} parent=1 // pred_check_branch
      %35 = sbr.rel (0) target = $region25
    $region24: #{signet_forward.13} parent=1 // pred_region
      _
    $region25: #{signet_forward.13} parent=1 // pred_fallthru
      _
    // Predicated region
    $region26: #{signet_forward.13} parent=1 // pred_check
      _
    $region27: #{signet_forward.13} parent=1 // pred_check_branch
      %37 = sbr.rel (0) target = $region29
    $region28: #{signet_forward.13} parent=1 // pred_region
      %s38 = sadd.s32 0, 0
      %p39 = scmp.lt.s32.totalorder %s38, 0
      %s40 = scalar_select %p39, %s38, 0
      %s41 = smul.addr %s40, 2
      %s42 = scalar_lea.vmem %s6, %s41
      %s43 = sadd.s32 0, 0
    $region29: #{signet_forward.13} parent=1 // pred_fallthru
      _
    // Predicated region
    $region30: #{signet_forward.13} parent=1 // pred_check
      _
    $region31: #{signet_forward.13} parent=1 // pred_check_branch
      %45 = sbr.rel (0) target = $region33
    $region32: #{signet_forward.13} parent=1 // pred_region
      %s46 = sadd.s32 0, 0
      %p47 = scmp.lt.s32.totalorder %s46, 0
      %s48 = scalar_select %p47, %s46, 0
      %s49 = scalar_lea.vmem %s7, %s48
      %s50 = sadd.s32 0, 0
    $region33: #{signet_forward.13} parent=1 // pred_fallthru
      _
    %s51 = sadd.s32 0, 0
    %s52 = smul.u32 2, %s51
    %p53 = scmp.lt.s32.totalorder %s52, 1
    %s54 = scalar_select %p53, %s52, 1
    %s55 = smul.addr %s54, 4
    %s56 = scalar_lea.vmem %s0, %s55
    %s57 = sadd.s32 0, 0
    %p58 = scmp.lt.s32.totalorder %s57, 0
    %s59 = scalar_select %p58, %s57, 0
    %s60 = smul.addr %s59, 2
    %s61 = scalar_lea.vmem %s6, %s60
    %s62 = sadd.s32 0, 0
    %p63 = scmp.lt.s32.totalorder %s62, 0
    %s64 = scalar_select %p63, %s62, 0
    %s65 = scalar_lea.vmem %s7, %s64
    %s66 = sadd.s32 0, 0
    %s67 = smul.u32 2, %s66
    %p68 = scmp.lt.s32.totalorder %s67, 1
    %s69 = scalar_select %p68, %s67, 1
    %s70 = smul.addr %s69, 4
    %s71 = scalar_lea.vmem %s0, %s70
    %s72 = sadd.s32 0, 0
    %s73 = smul.u32 2, %s72
    %s74 = sadd.s32 0, 0
    %p75 = scmp.lt.s32.totalorder %s74, 0
    %s76 = scalar_select %p75, %s74, 0
    %s77 = smul.addr %s76, 2
    %s78 = scalar_lea.vmem %s6, %s77
    %s79 = sadd.s32 0, 0
    %s80 = sadd.s32 0, 0
    %p81 = scmp.lt.s32.totalorder %s80, 0
    %s82 = scalar_select %p81, %s80, 0
    %s83 = scalar_lea.vmem %s7, %s82
    %s84 = sadd.s32 0, 0
    %s85 = sadd.s32 0, 0
    %s86 = smul.u32 2, %s85
    %s88 = sadd.s32 0, 0
    %s89 = smul.u32 %s88, 16
    %v90 = vld [vmem:[%s1] sm:$0xf]
    %v91 = vld [vmem:[%s1 + $0x4] sm:$0xf]
    %s92 = sshra.s32 %s89, 3
    %s93 = sand.u32 %s89, 7
    %s94 = smul.addr %s92, 4
    %s95 = scalar_lea.vmem %s1, %s94
    %v96 = vld [vmem:[%s95] sm:$0xf]
    %v97 = vld [vmem:[%s95 + $0x4] sm:$0xf]
    %v98 = vunpack.c.l.bf16 %v96
    %v99 = vunpack.c.l.bf16 %v97
    %v100 = vld [vmem:[%s71] sm:$0xf]
    %v101 = vld [vmem:[%s71 + $0x4] sm:$0xf]
    %v104 = vunpack.c.l.b16 %v100
    %v105 = vunpack.c.l.b16 %v101
    %v106 = vpack.c.b16 %v105, %v104
    %v109 = vunpack.c.l.b16 %v90
    %v110 = vunpack.c.l.b16 %v91
    %v111 = vpack.c.b16 %v110, %v109
    %vm113 = vcmask 130048
    %v115 = vsel %vm113, %v106, 0
    %117 = vmatprep.subr.bf16.mxu0 0
    %118 = vmatpush1.bf16.msra.mxu0 %v111
    %119 = vmatprep.subr.bf16.mxu0 0
    %120 = vmatpush1.bf16.msra.mxu0 0
    %121 = vmatprep.subr.bf16.mxu0 0
    %122 = vmatpush1.bf16.msra.mxu0 0
    %123 = vmatprep.subr.bf16.mxu0 0
    %124 = vmatpush1.bf16.msra.mxu0 0
    %125 = vmatprep.subr.bf16.mxu0 0
    %126 = vmatpush1.bf16.msra.mxu0 0
    %127 = vmatprep.subr.bf16.mxu0 0
    %128 = vmatpush1.bf16.msra.mxu0 0
    %129 = vmatprep.subr.bf16.mxu0 0
    %130 = vmatpush1.bf16.msra.mxu0 0
    %131 = vmatprep.subr.bf16.mxu0 0
    %132 = vmatpush1.bf16.msra.mxu0 0
    %133 = vmatprep.subr.bf16.mxu0 0
    %134 = vmatpush1.bf16.msra.mxu0 0
    %135 = vmatprep.subr.bf16.mxu0 0
    %136 = vmatpush1.bf16.msra.mxu0 0
    %137 = vmatprep.subr.bf16.mxu0 0
    %138 = vmatpush1.bf16.msra.mxu0 0
    %139 = vmatprep.subr.bf16.mxu0 0
    %140 = vmatpush1.bf16.msra.mxu0 0
    %141 = vmatprep.subr.bf16.mxu0 0
    %142 = vmatpush1.bf16.msra.mxu0 0
    %143 = vmatprep.subr.bf16.mxu0 0
    %144 = vmatpush1.bf16.msra.mxu0 0
    %145 = vmatprep.subr.bf16.mxu0 0
    %146 = vmatpush1.bf16.msra.mxu0 0
    %147 = vmatprep.subr.bf16.mxu0 0
    %148 = vmatpush1.bf16.msra.mxu0 0
    %149 = vmatprep.mubr.bf16.mxu0 0
    %150 = vmatmul.mubr.bf16.gmra.mrb[0].mxu0 %v115
    %v151 = vpop.f32.mrb[0].mxu0
    %v152 = vadd.f32 0.0, %v151
    %v153 = vpop.f32.mrb[0].mxu0
    %v154 = vpop.f32.mrb[0].mxu0
    %v155 = vadd.f32 0.0, %v154
    %v156 = vpop.f32.mrb[0].mxu0
    %157 = vdwg.mxu0
    %v158 = vadd.f32 %v98, %v152
    %v159 = vadd.f32 %v99, %v155
    %v160 = vld [vmem:[%s2] sm:$0xff]
    %v161 = vld [vmem:[%s2 + $0x8] sm:$0xff]
    %v162 = vld [vmem:[%s2 + $0x10] sm:$0xff]
    %v163 = vld [vmem:[%s2 + $0x18] sm:$0xff]
    %v164 = vld [vmem:[%s3] sm:$0x1]
    %v166 = vlaneseq
    %v167 = vshrl.u32 %v166, 7
    %v168 = vsub.s32 0, %v167
    %v169 = vrot.slane %v164, %v168
    %vm171 = vcmask 261120
    %v173 = vsel %vm171, %v158, 0
    %v176 = vsel %vm171, %v159, 0
    %178 = vmatprep.subr.mxu0 0.0
    %179 = vmatpush1.msra.mxu0 %v160
    %180 = vmatprep.subr.mxu0 0.0
    %181 = vmatpush1.msra.mxu0 %v161
    %182 = vmatprep.subr.mxu0 0.0
    %183 = vmatpush1.msra.mxu0 %v162
    %184 = vmatprep.subr.mxu0 0.0
    %185 = vmatpush1.msra.mxu0 %v163
    %186 = vmatprep.subr.mxu0 0.0
    %187 = vmatpush1.msra.mxu0 0.0
    %188 = vmatprep.subr.mxu0 0.0
    %189 = vmatpush1.msra.mxu0 0.0
    %190 = vmatprep.subr.mxu0 0.0
    %191 = vmatpush1.msra.mxu0 0.0
    %192 = vmatprep.subr.mxu0 0.0
    %193 = vmatpush1.msra.mxu0 0.0
    %194 = vmatprep.subr.mxu0 0.0
    %195 = vmatpush1.msra.mxu0 0.0
    %196 = vmatprep.subr.mxu0 0.0
    %197 = vmatpush1.msra.mxu0 0.0
    %198 = vmatprep.subr.mxu0 0.0
    %199 = vmatpush1.msra.mxu0 0.0
    %200 = vmatprep.subr.mxu0 0.0
    %201 = vmatpush1.msra.mxu0 0.0
    %202 = vmatprep.subr.mxu0 0.0
    %203 = vmatpush1.msra.mxu0 0.0
    %204 = vmatprep.subr.mxu0 0.0
    %205 = vmatpush1.msra.mxu0 0.0
    %206 = vmatprep.subr.mxu0 0.0
    %207 = vmatpush1.msra.mxu0 0.0
    %208 = vmatprep.subr.mxu0 0.0
    %209 = vmatpush1.msra.mxu0 0.0
    %210 = vmatprep.subr.mxu0 0.0
    %211 = vmatpush1.msra.mxu0 0.0
    %212 = vmatprep.subr.mxu0 0.0
    %213 = vmatpush1.msra.mxu0 0.0
    %214 = vmatprep.subr.mxu0 0.0
    %215 = vmatpush1.msra.mxu0 0.0
    %216 = vmatprep.subr.mxu0 0.0
    %217 = vmatpush1.msra.mxu0 0.0
    %218 = vmatprep.subr.mxu0 0.0
    %219 = vmatpush1.msra.mxu0 0.0
    %220 = vmatprep.subr.mxu0 0.0
    %221 = vmatpush1.msra.mxu0 0.0
    %222 = vmatprep.subr.mxu0 0.0
    %223 = vmatpush1.msra.mxu0 0.0
    %224 = vmatprep.subr.mxu0 0.0
    %225 = vmatpush1.msra.mxu0 0.0
    %226 = vmatprep.subr.mxu0 0.0
    %227 = vmatpush1.msra.mxu0 0.0
    %228 = vmatprep.subr.mxu0 0.0
    %229 = vmatpush1.msra.mxu0 0.0
    %230 = vmatprep.subr.mxu0 0.0
    %231 = vmatpush1.msra.mxu0 0.0
    %232 = vmatprep.subr.mxu0 0.0
    %233 = vmatpush1.msra.mxu0 0.0
    %234 = vmatprep.subr.mxu0 0.0
    %235 = vmatpush1.msra.mxu0 0.0
    %236 = vmatprep.subr.mxu0 0.0
    %237 = vmatpush1.msra.mxu0 0.0
    %238 = vmatprep.subr.mxu0 0.0
    %239 = vmatpush1.msra.mxu0 0.0
    %240 = vmatprep.subr.mxu0 0.0
    %241 = vmatpush1.msra.mxu0 0.0
    %242 = vmatprep.mubr.f32.mxu0 0.0
    %243 = vmatmul.mubr.f32.gmra.mrb[0].mxu0 %v173
    %v244 = vpop.f32.mrb[0].mxu0
    %v245 = vadd.f32 %v169, %v244
    %v246 = vpop.f32.mrb[0].mxu0
    %247 = vmatprep.mubr.f32.mxu0 0.0
    %248 = vmatmul.mubr.f32.gmra.mrb[0].mxu0 %v176
    %v249 = vpop.f32.mrb[0].mxu0
    %v250 = vadd.f32 %v169, %v249
    %v251 = vpop.f32.mrb[0].mxu0
    %252 = vdwg.mxu0
    %v253 = vmax.f32 %v245, 0.0
    %v254 = vmax.f32 %v250, 0.0
    %v255 = vld [vmem:[%s4] sm:$0xff]
    %v256 = vld [vmem:[%s4 + $0x8] sm:$0xff]
    %v257 = vld [vmem:[%s4 + $0x10] sm:$0xff]
    %v258 = vld [vmem:[%s4 + $0x18] sm:$0xff]
    %v259 = vld [vmem:[%s5] sm:$0x1]
    %v261 = vlaneseq
    %v262 = vshrl.u32 %v261, 7
    %v263 = vsub.s32 0, %v262
    %v264 = vrot.slane %v259, %v263
    %v267 = vsel %vm171, %v253, 0
    %v270 = vsel %vm171, %v254, 0
    %272 = vmatprep.subr.mxu0 0.0
    %273 = vmatpush1.msra.mxu0 %v255
    %274 = vmatprep.subr.mxu0 0.0
    %275 = vmatpush1.msra.mxu0 %v256
    %276 = vmatprep.subr.mxu0 0.0
    %277 = vmatpush1.msra.mxu0 %v257
    %278 = vmatprep.subr.mxu0 0.0
    %279 = vmatpush1.msra.mxu0 %v258
    %280 = vmatprep.subr.mxu0 0.0
    %281 = vmatpush1.msra.mxu0 0.0
    %282 = vmatprep.subr.mxu0 0.0
    %283 = vmatpush1.msra.mxu0 0.0
    %284 = vmatprep.subr.mxu0 0.0
    %285 = vmatpush1.msra.mxu0 0.0
    %286 = vmatprep.subr.mxu0 0.0
    %287 = vmatpush1.msra.mxu0 0.0
    %288 = vmatprep.subr.mxu0 0.0
    %289 = vmatpush1.msra.mxu0 0.0
    %290 = vmatprep.subr.mxu0 0.0
    %291 = vmatpush1.msra.mxu0 0.0
    %292 = vmatprep.subr.mxu0 0.0
    %293 = vmatpush1.msra.mxu0 0.0
    %294 = vmatprep.subr.mxu0 0.0
    %295 = vmatpush1.msra.mxu0 0.0
    %296 = vmatprep.subr.mxu0 0.0
    %297 = vmatpush1.msra.mxu0 0.0
    %298 = vmatprep.subr.mxu0 0.0
    %299 = vmatpush1.msra.mxu0 0.0
    %300 = vmatprep.subr.mxu0 0.0
    %301 = vmatpush1.msra.mxu0 0.0
    %302 = vmatprep.subr.mxu0 0.0
    %303 = vmatpush1.msra.mxu0 0.0
    %304 = vmatprep.subr.mxu0 0.0
    %305 = vmatpush1.msra.mxu0 0.0
    %306 = vmatprep.subr.mxu0 0.0
    %307 = vmatpush1.msra.mxu0 0.0
    %308 = vmatprep.subr.mxu0 0.0
    %309 = vmatpush1.msra.mxu0 0.0
    %310 = vmatprep.subr.mxu0 0.0
    %311 = vmatpush1.msra.mxu0 0.0
    %312 = vmatprep.subr.mxu0 0.0
    %313 = vmatpush1.msra.mxu0 0.0
    %314 = vmatprep.subr.mxu0 0.0
    %315 = vmatpush1.msra.mxu0 0.0
    %316 = vmatprep.subr.mxu0 0.0
    %317 = vmatpush1.msra.mxu0 0.0
    %318 = vmatprep.subr.mxu0 0.0
    %319 = vmatpush1.msra.mxu0 0.0
    %320 = vmatprep.subr.mxu0 0.0
    %321 = vmatpush1.msra.mxu0 0.0
    %322 = vmatprep.subr.mxu0 0.0
    %323 = vmatpush1.msra.mxu0 0.0
    %324 = vmatprep.subr.mxu0 0.0
    %325 = vmatpush1.msra.mxu0 0.0
    %326 = vmatprep.subr.mxu0 0.0
    %327 = vmatpush1.msra.mxu0 0.0
    %328 = vmatprep.subr.mxu0 0.0
    %329 = vmatpush1.msra.mxu0 0.0
    %330 = vmatprep.subr.mxu0 0.0
    %331 = vmatpush1.msra.mxu0 0.0
    %332 = vmatprep.subr.mxu0 0.0
    %333 = vmatpush1.msra.mxu0 0.0
    %334 = vmatprep.subr.mxu0 0.0
    %335 = vmatpush1.msra.mxu0 0.0
    %336 = vmatprep.mubr.f32.mxu0 0.0
    %337 = vmatmul.mubr.f32.gmra.mrb[0].mxu0 %v267
    %v338 = vpop.f32.mrb[0].mxu0
    %v339 = vadd.f32 %v264, %v338
    %v340 = vpop.f32.mrb[0].mxu0
    %341 = vmatprep.mubr.f32.mxu0 0.0
    %342 = vmatmul.mubr.f32.gmra.mrb[0].mxu0 %v270
    %v343 = vpop.f32.mrb[0].mxu0
    %v344 = vadd.f32 %v264, %v343
    %v345 = vpop.f32.mrb[0].mxu0
    %346 = vdwg.mxu0
    %v347 = vmax.f32 %v339, 0.0
    %v348 = vmax.f32 %v344, 0.0
    %v349 = vpack.c.bf16 %v348, %v347
    %v351 = vunpack.c.l.b16 %v349
    %v352 = vunpack.c.h.b16 %v349
    %v353 = vpack.c.b16 %v351, %v351
    %v354 = vpack.c.b16 %v352, %v352
    %vm357 = vcmask 257024
    %358 = vst.msk [vmem:[#allocation2] sm:$0xf] %vm357, %v353
    %359 = vst.msk [vmem:[#allocation2 + $0x4] sm:$0xf] %vm357, %v354
    %v360 = vld [vmem:[%s78] sm:$0x3]
    %v361 = vld [vmem:[%s83] sm:$0x1]
    %v363 = vlaneseq
    %v364 = vshrl.u32 %v363, 7
    %v365 = vsub.s32 0, %v364
    %v366 = vrot.slane %v361, %v365
    %v368 = vmul.f32 %v360, %v366
    %v370 = vsel %vm113, %v368, 0
    %372 = vmatprep.subr.mxu0 0.0
    %373 = vmatpush1.msra.mxu0 %v347
    %374 = vmatprep.subr.mxu0 0.0
    %375 = vmatpush1.msra.mxu0 %v348
    %376 = vmatprep.subr.mxu0 0.0
    %377 = vmatpush1.msra.mxu0 0.0
    %378 = vmatprep.subr.mxu0 0.0
    %379 = vmatpush1.msra.mxu0 0.0
    %380 = vmatprep.subr.mxu0 0.0
    %381 = vmatpush1.msra.mxu0 0.0
    %382 = vmatprep.subr.mxu0 0.0
    %383 = vmatpush1.msra.mxu0 0.0
    %384 = vmatprep.subr.mxu0 0.0
    %385 = vmatpush1.msra.mxu0 0.0
    %386 = vmatprep.subr.mxu0 0.0
    %387 = vmatpush1.msra.mxu0 0.0
    %388 = vmatprep.subr.mxu0 0.0
    %389 = vmatpush1.msra.mxu0 0.0
    %390 = vmatprep.subr.mxu0 0.0
    %391 = vmatpush1.msra.mxu0 0.0
    %392 = vmatprep.subr.mxu0 0.0
    %393 = vmatpush1.msra.mxu0 0.0
    %394 = vmatprep.subr.mxu0 0.0
    %395 = vmatpush1.msra.mxu0 0.0
    %396 = vmatprep.subr.mxu0 0.0
    %397 = vmatpush1.msra.mxu0 0.0
    %398 = vmatprep.subr.mxu0 0.0
    %399 = vmatpush1.msra.mxu0 0.0
    %400 = vmatprep.subr.mxu0 0.0
    %401 = vmatpush1.msra.mxu0 0.0
    %402 = vmatprep.subr.mxu0 0.0
    %403 = vmatpush1.msra.mxu0 0.0
    %404 = vmatprep.subr.mxu0 0.0
    %405 = vmatpush1.msra.mxu0 0.0
    %406 = vmatprep.subr.mxu0 0.0
    %407 = vmatpush1.msra.mxu0 0.0
    %408 = vmatprep.subr.mxu0 0.0
    %409 = vmatpush1.msra.mxu0 0.0
    %410 = vmatprep.subr.mxu0 0.0
    %411 = vmatpush1.msra.mxu0 0.0
    %412 = vmatprep.subr.mxu0 0.0
    %413 = vmatpush1.msra.mxu0 0.0
    %414 = vmatprep.subr.mxu0 0.0
    %415 = vmatpush1.msra.mxu0 0.0
    %416 = vmatprep.subr.mxu0 0.0
    %417 = vmatpush1.msra.mxu0 0.0
    %418 = vmatprep.subr.mxu0 0.0
    %419 = vmatpush1.msra.mxu0 0.0
    %420 = vmatprep.subr.mxu0 0.0
    %421 = vmatpush1.msra.mxu0 0.0
    %422 = vmatprep.subr.mxu0 0.0
    %423 = vmatpush1.msra.mxu0 0.0
    %424 = vmatprep.subr.mxu0 0.0
    %425 = vmatpush1.msra.mxu0 0.0
    %426 = vmatprep.subr.mxu0 0.0
    %427 = vmatpush1.msra.mxu0 0.0
    %428 = vmatprep.subr.mxu0 0.0
    %429 = vmatpush1.msra.mxu0 0.0
    %430 = vmatprep.subr.mxu0 0.0
    %431 = vmatpush1.msra.mxu0 0.0
    %432 = vmatprep.subr.mxu0 0.0
    %433 = vmatpush1.msra.mxu0 0.0
    %434 = vmatprep.subr.mxu0 0.0
    %435 = vmatpush1.msra.mxu0 0.0
    %436 = vmatprep.mubr.f32.mxu0 0.0
    %437 = vmatmul.mubr.f32.gmra.mrb[0].mxu0 %v370
    %v438 = vpop.f32.mrb[0].mxu0
    %v439 = vadd.f32 0.0, %v438
    %v440 = vpop.f32.mrb[0].mxu0
    %441 = vdwg.mxu0
    %p442 = scmp.eq.s32.totalorder 0, 0
    // Predicated region
    $region34: #{signet_forward.13} parent=1 // pred_check
      %p443 = pneg %p442
    $region35: #{signet_forward.13} parent=1 // pred_check_branch
      %445 = sbr.rel (%p443) target = $region37
    $region36: #{signet_forward.13} parent=1 // pred_region
      %vm446 = vcmask 254976
      %447 = vst.msk [vmem:[%s9] sm:$0x3] %vm446, 0.0
    $region37: #{signet_forward.13} parent=1 // pred_fallthru
      _
    %v448 = vld [vmem:[%s9] sm:$0x3]
    %v449 = vadd.f32 %v448, %v439
    %vm450 = vcmask 254976
    %451 = vst.msk [vmem:[%s9] sm:$0x3] %vm450, %v449
    // Predicated region
    $region38: #{signet_forward.13} parent=1 // pred_check
      _
    $region39: #{signet_forward.13} parent=1 // pred_check_branch
      %453 = sbr.rel (0) target = $region41
    $region40: #{signet_forward.13} parent=1 // pred_region
      %s454 = sadd.s32 0, 0
      %s455 = smul.u32 2, %s454
      %s457 = ssub.s32 128, 128
      %458 = vsyncadd [#allocation3], %s457
      %s459 = smul.addr %s455, 64
      %s460 = scalar_lea.hbm %s8, %s459
      %s461 = sshll.u32 [#allocation2], 4
      %s462 = int_to_ptr.vmem [resolvable:$true] %s461
      %467 = dma.vmem_to_hbm [thread:$0]  %s462, 128, %s460, [#allocation3], 64, 64, 4
    $region41: #{signet_forward.13} parent=1 // pred_fallthru
      _
    // Predicated region
    $region42: #{signet_forward.13} parent=1 // pred_check
      _
    $region43: #{signet_forward.13} parent=1 // pred_check_branch
      %469 = sbr.rel (0) target = $region45
    $region44: #{signet_forward.13} parent=1 // pred_region
      _
    $region45: #{signet_forward.13} parent=1 // pred_fallthru
      _
    // Predicated region
    $region46: #{signet_forward.13} parent=1 // pred_check
      _
    $region47: #{signet_forward.13} parent=1 // pred_check_branch
      %471 = sbr.rel (0) target = $region49
    $region48: #{signet_forward.13} parent=1 // pred_region
      %472 = dma.done [#allocation3], 128
    $region49: #{signet_forward.13} parent=1 // pred_fallthru
      _
    // Predicated region
    $region50: #{signet_forward.13} parent=1 // pred_check
      _
    $region51: #{signet_forward.13} parent=1 // pred_check_branch
      %474 = sbr.rel (0) target = $region53
    $region52: #{signet_forward.13} parent=1 // pred_region
      _
    $region53: #{signet_forward.13} parent=1 // pred_fallthru
      _
    %475 = vsyncpa [#allocation3], 1

</llo_original>
